<compile_context>
chip_gen: v7x
topology: tpu7x:2x2x1
jax: 0.10.0
libtpu: 0.0.40
codegen_flags: <defaults>
</compile_context>

<pallas_src>
import functools
import math

import jax
import jax.numpy as jnp
from jax.experimental import pallas as pl
from jax.experimental.pallas import tpu as pltpu

BN_EPS = 1e-5
MATMUL_DTYPE = jnp.float32   # set to jnp.bfloat16 when scaling to real genomics dims
_PRELU0 = 0.25               # nn.PReLU() default slope

VMEM = pl.BlockSpec(memory_space=pltpu.MemorySpace.VMEM)
SMEM = pl.BlockSpec(memory_space=pltpu.MemorySpace.SMEM)


# ----------------------------- in-kernel helpers -----------------------------

def _linear(x, w_ref, b_ref):
    return jnp.dot(x.astype(MATMUL_DTYPE), w_ref[...].astype(MATMUL_DTYPE),
                   preferred_element_type=jnp.float32) + b_ref[...]


def _bn_normalize(y):
    # BatchNorm1d in training mode: batch statistics, biased variance.
    mean = jnp.mean(y, axis=0, keepdims=True)
    var = jnp.mean((y - mean) ** 2, axis=0, keepdims=True)
    return (y - mean) * jax.lax.rsqrt(var + BN_EPS)


def _bn_prelu(y, gamma, beta, slope):
    y = gamma * _bn_normalize(y) + beta
    return jnp.where(y >= 0.0, y, slope * y)


def _bn_prelu_2groups(y, gamma, beta, slope, batch):
    # y is (2B, F): rows [0:B] are latent group 1, rows [B:2B] are group 2.
    # Statistics computed per group — identical to two separate torch calls.
    yn = jnp.concatenate([_bn_normalize(y[:batch]), _bn_normalize(y[batch:])], axis=0)
    y = gamma * yn + beta
    return jnp.where(y >= 0.0, y, slope * y)


# ------------------------------- fused kernel --------------------------------

def _fused_fwd_kernel(
    x_ref,
    # RNA encoder
    rw1, rb1, rg1, rbt1, rw2, rb2, rg2, rbt2,
    # RP encoder
    pw1, pb1, pg1, pbt1, pw2, pb2, pg2, pbt2,
    # ATAC chromosome encoder (per-chrom layers fused via block-diagonal weights)
    aw1, ab1, ag1, abt1, as1,
    aw2, ab2, ag2, abt2, as2,
    awe, abe, age, abte,
    # Decoder1 (three heads fused into one weight)
    d1w1, d1b1, d1g1, d1bt1, d1wh, d1bh,
    # ChromDecoder
    d2wd1, d2bd1, d2gd1, d2btd1,
    d2w0, d2b0, d2g0, d2bt0, d2s0,
    d2w1, d2b1,
    slopes,            # SMEM (7,): [rna s1, rna s2, rp s1, rp s2, atac enc2 s, dec1 s1, chromdec sd1]
    out_ref,           # (B, 2H + 6*rna + 2*sum(atac))  lane-dense slab
    *, rna_dim, atac_total, rp_dim, batch, atac_ratio):
    B = batch
    x = x_ref[...]
    x_rna = x[:, :rna_dim]
    x_atac = x[:, rna_dim:rna_dim + atac_total]
    x_rp = x[:, rna_dim + atac_total:rna_dim + atac_total + rp_dim]

    # --- RNA encoder: Linear->BN->PReLU x2 ---
    h = _linear(x_rna, rw1, rb1)
    h = _bn_prelu(h, rg1[...], rbt1[...], slopes[0])
    h = _linear(h, rw2, rb2)
    enc1 = _bn_prelu(h, rg2[...], rbt2[...], slopes[1])

    # --- RP encoder ---
    h = _linear(x_rp, pw1, pb1)
    h = _bn_prelu(h, pg1[...], pbt1[...], slopes[2])
    h = _linear(h, pw2, pb2)
    enc_rp = _bn_prelu(h, pg2[...], pbt2[...], slopes[3])

    # --- ATAC chromosome encoder (all chroms fused via block-diagonal weights) ---
    h = _linear(x_atac, aw1, ab1)                         # (B, 32*C)
    h = _bn_prelu(h, ag1[...], abt1[...], as1[...])
    h = _linear(h, aw2, ab2)                              # (B, 16*C) == torch cat(enc_chroms)
    h = _bn_prelu(h, ag2[...], abt2[...], as2[...])
    h = _linear(h, awe, abe)                              # encode2
    enc_atac = _bn_prelu(h, age[...], abte[...], slopes[4])

    enc2 = enc_atac + atac_ratio * enc_rp                 # combine epilogue (fused)

    # --- fold the two latent groups into the matmul M dimension ---
    z = jnp.concatenate([enc1, enc2], axis=0)             # (2B, H)

    # --- Decoder1: Linear->BN->PReLU, then one fused 3-head matmul ---
    h = _linear(z, d1w1, d1b1)                            # (2B, 64)
    h = _bn_prelu_2groups(h, d1g1[...], d1bt1[...], slopes[5], B)
    y = _linear(h, d1wh, d1bh)                            # (2B, 3*rna_dim)
    y1 = jnp.exp(y[:, :rna_dim])                          # activations.Exp()
    y2r = y[:, rna_dim:2 * rna_dim]
    sp = jnp.maximum(y2r, 0.0) + jnp.log1p(jnp.exp(-jnp.abs(y2r)))
    y2 = jnp.clip(sp, 1e-4, 1e3)                          # activations.ClippedSoftplus()
    y3 = y[:, 2 * rna_dim:]                               # no act3

    # --- ChromDecoder: block-diag per-chrom layers, both groups at once ---
    h = _linear(z, d2wd1, d2bd1)                          # (2B, 16*C)
    h = _bn_prelu_2groups(h, d2gd1[...], d2btd1[...], slopes[6], B)
    h = _linear(h, d2w0, d2b0)                            # (2B, 32*C), block-diag ≡ per-chrom
    h = _bn_prelu_2groups(h, d2g0[...], d2bt0[...], d2s0[...], B)
    yc = _linear(h, d2w1, d2b1)                           # (2B, sum(atac_dim))
    sig = 1.0 / (1.0 + jnp.exp(-yc))                      # exact nn.Sigmoid()
    # TODO(synk): ChromDecoder's decode22/decode23 heads are not computed — the
    # AssymSplicedAutoEncoder discards them (num_outputs2 == 1), so outputs match torch.

    # --- single lane-dense output slab: [enc1, enc2, d1(enc1) heads, d1(enc2) heads,
    #      d2(enc1), d2(enc2)] — one wide store instead of many sub-128 masked stores ---
    out_ref[...] = jnp.concatenate(
        [enc1, enc2,
         y1[:B], y2[:B], y3[:B],
         y1[B:], y2[B:], y3[B:],
         sig[:B], sig[B:]], axis=1)


# ------------------------------ kernel wrapper -------------------------------

def _run_fused(params, x, *, rna_dim, atac_dim, rp_dim, hidden_dim, atac_ratio):
    B = x.shape[0]
    A = sum(atac_dim)
    H = hidden_dim
    R = rna_dim
    total = 2 * H + 6 * R + 2 * A
    er, ea, ep = params["encoder_rna"], params["encoder_atac"], params["encoder_rp"]
    d1, d2 = params["decoder1"], params["decoder2"]
    slopes = jnp.stack([er["s1"], er["s2"], ep["s1"], ep["s2"],
                        ea["se"], d1["s1"], d2["sd1"]])
    args = [
        x,
        er["w1"], er["b1"], er["g1"], er["bt1"], er["w2"], er["b2"], er["g2"], er["bt2"],
        ep["w1"], ep["b1"], ep["g1"], ep["bt1"], ep["w2"], ep["b2"], ep["g2"], ep["bt2"],
        ea["w1"], ea["b1"], ea["g1"], ea["bt1"], ea["s1"],
        ea["w2"], ea["b2"], ea["g2"], ea["bt2"], ea["s2"],
        ea["we"], ea["be"], ea["ge"], ea["bte"],
        d1["w1"], d1["b1"], d1["g1"], d1["bt1"], d1["wh"], d1["bh"],
        d2["wd1"], d2["bd1"], d2["gd1"], d2["btd1"],
        d2["w0"], d2["b0"], d2["g0"], d2["bt0"], d2["s0"],
        d2["w1"], d2["b1"],
        slopes,
    ]
    kernel = functools.partial(
        _fused_fwd_kernel, rna_dim=R, atac_total=A, rp_dim=rp_dim,
        batch=B, atac_ratio=float(atac_ratio))
    return pl.pallas_call(
        kernel,
        out_shape=jax.ShapeDtypeStruct((B, total), jnp.float32),
        in_specs=[VMEM] * (len(args) - 1) + [SMEM],
        out_specs=VMEM,
    )(*args)


# -------------------------------- parameter init ------------------------------

class _Keys:
    def __init__(self, seed):
        self._key = jax.random.PRNGKey(seed)

    def __call__(self):
        self._key, sub = jax.random.split(self._key)
        return sub


def _init_linear(keys, din, dout):
    lim = math.sqrt(6.0 / (din + dout))                   # xavier_uniform_
    w = jax.random.uniform(keys(), (din, dout), jnp.float32, -lim, lim)
    bound = 1.0 / math.sqrt(din)                          # torch Linear bias default
    b = jax.random.uniform(keys(), (1, dout), jnp.float32, -bound, bound)
    return w, b


def _block_diag(blocks):
    rows = sum(b.shape[0] for b in blocks)
    cols = sum(b.shape[1] for b in blocks)
    out = jnp.zeros((rows, cols), jnp.float32)
    r = c = 0
    for blk in blocks:
        out = out.at[r:r + blk.shape[0], c:c + blk.shape[1]].set(blk)
        r += blk.shape[0]
        c += blk.shape[1]
    return out


def _bn_params(n):
    return jnp.ones((1, n), jnp.float32), jnp.zeros((1, n), jnp.float32)


def _scalar_slope():
    return jnp.asarray(_PRELU0, jnp.float32)


def init_encoder(keys, num_inputs, num_units):
    w1, b1 = _init_linear(keys, num_inputs, 64)
    g1, bt1 = _bn_params(64)
    w2, b2 = _init_linear(keys, 64, num_units)
    g2, bt2 = _bn_params(num_units)
    return {"w1": w1, "b1": b1, "g1": g1, "bt1": bt1, "s1": _scalar_slope(),
            "w2": w2, "b2": b2, "g2": g2, "bt2": bt2, "s2": _scalar_slope()}


def init_chrom_encoder(keys, num_inputs, latent_dim):
    C = len(num_inputs)
    w1b, b1s, w2b, b2s = [], [], [], []
    for n in num_inputs:
        w1, b1 = _init_linear(keys, n, 32); w1b.append(w1); b1s.append(b1)
        w2, b2 = _init_linear(keys, 32, 16); w2b.append(w2); b2s.append(b2)
    we, be = _init_linear(keys, 16 * C, latent_dim)
    g1, bt1 = _bn_params(32 * C)
    g2, bt2 = _bn_params(16 * C)
    ge, bte = _bn_params(latent_dim)
    return {
        "w1": _block_diag(w1b), "b1": jnp.concatenate(b1s, axis=1),
        "g1": g1, "bt1": bt1, "s1": jnp.full((1, 32 * C), _PRELU0, jnp.float32),
        "w2": _block_diag(w2b), "b2": jnp.concatenate(b2s, axis=1),
        "g2": g2, "bt2": bt2, "s2": jnp.full((1, 16 * C), _PRELU0, jnp.float32),
        "we": we, "be": be, "ge": ge, "bte": bte, "se": _scalar_slope(),
    }


def init_decoder(keys, num_outputs, num_units, intermediate_dim=64):
    w1, b1 = _init_linear(keys, num_units, intermediate_dim)
    g1, bt1 = _bn_params(intermediate_dim)
    w21, b21 = _init_linear(keys, intermediate_dim, num_outputs)
    w22, b22 = _init_linear(keys, intermediate_dim, num_outputs)
    w23, b23 = _init_linear(keys, intermediate_dim, num_outputs)
    # The three heads are fused into one (intermediate_dim, 3*num_outputs) weight:
    # single MXU pass + lane-dense output slab inside the kernel.
    wh = jnp.concatenate([w21, w22, w23], axis=1)
    bh = jnp.concatenate([b21, b22, b23], axis=1)
    return {"w1": w1, "b1": b1, "g1": g1, "bt1": bt1, "s1": _scalar_slope(),
            "wh": wh, "bh": bh}


def init_chrom_decoder(keys, num_outputs, latent_dim):
    C = len(num_outputs)
    wd1, bd1 = _init_linear(keys, latent_dim, 16 * C)
    gd1, btd1 = _bn_params(16 * C)
    w0b, b0s, w1b, b1s = [], [], [], []
    for n in num_outputs:
        w0, b0 = _init_linear(keys, 16, 32); w0b.append(w0); b0s.append(b0)
        w1, b1 = _init_linear(keys, 32, n);  w1b.append(w1); b1s.append(b1)
    g0, bt0 = _bn_params(32 * C)
    return {"wd1": wd1, "bd1": bd1, "gd1": gd1, "btd1": btd1, "sd1": _scalar_slope(),
            "w0": _block_diag(w0b), "b0": jnp.concatenate(b0s, axis=1),
            "g0": g0, "bt0": bt0, "s0": jnp.full((1, 32 * C), _PRELU0, jnp.float32),
            "w1": _block_diag(w1b), "b1": jnp.concatenate(b1s, axis=1)}


def init_assym_spliced_ae(seed, rna_dim, atac_dim, rp_dim, hidden_dim=16):
    keys = _Keys(seed)
    return {
        "encoder_rna": init_encoder(keys, rna_dim, hidden_dim),
        "encoder_atac": init_chrom_encoder(keys, atac_dim, hidden_dim),
        "encoder_rp": init_encoder(keys, rp_dim, hidden_dim),
        "decoder1": init_decoder(keys, rna_dim, hidden_dim),
        "decoder2": init_chrom_decoder(keys, atac_dim, hidden_dim),
    }


# --------------------------------- forward pass --------------------------------

def assym_spliced_ae_fwd(params, x, *, rna_dim, atac_dim, rp_dim, hidden_dim, atac_ratio):
    # flat_mode=True: the catted input is passed whole; splitting happens in-kernel.
    A = sum(atac_dim)
    H = hidden_dim
    R = rna_dim

    slab = _run_fused(params, x, rna_dim=rna_dim, atac_dim=atac_dim, rp_dim=rp_dim,
                      hidden_dim=hidden_dim, atac_ratio=atac_ratio)

    widths = [H, H, R, R, R, R, R, R, A, A]
    offs = [0]
    for w in widths:
        offs.append(offs[-1] + w)
    (enc1, enc2,
     r11, r12, r13,          # decoder1(encoded1): Exp / ClippedSoftplus / raw
     r21, r22, r23,          # decoder1(encoded2)
     s1, s2) = (slab[:, offs[i]:offs[i + 1]] for i in range(len(widths)))

    retval11 = (r11, r12, r13, enc1)     # decoder1(encoded1), num_outputs1 = 2
    retval12 = (s1, enc1)                # decoder2(encoded1), num_outputs2 = 1
    retval21 = (r21, r22, r23, enc2)     # decoder1(encoded2)
    retval22 = (s2, enc2)                # decoder2(encoded2)
    return (retval11, retval12, retval21, retval22)


# ------------------------------------ driver -----------------------------------

if __name__ == "__main__":
    rna_dim = 32
    atac_dim = [16, 24, 16]
    rp_dim = 24
    hidden_dim = 16
    atac_ratio = 0.3
    batch = 4

    params = init_assym_spliced_ae(182822, rna_dim, atac_dim, rp_dim, hidden_dim)
    total_dim = rna_dim + sum(atac_dim) + rp_dim
    x = jax.random.normal(jax.random.PRNGKey(0), (batch, total_dim), jnp.float32)

    fwd = jax.jit(functools.partial(
        assym_spliced_ae_fwd,
        rna_dim=rna_dim, atac_dim=atac_dim, rp_dim=rp_dim,
        hidden_dim=hidden_dim, atac_ratio=atac_ratio))

    out = fwd(params, x)
    jax.block_until_ready(out)

    # shape sanity checks mirroring the torch module's outputs
    retval11, retval12, retval21, retval22 = out
    assert retval11[0].shape == (batch, rna_dim)
    assert retval11[1].shape == (batch, rna_dim)
    assert retval11[2].shape == (batch, rna_dim)
    assert retval11[3].shape == (batch, hidden_dim)
    assert retval12[0].shape == (batch, sum(atac_dim))
    assert retval12[1].shape == (batch, hidden_dim)
    assert retval21[0].shape == (batch, rna_dim)
    assert retval21[3].shape == (batch, hidden_dim)
    assert retval22[0].shape == (batch, sum(atac_dim))
    assert retval22[1].shape == (batch, hidden_dim)

    print("KERNEL_OK")
</pallas_src>

<mosaic_0001>
module attributes {stable_mosaic.version = 11 : i64} {
  func.func @_fused_fwd_kernel(%arg0: memref<4x112xf32, #tpu.memory_space<vmem>>, %arg1: memref<32x64xf32, #tpu.memory_space<vmem>>, %arg2: memref<1x64xf32, #tpu.memory_space<vmem>>, %arg3: memref<1x64xf32, #tpu.memory_space<vmem>>, %arg4: memref<1x64xf32, #tpu.memory_space<vmem>>, %arg5: memref<64x16xf32, #tpu.memory_space<vmem>>, %arg6: memref<1x16xf32, #tpu.memory_space<vmem>>, %arg7: memref<1x16xf32, #tpu.memory_space<vmem>>, %arg8: memref<1x16xf32, #tpu.memory_space<vmem>>, %arg9: memref<24x64xf32, #tpu.memory_space<vmem>>, %arg10: memref<1x64xf32, #tpu.memory_space<vmem>>, %arg11: memref<1x64xf32, #tpu.memory_space<vmem>>, %arg12: memref<1x64xf32, #tpu.memory_space<vmem>>, %arg13: memref<64x16xf32, #tpu.memory_space<vmem>>, %arg14: memref<1x16xf32, #tpu.memory_space<vmem>>, %arg15: memref<1x16xf32, #tpu.memory_space<vmem>>, %arg16: memref<1x16xf32, #tpu.memory_space<vmem>>, %arg17: memref<56x96xf32, #tpu.memory_space<vmem>>, %arg18: memref<1x96xf32, #tpu.memory_space<vmem>>, %arg19: memref<1x96xf32, #tpu.memory_space<vmem>>, %arg20: memref<1x96xf32, #tpu.memory_space<vmem>>, %arg21: memref<1x96xf32, #tpu.memory_space<vmem>>, %arg22: memref<96x48xf32, #tpu.memory_space<vmem>>, %arg23: memref<1x48xf32, #tpu.memory_space<vmem>>, %arg24: memref<1x48xf32, #tpu.memory_space<vmem>>, %arg25: memref<1x48xf32, #tpu.memory_space<vmem>>, %arg26: memref<1x48xf32, #tpu.memory_space<vmem>>, %arg27: memref<48x16xf32, #tpu.memory_space<vmem>>, %arg28: memref<1x16xf32, #tpu.memory_space<vmem>>, %arg29: memref<1x16xf32, #tpu.memory_space<vmem>>, %arg30: memref<1x16xf32, #tpu.memory_space<vmem>>, %arg31: memref<16x64xf32, #tpu.memory_space<vmem>>, %arg32: memref<1x64xf32, #tpu.memory_space<vmem>>, %arg33: memref<1x64xf32, #tpu.memory_space<vmem>>, %arg34: memref<1x64xf32, #tpu.memory_space<vmem>>, %arg35: memref<64x96xf32, #tpu.memory_space<vmem>>, %arg36: memref<1x96xf32, #tpu.memory_space<vmem>>, %arg37: memref<16x48xf32, #tpu.memory_space<vmem>>, %arg38: memref<1x48xf32, #tpu.memory_space<vmem>>, %arg39: memref<1x48xf32, #tpu.memory_space<vmem>>, %arg40: memref<1x48xf32, #tpu.memory_space<vmem>>, %arg41: memref<48x96xf32, #tpu.memory_space<vmem>>, %arg42: memref<1x96xf32, #tpu.memory_space<vmem>>, %arg43: memref<1x96xf32, #tpu.memory_space<vmem>>, %arg44: memref<1x96xf32, #tpu.memory_space<vmem>>, %arg45: memref<1x96xf32, #tpu.memory_space<vmem>>, %arg46: memref<96x56xf32, #tpu.memory_space<vmem>>, %arg47: memref<1x56xf32, #tpu.memory_space<vmem>>, %arg48: memref<7xf32, #tpu.memory_space<smem>>, %arg49: memref<4x336xf32, #tpu.memory_space<vmem>>) attributes {dimension_semantics = [], scalar_prefetch = 0 : i64, scratch_operands = 0 : i64, tpu.core_type = #tpu.core_type<tc>} {
    %c0 = arith.constant 0 : index
    %c0_0 = arith.constant 0 : index
    %0 = vector.load %arg0[%c0, %c0_0] : memref<4x112xf32, #tpu.memory_space<vmem>>, vector<4x112xf32>
    %1 = vector.extract_strided_slice %0 {offsets = [0, 0], sizes = [4, 32], strides = [1, 1]} : vector<4x112xf32> to vector<4x32xf32>
    %2 = vector.extract_strided_slice %0 {offsets = [0, 32], sizes = [4, 56], strides = [1, 1]} : vector<4x112xf32> to vector<4x56xf32>
    %3 = vector.extract_strided_slice %0 {offsets = [0, 88], sizes = [4, 24], strides = [1, 1]} : vector<4x112xf32> to vector<4x24xf32>
    %c0_1 = arith.constant 0 : index
    %c0_2 = arith.constant 0 : index
    %4 = vector.load %arg1[%c0_1, %c0_2] : memref<32x64xf32, #tpu.memory_space<vmem>>, vector<32x64xf32>
    %cst = arith.constant dense<0.000000e+00> : vector<4x64xf32>
    %5 = tpu.matmul %1, %4, %cst {dimension_numbers = #tpu.dot_dimension_numbers<[1], [0], [0], [1], [0, 0, 1, 1], [], []>} : vector<4x32xf32>, vector<32x64xf32>, vector<4x64xf32> -> vector<4x64xf32>
    %c0_3 = arith.constant 0 : index
    %c0_4 = arith.constant 0 : index
    %6 = vector.load %arg2[%c0_3, %c0_4] : memref<1x64xf32, #tpu.memory_space<vmem>>, vector<1x64xf32>
    %7 = vector.broadcast %6 : vector<1x64xf32> to vector<4x64xf32>
    %8 = arith.addf %5, %7 : vector<4x64xf32>
    %c0_5 = arith.constant 0 : index
    %c0_6 = arith.constant 0 : index
    %9 = vector.load %arg3[%c0_5, %c0_6] : memref<1x64xf32, #tpu.memory_space<vmem>>, vector<1x64xf32>
    %c0_7 = arith.constant 0 : index
    %c0_8 = arith.constant 0 : index
    %10 = vector.load %arg4[%c0_7, %c0_8] : memref<1x64xf32, #tpu.memory_space<vmem>>, vector<1x64xf32>
    %c0_9 = arith.constant 0 : index
    %11 = memref.load %arg48[%c0_9] : memref<7xf32, #tpu.memory_space<smem>>
    %cst_10 = arith.constant dense<0.000000e+00> : vector<64xf32>
    %12 = vector.multi_reduction <add>, %8, %cst_10 [0] : vector<4x64xf32> to vector<64xf32>
    %13 = vector.shape_cast %12 : vector<64xf32> to vector<1x64xf32>
    %cst_11 = arith.constant 4.000000e+00 : f32
    %14 = vector.broadcast %cst_11 : f32 to vector<1x64xf32>
    %15 = arith.divf %13, %14 : vector<1x64xf32>
    %16 = vector.broadcast %15 : vector<1x64xf32> to vector<4x64xf32>
    %17 = arith.subf %8, %16 : vector<4x64xf32>
    %18 = arith.mulf %17, %17 : vector<4x64xf32>
    %cst_12 = arith.constant dense<0.000000e+00> : vector<64xf32>
    %19 = vector.multi_reduction <add>, %18, %cst_12 [0] : vector<4x64xf32> to vector<64xf32>
    %20 = vector.shape_cast %19 : vector<64xf32> to vector<1x64xf32>
    %cst_13 = arith.constant 4.000000e+00 : f32
    %21 = vector.broadcast %cst_13 : f32 to vector<1x64xf32>
    %22 = arith.divf %20, %21 : vector<1x64xf32>
    %23 = vector.broadcast %15 : vector<1x64xf32> to vector<4x64xf32>
    %24 = arith.subf %8, %23 : vector<4x64xf32>
    %cst_14 = arith.constant 9.99999974E-6 : f32
    %25 = vector.broadcast %cst_14 : f32 to vector<1x64xf32>
    %26 = arith.addf %22, %25 : vector<1x64xf32>
    %27 = math.rsqrt %26 : vector<1x64xf32>
    %28 = vector.broadcast %27 : vector<1x64xf32> to vector<4x64xf32>
    %29 = arith.mulf %24, %28 : vector<4x64xf32>
    %30 = vector.broadcast %9 : vector<1x64xf32> to vector<4x64xf32>
    %31 = arith.mulf %30, %29 : vector<4x64xf32>
    %32 = vector.broadcast %10 : vector<1x64xf32> to vector<4x64xf32>
    %33 = arith.addf %31, %32 : vector<4x64xf32>
    %cst_15 = arith.constant 0.000000e+00 : f32
    %34 = vector.broadcast %cst_15 : f32 to vector<4x64xf32>
    %35 = arith.cmpf oge, %33, %34 : vector<4x64xf32>
    %36 = vector.broadcast %11 : f32 to vector<4x64xf32>
    %37 = arith.mulf %36, %33 : vector<4x64xf32>
    %38 = arith.select %35, %33, %37 : vector<4x64xi1>, vector<4x64xf32>
    %c0_16 = arith.constant 0 : index
    %c0_17 = arith.constant 0 : index
    %39 = vector.load %arg5[%c0_16, %c0_17] : memref<64x16xf32, #tpu.memory_space<vmem>>, vector<64x16xf32>
    %cst_18 = arith.constant dense<0.000000e+00> : vector<4x16xf32>
    %40 = tpu.matmul %38, %39, %cst_18 {dimension_numbers = #tpu.dot_dimension_numbers<[1], [0], [0], [1], [0, 0, 1, 1], [], []>} : vector<4x64xf32>, vector<64x16xf32>, vector<4x16xf32> -> vector<4x16xf32>
    %c0_19 = arith.constant 0 : index
    %c0_20 = arith.constant 0 : index
    %41 = vector.load %arg6[%c0_19, %c0_20] : memref<1x16xf32, #tpu.memory_space<vmem>>, vector<1x16xf32>
    %42 = vector.broadcast %41 : vector<1x16xf32> to vector<4x16xf32>
    %43 = arith.addf %40, %42 : vector<4x16xf32>
    %c0_21 = arith.constant 0 : index
    %c0_22 = arith.constant 0 : index
    %44 = vector.load %arg7[%c0_21, %c0_22] : memref<1x16xf32, #tpu.memory_space<vmem>>, vector<1x16xf32>
    %c0_23 = arith.constant 0 : index
    %c0_24 = arith.constant 0 : index
    %45 = vector.load %arg8[%c0_23, %c0_24] : memref<1x16xf32, #tpu.memory_space<vmem>>, vector<1x16xf32>
    %c1 = arith.constant 1 : index
    %46 = memref.load %arg48[%c1] : memref<7xf32, #tpu.memory_space<smem>>
    %cst_25 = arith.constant dense<0.000000e+00> : vector<16xf32>
    %47 = vector.multi_reduction <add>, %43, %cst_25 [0] : vector<4x16xf32> to vector<16xf32>
    %48 = vector.shape_cast %47 : vector<16xf32> to vector<1x16xf32>
    %cst_26 = arith.constant 4.000000e+00 : f32
    %49 = vector.broadcast %cst_26 : f32 to vector<1x16xf32>
    %50 = arith.divf %48, %49 : vector<1x16xf32>
    %51 = vector.broadcast %50 : vector<1x16xf32> to vector<4x16xf32>
    %52 = arith.subf %43, %51 : vector<4x16xf32>
    %53 = arith.mulf %52, %52 : vector<4x16xf32>
    %cst_27 = arith.constant dense<0.000000e+00> : vector<16xf32>
    %54 = vector.multi_reduction <add>, %53, %cst_27 [0] : vector<4x16xf32> to vector<16xf32>
    %55 = vector.shape_cast %54 : vector<16xf32> to vector<1x16xf32>
    %cst_28 = arith.constant 4.000000e+00 : f32
    %56 = vector.broadcast %cst_28 : f32 to vector<1x16xf32>
    %57 = arith.divf %55, %56 : vector<1x16xf32>
    %58 = vector.broadcast %50 : vector<1x16xf32> to vector<4x16xf32>
    %59 = arith.subf %43, %58 : vector<4x16xf32>
    %cst_29 = arith.constant 9.99999974E-6 : f32
    %60 = vector.broadcast %cst_29 : f32 to vector<1x16xf32>
    %61 = arith.addf %57, %60 : vector<1x16xf32>
    %62 = math.rsqrt %61 : vector<1x16xf32>
    %63 = vector.broadcast %62 : vector<1x16xf32> to vector<4x16xf32>
    %64 = arith.mulf %59, %63 : vector<4x16xf32>
    %65 = vector.broadcast %44 : vector<1x16xf32> to vector<4x16xf32>
    %66 = arith.mulf %65, %64 : vector<4x16xf32>
    %67 = vector.broadcast %45 : vector<1x16xf32> to vector<4x16xf32>
    %68 = arith.addf %66, %67 : vector<4x16xf32>
    %cst_30 = arith.constant 0.000000e+00 : f32
    %69 = vector.broadcast %cst_30 : f32 to vector<4x16xf32>
    %70 = arith.cmpf oge, %68, %69 : vector<4x16xf32>
    %71 = vector.broadcast %46 : f32 to vector<4x16xf32>
    %72 = arith.mulf %71, %68 : vector<4x16xf32>
    %73 = arith.select %70, %68, %72 : vector<4x16xi1>, vector<4x16xf32>
    %c0_31 = arith.constant 0 : index
    %c0_32 = arith.constant 0 : index
    %74 = vector.load %arg9[%c0_31, %c0_32] : memref<24x64xf32, #tpu.memory_space<vmem>>, vector<24x64xf32>
    %cst_33 = arith.constant dense<0.000000e+00> : vector<4x64xf32>
    %75 = tpu.matmul %3, %74, %cst_33 {dimension_numbers = #tpu.dot_dimension_numbers<[1], [0], [0], [1], [0, 0, 1, 1], [], []>} : vector<4x24xf32>, vector<24x64xf32>, vector<4x64xf32> -> vector<4x64xf32>
    %c0_34 = arith.constant 0 : index
    %c0_35 = arith.constant 0 : index
    %76 = vector.load %arg10[%c0_34, %c0_35] : memref<1x64xf32, #tpu.memory_space<vmem>>, vector<1x64xf32>
    %77 = vector.broadcast %76 : vector<1x64xf32> to vector<4x64xf32>
    %78 = arith.addf %75, %77 : vector<4x64xf32>
    %c0_36 = arith.constant 0 : index
    %c0_37 = arith.constant 0 : index
    %79 = vector.load %arg11[%c0_36, %c0_37] : memref<1x64xf32, #tpu.memory_space<vmem>>, vector<1x64xf32>
    %c0_38 = arith.constant 0 : index
    %c0_39 = arith.constant 0 : index
    %80 = vector.load %arg12[%c0_38, %c0_39] : memref<1x64xf32, #tpu.memory_space<vmem>>, vector<1x64xf32>
    %c2 = arith.constant 2 : index
    %81 = memref.load %arg48[%c2] : memref<7xf32, #tpu.memory_space<smem>>
    %cst_40 = arith.constant dense<0.000000e+00> : vector<64xf32>
    %82 = vector.multi_reduction <add>, %78, %cst_40 [0] : vector<4x64xf32> to vector<64xf32>
    %83 = vector.shape_cast %82 : vector<64xf32> to vector<1x64xf32>
    %cst_41 = arith.constant 4.000000e+00 : f32
    %84 = vector.broadcast %cst_41 : f32 to vector<1x64xf32>
    %85 = arith.divf %83, %84 : vector<1x64xf32>
    %86 = vector.broadcast %85 : vector<1x64xf32> to vector<4x64xf32>
    %87 = arith.subf %78, %86 : vector<4x64xf32>
    %88 = arith.mulf %87, %87 : vector<4x64xf32>
    %cst_42 = arith.constant dense<0.000000e+00> : vector<64xf32>
    %89 = vector.multi_reduction <add>, %88, %cst_42 [0] : vector<4x64xf32> to vector<64xf32>
    %90 = vector.shape_cast %89 : vector<64xf32> to vector<1x64xf32>
    %cst_43 = arith.constant 4.000000e+00 : f32
    %91 = vector.broadcast %cst_43 : f32 to vector<1x64xf32>
    %92 = arith.divf %90, %91 : vector<1x64xf32>
    %93 = vector.broadcast %85 : vector<1x64xf32> to vector<4x64xf32>
    %94 = arith.subf %78, %93 : vector<4x64xf32>
    %cst_44 = arith.constant 9.99999974E-6 : f32
    %95 = vector.broadcast %cst_44 : f32 to vector<1x64xf32>
    %96 = arith.addf %92, %95 : vector<1x64xf32>
    %97 = math.rsqrt %96 : vector<1x64xf32>
    %98 = vector.broadcast %97 : vector<1x64xf32> to vector<4x64xf32>
    %99 = arith.mulf %94, %98 : vector<4x64xf32>
    %100 = vector.broadcast %79 : vector<1x64xf32> to vector<4x64xf32>
    %101 = arith.mulf %100, %99 : vector<4x64xf32>
    %102 = vector.broadcast %80 : vector<1x64xf32> to vector<4x64xf32>
    %103 = arith.addf %101, %102 : vector<4x64xf32>
    %cst_45 = arith.constant 0.000000e+00 : f32
    %104 = vector.broadcast %cst_45 : f32 to vector<4x64xf32>
    %105 = arith.cmpf oge, %103, %104 : vector<4x64xf32>
    %106 = vector.broadcast %81 : f32 to vector<4x64xf32>
    %107 = arith.mulf %106, %103 : vector<4x64xf32>
    %108 = arith.select %105, %103, %107 : vector<4x64xi1>, vector<4x64xf32>
    %c0_46 = arith.constant 0 : index
    %c0_47 = arith.constant 0 : index
    %109 = vector.load %arg13[%c0_46, %c0_47] : memref<64x16xf32, #tpu.memory_space<vmem>>, vector<64x16xf32>
    %cst_48 = arith.constant dense<0.000000e+00> : vector<4x16xf32>
    %110 = tpu.matmul %108, %109, %cst_48 {dimension_numbers = #tpu.dot_dimension_numbers<[1], [0], [0], [1], [0, 0, 1, 1], [], []>} : vector<4x64xf32>, vector<64x16xf32>, vector<4x16xf32> -> vector<4x16xf32>
    %c0_49 = arith.constant 0 : index
    %c0_50 = arith.constant 0 : index
    %111 = vector.load %arg14[%c0_49, %c0_50] : memref<1x16xf32, #tpu.memory_space<vmem>>, vector<1x16xf32>
    %112 = vector.broadcast %111 : vector<1x16xf32> to vector<4x16xf32>
    %113 = arith.addf %110, %112 : vector<4x16xf32>
    %c0_51 = arith.constant 0 : index
    %c0_52 = arith.constant 0 : index
    %114 = vector.load %arg15[%c0_51, %c0_52] : memref<1x16xf32, #tpu.memory_space<vmem>>, vector<1x16xf32>
    %c0_53 = arith.constant 0 : index
    %c0_54 = arith.constant 0 : index
    %115 = vector.load %arg16[%c0_53, %c0_54] : memref<1x16xf32, #tpu.memory_space<vmem>>, vector<1x16xf32>
    %c3 = arith.constant 3 : index
    %116 = memref.load %arg48[%c3] : memref<7xf32, #tpu.memory_space<smem>>
    %cst_55 = arith.constant dense<0.000000e+00> : vector<16xf32>
    %117 = vector.multi_reduction <add>, %113, %cst_55 [0] : vector<4x16xf32> to vector<16xf32>
    %118 = vector.shape_cast %117 : vector<16xf32> to vector<1x16xf32>
    %cst_56 = arith.constant 4.000000e+00 : f32
    %119 = vector.broadcast %cst_56 : f32 to vector<1x16xf32>
    %120 = arith.divf %118, %119 : vector<1x16xf32>
    %121 = vector.broadcast %120 : vector<1x16xf32> to vector<4x16xf32>
    %122 = arith.subf %113, %121 : vector<4x16xf32>
    %123 = arith.mulf %122, %122 : vector<4x16xf32>
    %cst_57 = arith.constant dense<0.000000e+00> : vector<16xf32>
    %124 = vector.multi_reduction <add>, %123, %cst_57 [0] : vector<4x16xf32> to vector<16xf32>
    %125 = vector.shape_cast %124 : vector<16xf32> to vector<1x16xf32>
    %cst_58 = arith.constant 4.000000e+00 : f32
    %126 = vector.broadcast %cst_58 : f32 to vector<1x16xf32>
    %127 = arith.divf %125, %126 : vector<1x16xf32>
    %128 = vector.broadcast %120 : vector<1x16xf32> to vector<4x16xf32>
    %129 = arith.subf %113, %128 : vector<4x16xf32>
    %cst_59 = arith.constant 9.99999974E-6 : f32
    %130 = vector.broadcast %cst_59 : f32 to vector<1x16xf32>
    %131 = arith.addf %127, %130 : vector<1x16xf32>
    %132 = math.rsqrt %131 : vector<1x16xf32>
    %133 = vector.broadcast %132 : vector<1x16xf32> to vector<4x16xf32>
    %134 = arith.mulf %129, %133 : vector<4x16xf32>
    %135 = vector.broadcast %114 : vector<1x16xf32> to vector<4x16xf32>
    %136 = arith.mulf %135, %134 : vector<4x16xf32>
    %137 = vector.broadcast %115 : vector<1x16xf32> to vector<4x16xf32>
    %138 = arith.addf %136, %137 : vector<4x16xf32>
    %cst_60 = arith.constant 0.000000e+00 : f32
    %139 = vector.broadcast %cst_60 : f32 to vector<4x16xf32>
    %140 = arith.cmpf oge, %138, %139 : vector<4x16xf32>
    %141 = vector.broadcast %116 : f32 to vector<4x16xf32>
    %142 = arith.mulf %141, %138 : vector<4x16xf32>
    %143 = arith.select %140, %138, %142 : vector<4x16xi1>, vector<4x16xf32>
    %c0_61 = arith.constant 0 : index
    %c0_62 = arith.constant 0 : index
    %144 = vector.load %arg17[%c0_61, %c0_62] : memref<56x96xf32, #tpu.memory_space<vmem>>, vector<56x96xf32>
    %cst_63 = arith.constant dense<0.000000e+00> : vector<4x96xf32>
    %145 = tpu.matmul %2, %144, %cst_63 {dimension_numbers = #tpu.dot_dimension_numbers<[1], [0], [0], [1], [0, 0, 1, 1], [], []>} : vector<4x56xf32>, vector<56x96xf32>, vector<4x96xf32> -> vector<4x96xf32>
    %c0_64 = arith.constant 0 : index
    %c0_65 = arith.constant 0 : index
    %146 = vector.load %arg18[%c0_64, %c0_65] : memref<1x96xf32, #tpu.memory_space<vmem>>, vector<1x96xf32>
    %147 = vector.broadcast %146 : vector<1x96xf32> to vector<4x96xf32>
    %148 = arith.addf %145, %147 : vector<4x96xf32>
    %c0_66 = arith.constant 0 : index
    %c0_67 = arith.constant 0 : index
    %149 = vector.load %arg19[%c0_66, %c0_67] : memref<1x96xf32, #tpu.memory_space<vmem>>, vector<1x96xf32>
    %c0_68 = arith.constant 0 : index
    %c0_69 = arith.constant 0 : index
    %150 = vector.load %arg20[%c0_68, %c0_69] : memref<1x96xf32, #tpu.memory_space<vmem>>, vector<1x96xf32>
    %c0_70 = arith.constant 0 : index
    %c0_71 = arith.constant 0 : index
    %151 = vector.load %arg21[%c0_70, %c0_71] : memref<1x96xf32, #tpu.memory_space<vmem>>, vector<1x96xf32>
    %cst_72 = arith.constant dense<0.000000e+00> : vector<96xf32>
    %152 = vector.multi_reduction <add>, %148, %cst_72 [0] : vector<4x96xf32> to vector<96xf32>
    %153 = vector.shape_cast %152 : vector<96xf32> to vector<1x96xf32>
    %cst_73 = arith.constant 4.000000e+00 : f32
    %154 = vector.broadcast %cst_73 : f32 to vector<1x96xf32>
    %155 = arith.divf %153, %154 : vector<1x96xf32>
    %156 = vector.broadcast %155 : vector<1x96xf32> to vector<4x96xf32>
    %157 = arith.subf %148, %156 : vector<4x96xf32>
    %158 = arith.mulf %157, %157 : vector<4x96xf32>
    %cst_74 = arith.constant dense<0.000000e+00> : vector<96xf32>
    %159 = vector.multi_reduction <add>, %158, %cst_74 [0] : vector<4x96xf32> to vector<96xf32>
    %160 = vector.shape_cast %159 : vector<96xf32> to vector<1x96xf32>
    %cst_75 = arith.constant 4.000000e+00 : f32
    %161 = vector.broadcast %cst_75 : f32 to vector<1x96xf32>
    %162 = arith.divf %160, %161 : vector<1x96xf32>
    %163 = vector.broadcast %155 : vector<1x96xf32> to vector<4x96xf32>
    %164 = arith.subf %148, %163 : vector<4x96xf32>
    %cst_76 = arith.constant 9.99999974E-6 : f32
    %165 = vector.broadcast %cst_76 : f32 to vector<1x96xf32>
    %166 = arith.addf %162, %165 : vector<1x96xf32>
    %167 = math.rsqrt %166 : vector<1x96xf32>
    %168 = vector.broadcast %167 : vector<1x96xf32> to vector<4x96xf32>
    %169 = arith.mulf %164, %168 : vector<4x96xf32>
    %170 = vector.broadcast %149 : vector<1x96xf32> to vector<4x96xf32>
    %171 = arith.mulf %170, %169 : vector<4x96xf32>
    %172 = vector.broadcast %150 : vector<1x96xf32> to vector<4x96xf32>
    %173 = arith.addf %171, %172 : vector<4x96xf32>
    %cst_77 = arith.constant 0.000000e+00 : f32
    %174 = vector.broadcast %cst_77 : f32 to vector<4x96xf32>
    %175 = arith.cmpf oge, %173, %174 : vector<4x96xf32>
    %176 = vector.broadcast %151 : vector<1x96xf32> to vector<4x96xf32>
    %177 = arith.mulf %176, %173 : vector<4x96xf32>
    %178 = arith.select %175, %173, %177 : vector<4x96xi1>, vector<4x96xf32>
    %c0_78 = arith.constant 0 : index
    %c0_79 = arith.constant 0 : index
    %179 = vector.load %arg22[%c0_78, %c0_79] : memref<96x48xf32, #tpu.memory_space<vmem>>, vector<96x48xf32>
    %cst_80 = arith.constant dense<0.000000e+00> : vector<4x48xf32>
    %180 = tpu.matmul %178, %179, %cst_80 {dimension_numbers = #tpu.dot_dimension_numbers<[1], [0], [0], [1], [0, 0, 1, 1], [], []>} : vector<4x96xf32>, vector<96x48xf32>, vector<4x48xf32> -> vector<4x48xf32>
    %c0_81 = arith.constant 0 : index
    %c0_82 = arith.constant 0 : index
    %181 = vector.load %arg23[%c0_81, %c0_82] : memref<1x48xf32, #tpu.memory_space<vmem>>, vector<1x48xf32>
    %182 = vector.broadcast %181 : vector<1x48xf32> to vector<4x48xf32>
    %183 = arith.addf %180, %182 : vector<4x48xf32>
    %c0_83 = arith.constant 0 : index
    %c0_84 = arith.constant 0 : index
    %184 = vector.load %arg24[%c0_83, %c0_84] : memref<1x48xf32, #tpu.memory_space<vmem>>, vector<1x48xf32>
    %c0_85 = arith.constant 0 : index
    %c0_86 = arith.constant 0 : index
    %185 = vector.load %arg25[%c0_85, %c0_86] : memref<1x48xf32, #tpu.memory_space<vmem>>, vector<1x48xf32>
    %c0_87 = arith.constant 0 : index
    %c0_88 = arith.constant 0 : index
    %186 = vector.load %arg26[%c0_87, %c0_88] : memref<1x48xf32, #tpu.memory_space<vmem>>, vector<1x48xf32>
    %cst_89 = arith.constant dense<0.000000e+00> : vector<48xf32>
    %187 = vector.multi_reduction <add>, %183, %cst_89 [0] : vector<4x48xf32> to vector<48xf32>
    %188 = vector.shape_cast %187 : vector<48xf32> to vector<1x48xf32>
    %cst_90 = arith.constant 4.000000e+00 : f32
    %189 = vector.broadcast %cst_90 : f32 to vector<1x48xf32>
    %190 = arith.divf %188, %189 : vector<1x48xf32>
    %191 = vector.broadcast %190 : vector<1x48xf32> to vector<4x48xf32>
    %192 = arith.subf %183, %191 : vector<4x48xf32>
    %193 = arith.mulf %192, %192 : vector<4x48xf32>
    %cst_91 = arith.constant dense<0.000000e+00> : vector<48xf32>
    %194 = vector.multi_reduction <add>, %193, %cst_91 [0] : vector<4x48xf32> to vector<48xf32>
    %195 = vector.shape_cast %194 : vector<48xf32> to vector<1x48xf32>
    %cst_92 = arith.constant 4.000000e+00 : f32
    %196 = vector.broadcast %cst_92 : f32 to vector<1x48xf32>
    %197 = arith.divf %195, %196 : vector<1x48xf32>
    %198 = vector.broadcast %190 : vector<1x48xf32> to vector<4x48xf32>
    %199 = arith.subf %183, %198 : vector<4x48xf32>
    %cst_93 = arith.constant 9.99999974E-6 : f32
    %200 = vector.broadcast %cst_93 : f32 to vector<1x48xf32>
    %201 = arith.addf %197, %200 : vector<1x48xf32>
    %202 = math.rsqrt %201 : vector<1x48xf32>
    %203 = vector.broadcast %202 : vector<1x48xf32> to vector<4x48xf32>
    %204 = arith.mulf %199, %203 : vector<4x48xf32>
    %205 = vector.broadcast %184 : vector<1x48xf32> to vector<4x48xf32>
    %206 = arith.mulf %205, %204 : vector<4x48xf32>
    %207 = vector.broadcast %185 : vector<1x48xf32> to vector<4x48xf32>
    %208 = arith.addf %206, %207 : vector<4x48xf32>
    %cst_94 = arith.constant 0.000000e+00 : f32
    %209 = vector.broadcast %cst_94 : f32 to vector<4x48xf32>
    %210 = arith.cmpf oge, %208, %209 : vector<4x48xf32>
    %211 = vector.broadcast %186 : vector<1x48xf32> to vector<4x48xf32>
    %212 = arith.mulf %211, %208 : vector<4x48xf32>
    %213 = arith.select %210, %208, %212 : vector<4x48xi1>, vector<4x48xf32>
    %c0_95 = arith.constant 0 : index
    %c0_96 = arith.constant 0 : index
    %214 = vector.load %arg27[%c0_95, %c0_96] : memref<48x16xf32, #tpu.memory_space<vmem>>, vector<48x16xf32>
    %cst_97 = arith.constant dense<0.000000e+00> : vector<4x16xf32>
    %215 = tpu.matmul %213, %214, %cst_97 {dimension_numbers = #tpu.dot_dimension_numbers<[1], [0], [0], [1], [0, 0, 1, 1], [], []>} : vector<4x48xf32>, vector<48x16xf32>, vector<4x16xf32> -> vector<4x16xf32>
    %c0_98 = arith.constant 0 : index
    %c0_99 = arith.constant 0 : index
    %216 = vector.load %arg28[%c0_98, %c0_99] : memref<1x16xf32, #tpu.memory_space<vmem>>, vector<1x16xf32>
    %217 = vector.broadcast %216 : vector<1x16xf32> to vector<4x16xf32>
    %218 = arith.addf %215, %217 : vector<4x16xf32>
    %c0_100 = arith.constant 0 : index
    %c0_101 = arith.constant 0 : index
    %219 = vector.load %arg29[%c0_100, %c0_101] : memref<1x16xf32, #tpu.memory_space<vmem>>, vector<1x16xf32>
    %c0_102 = arith.constant 0 : index
    %c0_103 = arith.constant 0 : index
    %220 = vector.load %arg30[%c0_102, %c0_103] : memref<1x16xf32, #tpu.memory_space<vmem>>, vector<1x16xf32>
    %c4 = arith.constant 4 : index
    %221 = memref.load %arg48[%c4] : memref<7xf32, #tpu.memory_space<smem>>
    %cst_104 = arith.constant dense<0.000000e+00> : vector<16xf32>
    %222 = vector.multi_reduction <add>, %218, %cst_104 [0] : vector<4x16xf32> to vector<16xf32>
    %223 = vector.shape_cast %222 : vector<16xf32> to vector<1x16xf32>
    %cst_105 = arith.constant 4.000000e+00 : f32
    %224 = vector.broadcast %cst_105 : f32 to vector<1x16xf32>
    %225 = arith.divf %223, %224 : vector<1x16xf32>
    %226 = vector.broadcast %225 : vector<1x16xf32> to vector<4x16xf32>
    %227 = arith.subf %218, %226 : vector<4x16xf32>
    %228 = arith.mulf %227, %227 : vector<4x16xf32>
    %cst_106 = arith.constant dense<0.000000e+00> : vector<16xf32>
    %229 = vector.multi_reduction <add>, %228, %cst_106 [0] : vector<4x16xf32> to vector<16xf32>
    %230 = vector.shape_cast %229 : vector<16xf32> to vector<1x16xf32>
    %cst_107 = arith.constant 4.000000e+00 : f32
    %231 = vector.broadcast %cst_107 : f32 to vector<1x16xf32>
    %232 = arith.divf %230, %231 : vector<1x16xf32>
    %233 = vector.broadcast %225 : vector<1x16xf32> to vector<4x16xf32>
    %234 = arith.subf %218, %233 : vector<4x16xf32>
    %cst_108 = arith.constant 9.99999974E-6 : f32
    %235 = vector.broadcast %cst_108 : f32 to vector<1x16xf32>
    %236 = arith.addf %232, %235 : vector<1x16xf32>
    %237 = math.rsqrt %236 : vector<1x16xf32>
    %238 = vector.broadcast %237 : vector<1x16xf32> to vector<4x16xf32>
    %239 = arith.mulf %234, %238 : vector<4x16xf32>
    %240 = vector.broadcast %219 : vector<1x16xf32> to vector<4x16xf32>
    %241 = arith.mulf %240, %239 : vector<4x16xf32>
    %242 = vector.broadcast %220 : vector<1x16xf32> to vector<4x16xf32>
    %243 = arith.addf %241, %242 : vector<4x16xf32>
    %cst_109 = arith.constant 0.000000e+00 : f32
    %244 = vector.broadcast %cst_109 : f32 to vector<4x16xf32>
    %245 = arith.cmpf oge, %243, %244 : vector<4x16xf32>
    %246 = vector.broadcast %221 : f32 to vector<4x16xf32>
    %247 = arith.mulf %246, %243 : vector<4x16xf32>
    %248 = arith.select %245, %243, %247 : vector<4x16xi1>, vector<4x16xf32>
    %cst_110 = arith.constant 3.000000e-01 : f32
    %249 = vector.broadcast %cst_110 : f32 to vector<4x16xf32>
    %250 = arith.mulf %249, %143 : vector<4x16xf32>
    %251 = arith.addf %248, %250 : vector<4x16xf32>
    %252 = tpu.concatenate %73, %251 in 0 : vector<4x16xf32>, vector<4x16xf32> -> vector<8x16xf32>
    %c0_111 = arith.constant 0 : index
    %c0_112 = arith.constant 0 : index
    %253 = vector.load %arg31[%c0_111, %c0_112] : memref<16x64xf32, #tpu.memory_space<vmem>>, vector<16x64xf32>
    %cst_113 = arith.constant dense<0.000000e+00> : vector<8x64xf32>
    %254 = tpu.matmul %252, %253, %cst_113 {dimension_numbers = #tpu.dot_dimension_numbers<[1], [0], [0], [1], [0, 0, 1, 1], [], []>} : vector<8x16xf32>, vector<16x64xf32>, vector<8x64xf32> -> vector<8x64xf32>
    %c0_114 = arith.constant 0 : index
    %c0_115 = arith.constant 0 : index
    %255 = vector.load %arg32[%c0_114, %c0_115] : memref<1x64xf32, #tpu.memory_space<vmem>>, vector<1x64xf32>
    %256 = vector.broadcast %255 : vector<1x64xf32> to vector<8x64xf32>
    %257 = arith.addf %254, %256 : vector<8x64xf32>
    %c0_116 = arith.constant 0 : index
    %c0_117 = arith.constant 0 : index
    %258 = vector.load %arg33[%c0_116, %c0_117] : memref<1x64xf32, #tpu.memory_space<vmem>>, vector<1x64xf32>
    %c0_118 = arith.constant 0 : index
    %c0_119 = arith.constant 0 : index
    %259 = vector.load %arg34[%c0_118, %c0_119] : memref<1x64xf32, #tpu.memory_space<vmem>>, vector<1x64xf32>
    %c5 = arith.constant 5 : index
    %260 = memref.load %arg48[%c5] : memref<7xf32, #tpu.memory_space<smem>>
    %261 = vector.extract_strided_slice %257 {offsets = [0, 0], sizes = [4, 64], strides = [1, 1]} : vector<8x64xf32> to vector<4x64xf32>
    %cst_120 = arith.constant dense<0.000000e+00> : vector<64xf32>
    %262 = vector.multi_reduction <add>, %261, %cst_120 [0] : vector<4x64xf32> to vector<64xf32>
    %263 = vector.shape_cast %262 : vector<64xf32> to vector<1x64xf32>
    %cst_121 = arith.constant 4.000000e+00 : f32
    %264 = vector.broadcast %cst_121 : f32 to vector<1x64xf32>
    %265 = arith.divf %263, %264 : vector<1x64xf32>
    %266 = vector.broadcast %265 : vector<1x64xf32> to vector<4x64xf32>
    %267 = arith.subf %261, %266 : vector<4x64xf32>
    %268 = arith.mulf %267, %267 : vector<4x64xf32>
    %cst_122 = arith.constant dense<0.000000e+00> : vector<64xf32>
    %269 = vector.multi_reduction <add>, %268, %cst_122 [0] : vector<4x64xf32> to vector<64xf32>
    %270 = vector.shape_cast %269 : vector<64xf32> to vector<1x64xf32>
    %cst_123 = arith.constant 4.000000e+00 : f32
    %271 = vector.broadcast %cst_123 : f32 to vector<1x64xf32>
    %272 = arith.divf %270, %271 : vector<1x64xf32>
    %273 = vector.broadcast %265 : vector<1x64xf32> to vector<4x64xf32>
    %274 = arith.subf %261, %273 : vector<4x64xf32>
    %cst_124 = arith.constant 9.99999974E-6 : f32
    %275 = vector.broadcast %cst_124 : f32 to vector<1x64xf32>
    %276 = arith.addf %272, %275 : vector<1x64xf32>
    %277 = math.rsqrt %276 : vector<1x64xf32>
    %278 = vector.broadcast %277 : vector<1x64xf32> to vector<4x64xf32>
    %279 = arith.mulf %274, %278 : vector<4x64xf32>
    %280 = vector.extract_strided_slice %257 {offsets = [4, 0], sizes = [4, 64], strides = [1, 1]} : vector<8x64xf32> to vector<4x64xf32>
    %cst_125 = arith.constant dense<0.000000e+00> : vector<64xf32>
    %281 = vector.multi_reduction <add>, %280, %cst_125 [0] : vector<4x64xf32> to vector<64xf32>
    %282 = vector.shape_cast %281 : vector<64xf32> to vector<1x64xf32>
    %cst_126 = arith.constant 4.000000e+00 : f32
    %283 = vector.broadcast %cst_126 : f32 to vector<1x64xf32>
    %284 = arith.divf %282, %283 : vector<1x64xf32>
    %285 = vector.broadcast %284 : vector<1x64xf32> to vector<4x64xf32>
    %286 = arith.subf %280, %285 : vector<4x64xf32>
    %287 = arith.mulf %286, %286 : vector<4x64xf32>
    %cst_127 = arith.constant dense<0.000000e+00> : vector<64xf32>
    %288 = vector.multi_reduction <add>, %287, %cst_127 [0] : vector<4x64xf32> to vector<64xf32>
    %289 = vector.shape_cast %288 : vector<64xf32> to vector<1x64xf32>
    %cst_128 = arith.constant 4.000000e+00 : f32
    %290 = vector.broadcast %cst_128 : f32 to vector<1x64xf32>
    %291 = arith.divf %289, %290 : vector<1x64xf32>
    %292 = vector.broadcast %284 : vector<1x64xf32> to vector<4x64xf32>
    %293 = arith.subf %280, %292 : vector<4x64xf32>
    %cst_129 = arith.constant 9.99999974E-6 : f32
    %294 = vector.broadcast %cst_129 : f32 to vector<1x64xf32>
    %295 = arith.addf %291, %294 : vector<1x64xf32>
    %296 = math.rsqrt %295 : vector<1x64xf32>
    %297 = vector.broadcast %296 : vector<1x64xf32> to vector<4x64xf32>
    %298 = arith.mulf %293, %297 : vector<4x64xf32>
    %299 = tpu.concatenate %279, %298 in 0 : vector<4x64xf32>, vector<4x64xf32> -> vector<8x64xf32>
    %300 = vector.broadcast %258 : vector<1x64xf32> to vector<8x64xf32>
    %301 = arith.mulf %300, %299 : vector<8x64xf32>
    %302 = vector.broadcast %259 : vector<1x64xf32> to vector<8x64xf32>
    %303 = arith.addf %301, %302 : vector<8x64xf32>
    %cst_130 = arith.constant 0.000000e+00 : f32
    %304 = vector.broadcast %cst_130 : f32 to vector<8x64xf32>
    %305 = arith.cmpf oge, %303, %304 : vector<8x64xf32>
    %306 = vector.broadcast %260 : f32 to vector<8x64xf32>
    %307 = arith.mulf %306, %303 : vector<8x64xf32>
    %308 = arith.select %305, %303, %307 : vector<8x64xi1>, vector<8x64xf32>
    %c0_131 = arith.constant 0 : index
    %c0_132 = arith.constant 0 : index
    %309 = vector.load %arg35[%c0_131, %c0_132] : memref<64x96xf32, #tpu.memory_space<vmem>>, vector<64x96xf32>
    %cst_133 = arith.constant dense<0.000000e+00> : vector<8x96xf32>
    %310 = tpu.matmul %308, %309, %cst_133 {dimension_numbers = #tpu.dot_dimension_numbers<[1], [0], [0], [1], [0, 0, 1, 1], [], []>} : vector<8x64xf32>, vector<64x96xf32>, vector<8x96xf32> -> vector<8x96xf32>
    %c0_134 = arith.constant 0 : index
    %c0_135 = arith.constant 0 : index
    %311 = vector.load %arg36[%c0_134, %c0_135] : memref<1x96xf32, #tpu.memory_space<vmem>>, vector<1x96xf32>
    %312 = vector.broadcast %311 : vector<1x96xf32> to vector<8x96xf32>
    %313 = arith.addf %310, %312 : vector<8x96xf32>
    %314 = vector.extract_strided_slice %313 {offsets = [0, 0], sizes = [8, 32], strides = [1, 1]} : vector<8x96xf32> to vector<8x32xf32>
    %315 = math.exp %314 : vector<8x32xf32>
    %316 = vector.extract_strided_slice %313 {offsets = [0, 32], sizes = [8, 32], strides = [1, 1]} : vector<8x96xf32> to vector<8x32xf32>
    %cst_136 = arith.constant 0.000000e+00 : f32
    %317 = vector.broadcast %cst_136 : f32 to vector<8x32xf32>
    %318 = arith.maximumf %316, %317 : vector<8x32xf32>
    %319 = math.absf %316 : vector<8x32xf32>
    %cst_137 = arith.constant 0.000000e+00 : f32
    %320 = vector.broadcast %cst_137 : f32 to vector<8x32xf32>
    %321 = arith.subf %320, %319 : vector<8x32xf32>
    %322 = math.exp %321 : vector<8x32xf32>
    %323 = math.log1p %322 : vector<8x32xf32>
    %324 = arith.addf %318, %323 : vector<8x32xf32>
    %cst_138 = arith.constant 9.99999974E-5 : f32
    %cst_139 = arith.constant 1.000000e+03 : f32
    %325 = vector.broadcast %cst_138 : f32 to vector<8x32xf32>
    %326 = arith.maximumf %325, %324 : vector<8x32xf32>
    %327 = vector.broadcast %cst_139 : f32 to vector<8x32xf32>
    %328 = arith.minimumf %327, %326 : vector<8x32xf32>
    %329 = vector.extract_strided_slice %313 {offsets = [0, 64], sizes = [8, 32], strides = [1, 1]} : vector<8x96xf32> to vector<8x32xf32>
    %c0_140 = arith.constant 0 : index
    %c0_141 = arith.constant 0 : index
    %330 = vector.load %arg37[%c0_140, %c0_141] : memref<16x48xf32, #tpu.memory_space<vmem>>, vector<16x48xf32>
    %cst_142 = arith.constant dense<0.000000e+00> : vector<8x48xf32>
    %331 = tpu.matmul %252, %330, %cst_142 {dimension_numbers = #tpu.dot_dimension_numbers<[1], [0], [0], [1], [0, 0, 1, 1], [], []>} : vector<8x16xf32>, vector<16x48xf32>, vector<8x48xf32> -> vector<8x48xf32>
    %c0_143 = arith.constant 0 : index
    %c0_144 = arith.constant 0 : index
    %332 = vector.load %arg38[%c0_143, %c0_144] : memref<1x48xf32, #tpu.memory_space<vmem>>, vector<1x48xf32>
    %333 = vector.broadcast %332 : vector<1x48xf32> to vector<8x48xf32>
    %334 = arith.addf %331, %333 : vector<8x48xf32>
    %c0_145 = arith.constant 0 : index
    %c0_146 = arith.constant 0 : index
    %335 = vector.load %arg39[%c0_145, %c0_146] : memref<1x48xf32, #tpu.memory_space<vmem>>, vector<1x48xf32>
    %c0_147 = arith.constant 0 : index
    %c0_148 = arith.constant 0 : index
    %336 = vector.load %arg40[%c0_147, %c0_148] : memref<1x48xf32, #tpu.memory_space<vmem>>, vector<1x48xf32>
    %c6 = arith.constant 6 : index
    %337 = memref.load %arg48[%c6] : memref<7xf32, #tpu.memory_space<smem>>
    %338 = vector.extract_strided_slice %334 {offsets = [0, 0], sizes = [4, 48], strides = [1, 1]} : vector<8x48xf32> to vector<4x48xf32>
    %cst_149 = arith.constant dense<0.000000e+00> : vector<48xf32>
    %339 = vector.multi_reduction <add>, %338, %cst_149 [0] : vector<4x48xf32> to vector<48xf32>
    %340 = vector.shape_cast %339 : vector<48xf32> to vector<1x48xf32>
    %cst_150 = arith.constant 4.000000e+00 : f32
    %341 = vector.broadcast %cst_150 : f32 to vector<1x48xf32>
    %342 = arith.divf %340, %341 : vector<1x48xf32>
    %343 = vector.broadcast %342 : vector<1x48xf32> to vector<4x48xf32>
    %344 = arith.subf %338, %343 : vector<4x48xf32>
    %345 = arith.mulf %344, %344 : vector<4x48xf32>
    %cst_151 = arith.constant dense<0.000000e+00> : vector<48xf32>
    %346 = vector.multi_reduction <add>, %345, %cst_151 [0] : vector<4x48xf32> to vector<48xf32>
    %347 = vector.shape_cast %346 : vector<48xf32> to vector<1x48xf32>
    %cst_152 = arith.constant 4.000000e+00 : f32
    %348 = vector.broadcast %cst_152 : f32 to vector<1x48xf32>
    %349 = arith.divf %347, %348 : vector<1x48xf32>
    %350 = vector.broadcast %342 : vector<1x48xf32> to vector<4x48xf32>
    %351 = arith.subf %338, %350 : vector<4x48xf32>
    %cst_153 = arith.constant 9.99999974E-6 : f32
    %352 = vector.broadcast %cst_153 : f32 to vector<1x48xf32>
    %353 = arith.addf %349, %352 : vector<1x48xf32>
    %354 = math.rsqrt %353 : vector<1x48xf32>
    %355 = vector.broadcast %354 : vector<1x48xf32> to vector<4x48xf32>
    %356 = arith.mulf %351, %355 : vector<4x48xf32>
    %357 = vector.extract_strided_slice %334 {offsets = [4, 0], sizes = [4, 48], strides = [1, 1]} : vector<8x48xf32> to vector<4x48xf32>
    %cst_154 = arith.constant dense<0.000000e+00> : vector<48xf32>
    %358 = vector.multi_reduction <add>, %357, %cst_154 [0] : vector<4x48xf32> to vector<48xf32>
    %359 = vector.shape_cast %358 : vector<48xf32> to vector<1x48xf32>
    %cst_155 = arith.constant 4.000000e+00 : f32
    %360 = vector.broadcast %cst_155 : f32 to vector<1x48xf32>
    %361 = arith.divf %359, %360 : vector<1x48xf32>
    %362 = vector.broadcast %361 : vector<1x48xf32> to vector<4x48xf32>
    %363 = arith.subf %357, %362 : vector<4x48xf32>
    %364 = arith.mulf %363, %363 : vector<4x48xf32>
    %cst_156 = arith.constant dense<0.000000e+00> : vector<48xf32>
    %365 = vector.multi_reduction <add>, %364, %cst_156 [0] : vector<4x48xf32> to vector<48xf32>
    %366 = vector.shape_cast %365 : vector<48xf32> to vector<1x48xf32>
    %cst_157 = arith.constant 4.000000e+00 : f32
    %367 = vector.broadcast %cst_157 : f32 to vector<1x48xf32>
    %368 = arith.divf %366, %367 : vector<1x48xf32>
    %369 = vector.broadcast %361 : vector<1x48xf32> to vector<4x48xf32>
    %370 = arith.subf %357, %369 : vector<4x48xf32>
    %cst_158 = arith.constant 9.99999974E-6 : f32
    %371 = vector.broadcast %cst_158 : f32 to vector<1x48xf32>
    %372 = arith.addf %368, %371 : vector<1x48xf32>
    %373 = math.rsqrt %372 : vector<1x48xf32>
    %374 = vector.broadcast %373 : vector<1x48xf32> to vector<4x48xf32>
    %375 = arith.mulf %370, %374 : vector<4x48xf32>
    %376 = tpu.concatenate %356, %375 in 0 : vector<4x48xf32>, vector<4x48xf32> -> vector<8x48xf32>
    %377 = vector.broadcast %335 : vector<1x48xf32> to vector<8x48xf32>
    %378 = arith.mulf %377, %376 : vector<8x48xf32>
    %379 = vector.broadcast %336 : vector<1x48xf32> to vector<8x48xf32>
    %380 = arith.addf %378, %379 : vector<8x48xf32>
    %cst_159 = arith.constant 0.000000e+00 : f32
    %381 = vector.broadcast %cst_159 : f32 to vector<8x48xf32>
    %382 = arith.cmpf oge, %380, %381 : vector<8x48xf32>
    %383 = vector.broadcast %337 : f32 to vector<8x48xf32>
    %384 = arith.mulf %383, %380 : vector<8x48xf32>
    %385 = arith.select %382, %380, %384 : vector<8x48xi1>, vector<8x48xf32>
    %c0_160 = arith.constant 0 : index
    %c0_161 = arith.constant 0 : index
    %386 = vector.load %arg41[%c0_160, %c0_161] : memref<48x96xf32, #tpu.memory_space<vmem>>, vector<48x96xf32>
    %cst_162 = arith.constant dense<0.000000e+00> : vector<8x96xf32>
    %387 = tpu.matmul %385, %386, %cst_162 {dimension_numbers = #tpu.dot_dimension_numbers<[1], [0], [0], [1], [0, 0, 1, 1], [], []>} : vector<8x48xf32>, vector<48x96xf32>, vector<8x96xf32> -> vector<8x96xf32>
    %c0_163 = arith.constant 0 : index
    %c0_164 = arith.constant 0 : index
    %388 = vector.load %arg42[%c0_163, %c0_164] : memref<1x96xf32, #tpu.memory_space<vmem>>, vector<1x96xf32>
    %389 = vector.broadcast %388 : vector<1x96xf32> to vector<8x96xf32>
    %390 = arith.addf %387, %389 : vector<8x96xf32>
    %c0_165 = arith.constant 0 : index
    %c0_166 = arith.constant 0 : index
    %391 = vector.load %arg43[%c0_165, %c0_166] : memref<1x96xf32, #tpu.memory_space<vmem>>, vector<1x96xf32>
    %c0_167 = arith.constant 0 : index
    %c0_168 = arith.constant 0 : index
    %392 = vector.load %arg44[%c0_167, %c0_168] : memref<1x96xf32, #tpu.memory_space<vmem>>, vector<1x96xf32>
    %c0_169 = arith.constant 0 : index
    %c0_170 = arith.constant 0 : index
    %393 = vector.load %arg45[%c0_169, %c0_170] : memref<1x96xf32, #tpu.memory_space<vmem>>, vector<1x96xf32>
    %394 = vector.extract_strided_slice %390 {offsets = [0, 0], sizes = [4, 96], strides = [1, 1]} : vector<8x96xf32> to vector<4x96xf32>
    %cst_171 = arith.constant dense<0.000000e+00> : vector<96xf32>
    %395 = vector.multi_reduction <add>, %394, %cst_171 [0] : vector<4x96xf32> to vector<96xf32>
    %396 = vector.shape_cast %395 : vector<96xf32> to vector<1x96xf32>
    %cst_172 = arith.constant 4.000000e+00 : f32
    %397 = vector.broadcast %cst_172 : f32 to vector<1x96xf32>
    %398 = arith.divf %396, %397 : vector<1x96xf32>
    %399 = vector.broadcast %398 : vector<1x96xf32> to vector<4x96xf32>
    %400 = arith.subf %394, %399 : vector<4x96xf32>
    %401 = arith.mulf %400, %400 : vector<4x96xf32>
    %cst_173 = arith.constant dense<0.000000e+00> : vector<96xf32>
    %402 = vector.multi_reduction <add>, %401, %cst_173 [0] : vector<4x96xf32> to vector<96xf32>
    %403 = vector.shape_cast %402 : vector<96xf32> to vector<1x96xf32>
    %cst_174 = arith.constant 4.000000e+00 : f32
    %404 = vector.broadcast %cst_174 : f32 to vector<1x96xf32>
    %405 = arith.divf %403, %404 : vector<1x96xf32>
    %406 = vector.broadcast %398 : vector<1x96xf32> to vector<4x96xf32>
    %407 = arith.subf %394, %406 : vector<4x96xf32>
    %cst_175 = arith.constant 9.99999974E-6 : f32
    %408 = vector.broadcast %cst_175 : f32 to vector<1x96xf32>
    %409 = arith.addf %405, %408 : vector<1x96xf32>
    %410 = math.rsqrt %409 : vector<1x96xf32>
    %411 = vector.broadcast %410 : vector<1x96xf32> to vector<4x96xf32>
    %412 = arith.mulf %407, %411 : vector<4x96xf32>
    %413 = vector.extract_strided_slice %390 {offsets = [4, 0], sizes = [4, 96], strides = [1, 1]} : vector<8x96xf32> to vector<4x96xf32>
    %cst_176 = arith.constant dense<0.000000e+00> : vector<96xf32>
    %414 = vector.multi_reduction <add>, %413, %cst_176 [0] : vector<4x96xf32> to vector<96xf32>
    %415 = vector.shape_cast %414 : vector<96xf32> to vector<1x96xf32>
    %cst_177 = arith.constant 4.000000e+00 : f32
    %416 = vector.broadcast %cst_177 : f32 to vector<1x96xf32>
    %417 = arith.divf %415, %416 : vector<1x96xf32>
    %418 = vector.broadcast %417 : vector<1x96xf32> to vector<4x96xf32>
    %419 = arith.subf %413, %418 : vector<4x96xf32>
    %420 = arith.mulf %419, %419 : vector<4x96xf32>
    %cst_178 = arith.constant dense<0.000000e+00> : vector<96xf32>
    %421 = vector.multi_reduction <add>, %420, %cst_178 [0] : vector<4x96xf32> to vector<96xf32>
    %422 = vector.shape_cast %421 : vector<96xf32> to vector<1x96xf32>
    %cst_179 = arith.constant 4.000000e+00 : f32
    %423 = vector.broadcast %cst_179 : f32 to vector<1x96xf32>
    %424 = arith.divf %422, %423 : vector<1x96xf32>
    %425 = vector.broadcast %417 : vector<1x96xf32> to vector<4x96xf32>
    %426 = arith.subf %413, %425 : vector<4x96xf32>
    %cst_180 = arith.constant 9.99999974E-6 : f32
    %427 = vector.broadcast %cst_180 : f32 to vector<1x96xf32>
    %428 = arith.addf %424, %427 : vector<1x96xf32>
    %429 = math.rsqrt %428 : vector<1x96xf32>
    %430 = vector.broadcast %429 : vector<1x96xf32> to vector<4x96xf32>
    %431 = arith.mulf %426, %430 : vector<4x96xf32>
    %432 = tpu.concatenate %412, %431 in 0 : vector<4x96xf32>, vector<4x96xf32> -> vector<8x96xf32>
    %433 = vector.broadcast %391 : vector<1x96xf32> to vector<8x96xf32>
    %434 = arith.mulf %433, %432 : vector<8x96xf32>
    %435 = vector.broadcast %392 : vector<1x96xf32> to vector<8x96xf32>
    %436 = arith.addf %434, %435 : vector<8x96xf32>
    %cst_181 = arith.constant 0.000000e+00 : f32
    %437 = vector.broadcast %cst_181 : f32 to vector<8x96xf32>
    %438 = arith.cmpf oge, %436, %437 : vector<8x96xf32>
    %439 = vector.broadcast %393 : vector<1x96xf32> to vector<8x96xf32>
    %440 = arith.mulf %439, %436 : vector<8x96xf32>
    %441 = arith.select %438, %436, %440 : vector<8x96xi1>, vector<8x96xf32>
    %c0_182 = arith.constant 0 : index
    %c0_183 = arith.constant 0 : index
    %442 = vector.load %arg46[%c0_182, %c0_183] : memref<96x56xf32, #tpu.memory_space<vmem>>, vector<96x56xf32>
    %cst_184 = arith.constant dense<0.000000e+00> : vector<8x56xf32>
    %443 = tpu.matmul %441, %442, %cst_184 {dimension_numbers = #tpu.dot_dimension_numbers<[1], [0], [0], [1], [0, 0, 1, 1], [], []>} : vector<8x96xf32>, vector<96x56xf32>, vector<8x56xf32> -> vector<8x56xf32>
    %c0_185 = arith.constant 0 : index
    %c0_186 = arith.constant 0 : index
    %444 = vector.load %arg47[%c0_185, %c0_186] : memref<1x56xf32, #tpu.memory_space<vmem>>, vector<1x56xf32>
    %445 = vector.broadcast %444 : vector<1x56xf32> to vector<8x56xf32>
    %446 = arith.addf %443, %445 : vector<8x56xf32>
    %cst_187 = arith.constant 0.000000e+00 : f32
    %447 = vector.broadcast %cst_187 : f32 to vector<8x56xf32>
    %448 = arith.subf %447, %446 : vector<8x56xf32>
    %449 = math.exp %448 : vector<8x56xf32>
    %cst_188 = arith.constant 1.000000e+00 : f32
    %450 = vector.broadcast %cst_188 : f32 to vector<8x56xf32>
    %451 = arith.addf %450, %449 : vector<8x56xf32>
    %cst_189 = arith.constant 1.000000e+00 : f32
    %452 = vector.broadcast %cst_189 : f32 to vector<8x56xf32>
    %453 = arith.divf %452, %451 : vector<8x56xf32>
    %454 = vector.extract_strided_slice %315 {offsets = [0, 0], sizes = [4, 32], strides = [1, 1]} : vector<8x32xf32> to vector<4x32xf32>
    %455 = vector.extract_strided_slice %328 {offsets = [0, 0], sizes = [4, 32], strides = [1, 1]} : vector<8x32xf32> to vector<4x32xf32>
    %456 = vector.extract_strided_slice %329 {offsets = [0, 0], sizes = [4, 32], strides = [1, 1]} : vector<8x32xf32> to vector<4x32xf32>
    %457 = vector.extract_strided_slice %315 {offsets = [4, 0], sizes = [4, 32], strides = [1, 1]} : vector<8x32xf32> to vector<4x32xf32>
    %458 = vector.extract_strided_slice %328 {offsets = [4, 0], sizes = [4, 32], strides = [1, 1]} : vector<8x32xf32> to vector<4x32xf32>
    %459 = vector.extract_strided_slice %329 {offsets = [4, 0], sizes = [4, 32], strides = [1, 1]} : vector<8x32xf32> to vector<4x32xf32>
    %460 = vector.extract_strided_slice %453 {offsets = [0, 0], sizes = [4, 56], strides = [1, 1]} : vector<8x56xf32> to vector<4x56xf32>
    %461 = vector.extract_strided_slice %453 {offsets = [4, 0], sizes = [4, 56], strides = [1, 1]} : vector<8x56xf32> to vector<4x56xf32>
    %462 = tpu.concatenate %73, %251, %454, %455, %456, %457, %458, %459, %460, %461 in 1 : vector<4x16xf32>, vector<4x16xf32>, vector<4x32xf32>, vector<4x32xf32>, vector<4x32xf32>, vector<4x32xf32>, vector<4x32xf32>, vector<4x32xf32>, vector<4x56xf32>, vector<4x56xf32> -> vector<4x336xf32>
    %c0_190 = arith.constant 0 : index
    %c0_191 = arith.constant 0 : index
    %463 = vector.load %arg49[%c0_190, %c0_191] : memref<4x336xf32, #tpu.memory_space<vmem>>, vector<4x336xf32>
    tpu.vector_store %arg49[%c0_190, %c0_191], %462 {strides = array<i32>} : memref<4x336xf32, #tpu.memory_space<vmem>>, vector<4x336xf32>,
    return
  }
}

</mosaic_0001>

<llo_original>
// kernel: assym_spliced_ae_fwd.1
$region0: #{assym_spliced_ae_fwd.1}
  #allocation0 [shape = 'u32[]', space=smem, size = 0x4, offset = 0x4, fixed_abs, tag = 'smem constant byte address 0x4 - core index']
  #allocation1 [shape = 'u32[144,128]{1,0:T(1,128)}', space=vmem, size = 0x12000, scoped, tag = 'internal scratch']
  %s0 = inlined_call_operand.smem [shape: u32[50], index: -1, kind: input, shape index: {}]
  %s1 = sld [smem:[%s0]]
  %s2 = scalar_lea.smem %s0, 1
  %s3 = sld [smem:[%s2]]
  %s4 = scalar_lea.smem %s0, 2
  %s5 = sld [smem:[%s4]]
  %s6 = scalar_lea.smem %s0, 3
  %s7 = sld [smem:[%s6]]
  %s8 = scalar_lea.smem %s0, 4
  %s9 = sld [smem:[%s8]]
  %s10 = scalar_lea.smem %s0, 5
  %s11 = sld [smem:[%s10]]
  %s12 = scalar_lea.smem %s0, 6
  %s13 = sld [smem:[%s12]]
  %s14 = scalar_lea.smem %s0, 7
  %s15 = sld [smem:[%s14]]
  %s16 = scalar_lea.smem %s0, 8
  %s17 = sld [smem:[%s16]]
  %s18 = scalar_lea.smem %s0, 9
  %s19 = sld [smem:[%s18]]
  %s20 = scalar_lea.smem %s0, 10
  %s21 = sld [smem:[%s20]]
  %s22 = scalar_lea.smem %s0, 11
  %s23 = sld [smem:[%s22]]
  %s24 = scalar_lea.smem %s0, 12
  %s25 = sld [smem:[%s24]]
  %s26 = scalar_lea.smem %s0, 13
  %s27 = sld [smem:[%s26]]
  %s28 = scalar_lea.smem %s0, 14
  %s29 = sld [smem:[%s28]]
  %s30 = scalar_lea.smem %s0, 15
  %s31 = sld [smem:[%s30]]
  %s32 = scalar_lea.smem %s0, 16
  %s33 = sld [smem:[%s32]]
  %s34 = scalar_lea.smem %s0, 17
  %s35 = sld [smem:[%s34]]
  %s36 = scalar_lea.smem %s0, 18
  %s37 = sld [smem:[%s36]]
  %s38 = scalar_lea.smem %s0, 19
  %s39 = sld [smem:[%s38]]
  %s40 = scalar_lea.smem %s0, 20
  %s41 = sld [smem:[%s40]]
  %s42 = scalar_lea.smem %s0, 21
  %s43 = sld [smem:[%s42]]
  %s44 = scalar_lea.smem %s0, 22
  %s45 = sld [smem:[%s44]]
  %s46 = scalar_lea.smem %s0, 23
  %s47 = sld [smem:[%s46]]
  %s48 = scalar_lea.smem %s0, 24
  %s49 = sld [smem:[%s48]]
  %s50 = scalar_lea.smem %s0, 25
  %s51 = sld [smem:[%s50]]
  %s52 = scalar_lea.smem %s0, 26
  %s53 = sld [smem:[%s52]]
  %s54 = scalar_lea.smem %s0, 27
  %s55 = sld [smem:[%s54]]
  %s56 = scalar_lea.smem %s0, 28
  %s57 = sld [smem:[%s56]]
  %s58 = scalar_lea.smem %s0, 29
  %s59 = sld [smem:[%s58]]
  %s60 = scalar_lea.smem %s0, 30
  %s61 = sld [smem:[%s60]]
  %s62 = scalar_lea.smem %s0, 31
  %s63 = sld [smem:[%s62]]
  %s64 = scalar_lea.smem %s0, 32
  %s65 = sld [smem:[%s64]]
  %s66 = scalar_lea.smem %s0, 33
  %s67 = sld [smem:[%s66]]
  %s68 = scalar_lea.smem %s0, 34
  %s69 = sld [smem:[%s68]]
  %s70 = scalar_lea.smem %s0, 35
  %s71 = sld [smem:[%s70]]
  %s72 = scalar_lea.smem %s0, 36
  %s73 = sld [smem:[%s72]]
  %s74 = scalar_lea.smem %s0, 37
  %s75 = sld [smem:[%s74]]
  %s76 = scalar_lea.smem %s0, 38
  %s77 = sld [smem:[%s76]]
  %s78 = scalar_lea.smem %s0, 39
  %s79 = sld [smem:[%s78]]
  %s80 = scalar_lea.smem %s0, 40
  %s81 = sld [smem:[%s80]]
  %s82 = scalar_lea.smem %s0, 41
  %s83 = sld [smem:[%s82]]
  %s84 = scalar_lea.smem %s0, 42
  %s85 = sld [smem:[%s84]]
  %s86 = scalar_lea.smem %s0, 43
  %s87 = sld [smem:[%s86]]
  %s88 = scalar_lea.smem %s0, 44
  %s89 = sld [smem:[%s88]]
  %s90 = scalar_lea.smem %s0, 45
  %s91 = sld [smem:[%s90]]
  %s92 = scalar_lea.smem %s0, 46
  %s93 = sld [smem:[%s92]]
  %s94 = scalar_lea.smem %s0, 47
  %s95 = sld [smem:[%s94]]
  %s96 = scalar_lea.smem %s0, 48
  %s97 = sld [smem:[%s96]]
  %s98 = scalar_lea.smem %s0, 49
  %s99 = sld [smem:[%s98]]
  %s100 = sld [smem:[#allocation0]]
  $region242: #{assym_spliced_ae_fwd.1} parent=0
    _
  %s102 = ssub.s32 1, %s100
  %s103 = scalar_select 0, %s102, %s100
  $region1: #{assym_spliced_ae_fwd.1} parent=0
    #allocation2 [shape = 'u8[512]{0}', space=vmem, size = 0x400, scoped, tag = 'input window, operand 38, single buffered']
    #allocation3 [shape = 's32[1]{0}', space=sflag, size = 0x4, scoped, tag = 'scoped memory for assym_spliced_ae_fwd.1']
    #allocation4 [shape = 's32[1]{0}', space=sflag, size = 0x4, scoped, tag = 'scoped memory for assym_spliced_ae_fwd.1']
    #allocation5 [shape = 'u8[512]{0}', space=vmem, size = 0x400, scoped, tag = 'input window, operand 39, single buffered']
    #allocation6 [shape = 's32[1]{0}', space=sflag, size = 0x4, scoped, tag = 'scoped memory for assym_spliced_ae_fwd.1']
    #allocation7 [shape = 'u8[512]{0}', space=vmem, size = 0x400, scoped, tag = 'input window, operand 40, single buffered']
    #allocation8 [shape = 'u8[512]{0}', space=vmem, size = 0x400, scoped, tag = 'input window, operand 42, single buffered']
    #allocation9 [shape = 's32[1]{0}', space=sflag, size = 0x4, scoped, tag = 'scoped memory for assym_spliced_ae_fwd.1']
    #allocation10 [shape = 'u8[512]{0}', space=vmem, size = 0x400, scoped, tag = 'input window, operand 43, single buffered']
    #allocation11 [shape = 'u8[512]{0}', space=vmem, size = 0x400, scoped, tag = 'input window, operand 44, single buffered']
    #allocation12 [shape = 's32[1]{0}', space=sflag, size = 0x4, scoped, tag = 'scoped memory for assym_spliced_ae_fwd.1']
    #allocation13 [shape = 'u8[512]{0}', space=vmem, size = 0x400, scoped, tag = 'input window, operand 45, single buffered']
    #allocation14 [shape = 'u8[512]{0}', space=vmem, size = 0x400, scoped, tag = 'input window, operand 47, single buffered']
    #allocation15 [shape = 's32[1]{0}', space=sflag, size = 0x4, scoped, tag = 'scoped memory for assym_spliced_ae_fwd.1']
    #allocation16 [shape = 'u8[512]{0}', space=smem, size = 0x200, scoped, tag = 'input window, operand 48, single buffered']
    %104 = vsyncpa [#allocation3], 0
    %105 = vsyncpa [#allocation6], 0
    %106 = vsyncpa [#allocation9], 0
    %107 = vsyncpa [#allocation12], 0
    %108 = vsyncpa [#allocation15], 0
    %109 = vsyncpa [#allocation4], 0
    // Predicated region
    $region2: #{assym_spliced_ae_fwd.1} parent=1 // pred_check
      _
    $region3: #{assym_spliced_ae_fwd.1} parent=1 // pred_check_branch
      %111 = sbr.rel (0) target = $region5
    $region4: #{assym_spliced_ae_fwd.1} parent=1 // pred_region
      _
    $region5: #{assym_spliced_ae_fwd.1} parent=1 // pred_fallthru
      _
    // Predicated region
    $region6: #{assym_spliced_ae_fwd.1} parent=1 // pred_check
      _
    $region7: #{assym_spliced_ae_fwd.1} parent=1 // pred_check_branch
      %113 = sbr.rel (0) target = $region9
    $region8: #{assym_spliced_ae_fwd.1} parent=1 // pred_region
      _
    $region9: #{assym_spliced_ae_fwd.1} parent=1 // pred_fallthru
      _
    // Predicated region
    $region10: #{assym_spliced_ae_fwd.1} parent=1 // pred_check
      _
    $region11: #{assym_spliced_ae_fwd.1} parent=1 // pred_check_branch
      %115 = sbr.rel (0) target = $region13
    $region12: #{assym_spliced_ae_fwd.1} parent=1 // pred_region
      _
    $region13: #{assym_spliced_ae_fwd.1} parent=1 // pred_fallthru
      _
    // Predicated region
    $region14: #{assym_spliced_ae_fwd.1} parent=1 // pred_check
      _
    $region15: #{assym_spliced_ae_fwd.1} parent=1 // pred_check_branch
      %117 = sbr.rel (0) target = $region17
    $region16: #{assym_spliced_ae_fwd.1} parent=1 // pred_region
      _
    $region17: #{assym_spliced_ae_fwd.1} parent=1 // pred_fallthru
      _
    // Predicated region
    $region18: #{assym_spliced_ae_fwd.1} parent=1 // pred_check
      _
    $region19: #{assym_spliced_ae_fwd.1} parent=1 // pred_check_branch
      %119 = sbr.rel (0) target = $region21
    $region20: #{assym_spliced_ae_fwd.1} parent=1 // pred_region
      _
    $region21: #{assym_spliced_ae_fwd.1} parent=1 // pred_fallthru
      _
    // Predicated region
    $region22: #{assym_spliced_ae_fwd.1} parent=1 // pred_check
      _
    $region23: #{assym_spliced_ae_fwd.1} parent=1 // pred_check_branch
      %121 = sbr.rel (0) target = $region25
    $region24: #{assym_spliced_ae_fwd.1} parent=1 // pred_region
      _
    $region25: #{assym_spliced_ae_fwd.1} parent=1 // pred_fallthru
      _
    // Predicated region
    $region26: #{assym_spliced_ae_fwd.1} parent=1 // pred_check
      _
    $region27: #{assym_spliced_ae_fwd.1} parent=1 // pred_check_branch
      %123 = sbr.rel (0) target = $region29
    $region28: #{assym_spliced_ae_fwd.1} parent=1 // pred_region
      _
    $region29: #{assym_spliced_ae_fwd.1} parent=1 // pred_fallthru
      _
    // Predicated region
    $region30: #{assym_spliced_ae_fwd.1} parent=1 // pred_check
      _
    $region31: #{assym_spliced_ae_fwd.1} parent=1 // pred_check_branch
      %125 = sbr.rel (0) target = $region33
    $region32: #{assym_spliced_ae_fwd.1} parent=1 // pred_region
      _
    $region33: #{assym_spliced_ae_fwd.1} parent=1 // pred_fallthru
      _
    // Predicated region
    $region34: #{assym_spliced_ae_fwd.1} parent=1 // pred_check
      _
    $region35: #{assym_spliced_ae_fwd.1} parent=1 // pred_check_branch
      %127 = sbr.rel (0) target = $region37
    $region36: #{assym_spliced_ae_fwd.1} parent=1 // pred_region
      _
    $region37: #{assym_spliced_ae_fwd.1} parent=1 // pred_fallthru
      _
    // Predicated region
    $region38: #{assym_spliced_ae_fwd.1} parent=1 // pred_check
      _
    $region39: #{assym_spliced_ae_fwd.1} parent=1 // pred_check_branch
      %129 = sbr.rel (0) target = $region41
    $region40: #{assym_spliced_ae_fwd.1} parent=1 // pred_region
      _
    $region41: #{assym_spliced_ae_fwd.1} parent=1 // pred_fallthru
      _
    // Predicated region
    $region42: #{assym_spliced_ae_fwd.1} parent=1 // pred_check
      _
    $region43: #{assym_spliced_ae_fwd.1} parent=1 // pred_check_branch
      %131 = sbr.rel (0) target = $region45
    $region44: #{assym_spliced_ae_fwd.1} parent=1 // pred_region
      _
    $region45: #{assym_spliced_ae_fwd.1} parent=1 // pred_fallthru
      _
    // Predicated region
    $region46: #{assym_spliced_ae_fwd.1} parent=1 // pred_check
      _
    $region47: #{assym_spliced_ae_fwd.1} parent=1 // pred_check_branch
      %133 = sbr.rel (0) target = $region49
    $region48: #{assym_spliced_ae_fwd.1} parent=1 // pred_region
      _
    $region49: #{assym_spliced_ae_fwd.1} parent=1 // pred_fallthru
      _
    // Predicated region
    $region50: #{assym_spliced_ae_fwd.1} parent=1 // pred_check
      _
    $region51: #{assym_spliced_ae_fwd.1} parent=1 // pred_check_branch
      %135 = sbr.rel (0) target = $region53
    $region52: #{assym_spliced_ae_fwd.1} parent=1 // pred_region
      _
    $region53: #{assym_spliced_ae_fwd.1} parent=1 // pred_fallthru
      _
    // Predicated region
    $region54: #{assym_spliced_ae_fwd.1} parent=1 // pred_check
      _
    $region55: #{assym_spliced_ae_fwd.1} parent=1 // pred_check_branch
      %137 = sbr.rel (0) target = $region57
    $region56: #{assym_spliced_ae_fwd.1} parent=1 // pred_region
      _
    $region57: #{assym_spliced_ae_fwd.1} parent=1 // pred_fallthru
      _
    // Predicated region
    $region58: #{assym_spliced_ae_fwd.1} parent=1 // pred_check
      _
    $region59: #{assym_spliced_ae_fwd.1} parent=1 // pred_check_branch
      %139 = sbr.rel (0) target = $region61
    $region60: #{assym_spliced_ae_fwd.1} parent=1 // pred_region
      _
    $region61: #{assym_spliced_ae_fwd.1} parent=1 // pred_fallthru
      _
    // Predicated region
    $region62: #{assym_spliced_ae_fwd.1} parent=1 // pred_check
      _
    $region63: #{assym_spliced_ae_fwd.1} parent=1 // pred_check_branch
      %141 = sbr.rel (0) target = $region65
    $region64: #{assym_spliced_ae_fwd.1} parent=1 // pred_region
      _
    $region65: #{assym_spliced_ae_fwd.1} parent=1 // pred_fallthru
      _
    // Predicated region
    $region66: #{assym_spliced_ae_fwd.1} parent=1 // pred_check
      _
    $region67: #{assym_spliced_ae_fwd.1} parent=1 // pred_check_branch
      %143 = sbr.rel (0) target = $region69
    $region68: #{assym_spliced_ae_fwd.1} parent=1 // pred_region
      _
    $region69: #{assym_spliced_ae_fwd.1} parent=1 // pred_fallthru
      _
    // Predicated region
    $region70: #{assym_spliced_ae_fwd.1} parent=1 // pred_check
      _
    $region71: #{assym_spliced_ae_fwd.1} parent=1 // pred_check_branch
      %145 = sbr.rel (0) target = $region73
    $region72: #{assym_spliced_ae_fwd.1} parent=1 // pred_region
      _
    $region73: #{assym_spliced_ae_fwd.1} parent=1 // pred_fallthru
      _
    // Predicated region
    $region74: #{assym_spliced_ae_fwd.1} parent=1 // pred_check
      _
    $region75: #{assym_spliced_ae_fwd.1} parent=1 // pred_check_branch
      %147 = sbr.rel (0) target = $region77
    $region76: #{assym_spliced_ae_fwd.1} parent=1 // pred_region
      _
    $region77: #{assym_spliced_ae_fwd.1} parent=1 // pred_fallthru
      _
    // Predicated region
    $region78: #{assym_spliced_ae_fwd.1} parent=1 // pred_check
      _
    $region79: #{assym_spliced_ae_fwd.1} parent=1 // pred_check_branch
      %149 = sbr.rel (0) target = $region81
    $region80: #{assym_spliced_ae_fwd.1} parent=1 // pred_region
      _
    $region81: #{assym_spliced_ae_fwd.1} parent=1 // pred_fallthru
      _
    // Predicated region
    $region82: #{assym_spliced_ae_fwd.1} parent=1 // pred_check
      _
    $region83: #{assym_spliced_ae_fwd.1} parent=1 // pred_check_branch
      %151 = sbr.rel (0) target = $region85
    $region84: #{assym_spliced_ae_fwd.1} parent=1 // pred_region
      _
    $region85: #{assym_spliced_ae_fwd.1} parent=1 // pred_fallthru
      _
    // Predicated region
    $region86: #{assym_spliced_ae_fwd.1} parent=1 // pred_check
      _
    $region87: #{assym_spliced_ae_fwd.1} parent=1 // pred_check_branch
      %153 = sbr.rel (0) target = $region89
    $region88: #{assym_spliced_ae_fwd.1} parent=1 // pred_region
      _
    $region89: #{assym_spliced_ae_fwd.1} parent=1 // pred_fallthru
      _
    // Predicated region
    $region90: #{assym_spliced_ae_fwd.1} parent=1 // pred_check
      _
    $region91: #{assym_spliced_ae_fwd.1} parent=1 // pred_check_branch
      %155 = sbr.rel (0) target = $region93
    $region92: #{assym_spliced_ae_fwd.1} parent=1 // pred_region
      _
    $region93: #{assym_spliced_ae_fwd.1} parent=1 // pred_fallthru
      _
    // Predicated region
    $region94: #{assym_spliced_ae_fwd.1} parent=1 // pred_check
      _
    $region95: #{assym_spliced_ae_fwd.1} parent=1 // pred_check_branch
      %157 = sbr.rel (0) target = $region97
    $region96: #{assym_spliced_ae_fwd.1} parent=1 // pred_region
      _
    $region97: #{assym_spliced_ae_fwd.1} parent=1 // pred_fallthru
      _
    // Predicated region
    $region98: #{assym_spliced_ae_fwd.1} parent=1 // pred_check
      _
    $region99: #{assym_spliced_ae_fwd.1} parent=1 // pred_check_branch
      %159 = sbr.rel (0) target = $region101
    $region100: #{assym_spliced_ae_fwd.1} parent=1 // pred_region
      _
    $region101: #{assym_spliced_ae_fwd.1} parent=1 // pred_fallthru
      _
    // Predicated region
    $region102: #{assym_spliced_ae_fwd.1} parent=1 // pred_check
      _
    $region103: #{assym_spliced_ae_fwd.1} parent=1 // pred_check_branch
      %161 = sbr.rel (0) target = $region105
    $region104: #{assym_spliced_ae_fwd.1} parent=1 // pred_region
      _
    $region105: #{assym_spliced_ae_fwd.1} parent=1 // pred_fallthru
      _
    // Predicated region
    $region106: #{assym_spliced_ae_fwd.1} parent=1 // pred_check
      _
    $region107: #{assym_spliced_ae_fwd.1} parent=1 // pred_check_branch
      %163 = sbr.rel (0) target = $region109
    $region108: #{assym_spliced_ae_fwd.1} parent=1 // pred_region
      _
    $region109: #{assym_spliced_ae_fwd.1} parent=1 // pred_fallthru
      _
    // Predicated region
    $region110: #{assym_spliced_ae_fwd.1} parent=1 // pred_check
      _
    $region111: #{assym_spliced_ae_fwd.1} parent=1 // pred_check_branch
      %165 = sbr.rel (0) target = $region113
    $region112: #{assym_spliced_ae_fwd.1} parent=1 // pred_region
      _
    $region113: #{assym_spliced_ae_fwd.1} parent=1 // pred_fallthru
      _
    // Predicated region
    $region114: #{assym_spliced_ae_fwd.1} parent=1 // pred_check
      _
    $region115: #{assym_spliced_ae_fwd.1} parent=1 // pred_check_branch
      %167 = sbr.rel (0) target = $region117
    $region116: #{assym_spliced_ae_fwd.1} parent=1 // pred_region
      _
    $region117: #{assym_spliced_ae_fwd.1} parent=1 // pred_fallthru
      _
    // Predicated region
    $region118: #{assym_spliced_ae_fwd.1} parent=1 // pred_check
      _
    $region119: #{assym_spliced_ae_fwd.1} parent=1 // pred_check_branch
      %169 = sbr.rel (0) target = $region121
    $region120: #{assym_spliced_ae_fwd.1} parent=1 // pred_region
      _
    $region121: #{assym_spliced_ae_fwd.1} parent=1 // pred_fallthru
      _
    // Predicated region
    $region122: #{assym_spliced_ae_fwd.1} parent=1 // pred_check
      _
    $region123: #{assym_spliced_ae_fwd.1} parent=1 // pred_check_branch
      %171 = sbr.rel (0) target = $region125
    $region124: #{assym_spliced_ae_fwd.1} parent=1 // pred_region
      _
    $region125: #{assym_spliced_ae_fwd.1} parent=1 // pred_fallthru
      _
    // Predicated region
    $region126: #{assym_spliced_ae_fwd.1} parent=1 // pred_check
      _
    $region127: #{assym_spliced_ae_fwd.1} parent=1 // pred_check_branch
      %173 = sbr.rel (0) target = $region129
    $region128: #{assym_spliced_ae_fwd.1} parent=1 // pred_region
      _
    $region129: #{assym_spliced_ae_fwd.1} parent=1 // pred_fallthru
      _
    // Predicated region
    $region130: #{assym_spliced_ae_fwd.1} parent=1 // pred_check
      _
    $region131: #{assym_spliced_ae_fwd.1} parent=1 // pred_check_branch
      %175 = sbr.rel (0) target = $region133
    $region132: #{assym_spliced_ae_fwd.1} parent=1 // pred_region
      _
    $region133: #{assym_spliced_ae_fwd.1} parent=1 // pred_fallthru
      _
    // Predicated region
    $region134: #{assym_spliced_ae_fwd.1} parent=1 // pred_check
      _
    $region135: #{assym_spliced_ae_fwd.1} parent=1 // pred_check_branch
      %177 = sbr.rel (0) target = $region137
    $region136: #{assym_spliced_ae_fwd.1} parent=1 // pred_region
      _
    $region137: #{assym_spliced_ae_fwd.1} parent=1 // pred_fallthru
      _
    // Predicated region
    $region138: #{assym_spliced_ae_fwd.1} parent=1 // pred_check
      _
    $region139: #{assym_spliced_ae_fwd.1} parent=1 // pred_check_branch
      %179 = sbr.rel (0) target = $region141
    $region140: #{assym_spliced_ae_fwd.1} parent=1 // pred_region
      _
    $region141: #{assym_spliced_ae_fwd.1} parent=1 // pred_fallthru
      _
    // Predicated region
    $region142: #{assym_spliced_ae_fwd.1} parent=1 // pred_check
      _
    $region143: #{assym_spliced_ae_fwd.1} parent=1 // pred_check_branch
      %181 = sbr.rel (0) target = $region145
    $region144: #{assym_spliced_ae_fwd.1} parent=1 // pred_region
      _
    $region145: #{assym_spliced_ae_fwd.1} parent=1 // pred_fallthru
      _
    // Predicated region
    $region146: #{assym_spliced_ae_fwd.1} parent=1 // pred_check
      _
    $region147: #{assym_spliced_ae_fwd.1} parent=1 // pred_check_branch
      %183 = sbr.rel (0) target = $region149
    $region148: #{assym_spliced_ae_fwd.1} parent=1 // pred_region
      _
    $region149: #{assym_spliced_ae_fwd.1} parent=1 // pred_fallthru
      _
    // Predicated region
    $region150: #{assym_spliced_ae_fwd.1} parent=1 // pred_check
      _
    $region151: #{assym_spliced_ae_fwd.1} parent=1 // pred_check_branch
      %185 = sbr.rel (0) target = $region153
    $region152: #{assym_spliced_ae_fwd.1} parent=1 // pred_region
      _
    $region153: #{assym_spliced_ae_fwd.1} parent=1 // pred_fallthru
      _
    // Predicated region
    $region154: #{assym_spliced_ae_fwd.1} parent=1 // pred_check
      _
    $region155: #{assym_spliced_ae_fwd.1} parent=1 // pred_check_branch
      %187 = sbr.rel (0) target = $region157
    $region156: #{assym_spliced_ae_fwd.1} parent=1 // pred_region
      %s189 = ssub.s32 16, 16
      %190 = vsyncadd [#allocation3], %s189
      %s192 = sshll.u32 [#allocation2], 4
      %s193 = int_to_ptr.vmem [resolvable:$true] %s192
      %195 = dma.hbm_to_vmem [thread:$0]  %s77, 16, %s193, [#allocation3]
    $region157: #{assym_spliced_ae_fwd.1} parent=1 // pred_fallthru
      _
    // Predicated region
    $region158: #{assym_spliced_ae_fwd.1} parent=1 // pred_check
      _
    $region159: #{assym_spliced_ae_fwd.1} parent=1 // pred_check_branch
      %197 = sbr.rel (0) target = $region161
    $region160: #{assym_spliced_ae_fwd.1} parent=1 // pred_region
      %s199 = ssub.s32 16, 16
      %200 = vsyncadd [#allocation6], %s199
      %s202 = sshll.u32 [#allocation5], 4
      %s203 = int_to_ptr.vmem [resolvable:$true] %s202
      %205 = dma.hbm_to_vmem [thread:$0]  %s79, 16, %s203, [#allocation6]
    $region161: #{assym_spliced_ae_fwd.1} parent=1 // pred_fallthru
      _
    // Predicated region
    $region162: #{assym_spliced_ae_fwd.1} parent=1 // pred_check
      _
    $region163: #{assym_spliced_ae_fwd.1} parent=1 // pred_check_branch
      %207 = sbr.rel (0) target = $region165
    $region164: #{assym_spliced_ae_fwd.1} parent=1 // pred_region
      %s209 = ssub.s32 16, 16
      %210 = vsyncadd [#allocation6], %s209
      %s212 = sshll.u32 [#allocation7], 4
      %s213 = int_to_ptr.vmem [resolvable:$true] %s212
      %215 = dma.hbm_to_vmem [thread:$0]  %s81, 16, %s213, [#allocation6]
    $region165: #{assym_spliced_ae_fwd.1} parent=1 // pred_fallthru
      _
    // Predicated region
    $region166: #{assym_spliced_ae_fwd.1} parent=1 // pred_check
      _
    $region167: #{assym_spliced_ae_fwd.1} parent=1 // pred_check_branch
      %217 = sbr.rel (0) target = $region169
    $region168: #{assym_spliced_ae_fwd.1} parent=1 // pred_region
      _
    $region169: #{assym_spliced_ae_fwd.1} parent=1 // pred_fallthru
      _
    // Predicated region
    $region170: #{assym_spliced_ae_fwd.1} parent=1 // pred_check
      _
    $region171: #{assym_spliced_ae_fwd.1} parent=1 // pred_check_branch
      %219 = sbr.rel (0) target = $region173
    $region172: #{assym_spliced_ae_fwd.1} parent=1 // pred_region
      %s221 = ssub.s32 16, 16
      %222 = vsyncadd [#allocation9], %s221
      %s224 = sshll.u32 [#allocation8], 4
      %s225 = int_to_ptr.vmem [resolvable:$true] %s224
      %227 = dma.hbm_to_vmem [thread:$0]  %s85, 16, %s225, [#allocation9]
    $region173: #{assym_spliced_ae_fwd.1} parent=1 // pred_fallthru
      _
    // Predicated region
    $region174: #{assym_spliced_ae_fwd.1} parent=1 // pred_check
      _
    $region175: #{assym_spliced_ae_fwd.1} parent=1 // pred_check_branch
      %229 = sbr.rel (0) target = $region177
    $region176: #{assym_spliced_ae_fwd.1} parent=1 // pred_region
      %s231 = ssub.s32 16, 16
      %232 = vsyncadd [#allocation9], %s231
      %s234 = sshll.u32 [#allocation10], 4
      %s235 = int_to_ptr.vmem [resolvable:$true] %s234
      %237 = dma.hbm_to_vmem [thread:$0]  %s87, 16, %s235, [#allocation9]
    $region177: #{assym_spliced_ae_fwd.1} parent=1 // pred_fallthru
      _
    // Predicated region
    $region178: #{assym_spliced_ae_fwd.1} parent=1 // pred_check
      _
    $region179: #{assym_spliced_ae_fwd.1} parent=1 // pred_check_branch
      %239 = sbr.rel (0) target = $region181
    $region180: #{assym_spliced_ae_fwd.1} parent=1 // pred_region
      %s241 = ssub.s32 16, 16
      %242 = vsyncadd [#allocation12], %s241
      %s244 = sshll.u32 [#allocation11], 4
      %s245 = int_to_ptr.vmem [resolvable:$true] %s244
      %247 = dma.hbm_to_vmem [thread:$0]  %s89, 16, %s245, [#allocation12]
    $region181: #{assym_spliced_ae_fwd.1} parent=1 // pred_fallthru
      _
    // Predicated region
    $region182: #{assym_spliced_ae_fwd.1} parent=1 // pred_check
      _
    $region183: #{assym_spliced_ae_fwd.1} parent=1 // pred_check_branch
      %249 = sbr.rel (0) target = $region185
    $region184: #{assym_spliced_ae_fwd.1} parent=1 // pred_region
      %s251 = ssub.s32 16, 16
      %252 = vsyncadd [#allocation12], %s251
      %s254 = sshll.u32 [#allocation13], 4
      %s255 = int_to_ptr.vmem [resolvable:$true] %s254
      %257 = dma.hbm_to_vmem [thread:$0]  %s91, 16, %s255, [#allocation12]
    $region185: #{assym_spliced_ae_fwd.1} parent=1 // pred_fallthru
      _
    // Predicated region
    $region186: #{assym_spliced_ae_fwd.1} parent=1 // pred_check
      _
    $region187: #{assym_spliced_ae_fwd.1} parent=1 // pred_check_branch
      %259 = sbr.rel (0) target = $region189
    $region188: #{assym_spliced_ae_fwd.1} parent=1 // pred_region
      _
    $region189: #{assym_spliced_ae_fwd.1} parent=1 // pred_fallthru
      _
    // Predicated region
    $region190: #{assym_spliced_ae_fwd.1} parent=1 // pred_check
      _
    $region191: #{assym_spliced_ae_fwd.1} parent=1 // pred_check_branch
      %261 = sbr.rel (0) target = $region193
    $region192: #{assym_spliced_ae_fwd.1} parent=1 // pred_region
      %s263 = ssub.s32 16, 16
      %264 = vsyncadd [#allocation15], %s263
      %s266 = sshll.u32 [#allocation14], 4
      %s267 = int_to_ptr.vmem [resolvable:$true] %s266
      %269 = dma.hbm_to_vmem [thread:$0]  %s95, 16, %s267, [#allocation15]
    $region193: #{assym_spliced_ae_fwd.1} parent=1 // pred_fallthru
      _
    // Predicated region
    $region194: #{assym_spliced_ae_fwd.1} parent=1 // pred_check
      _
    $region195: #{assym_spliced_ae_fwd.1} parent=1 // pred_check_branch
      %271 = sbr.rel (0) target = $region197
    $region196: #{assym_spliced_ae_fwd.1} parent=1 // pred_region
      %s273 = ssub.s32 16, 16
      %274 = vsyncadd [#allocation4], %s273
      %s276 = sshll.u32 %s97, 4
      %s277 = int_to_ptr.vmem [resolvable:$true] %s276
      %279 = dma.vmem_to_smem %s277, 16, [#allocation16], [#allocation4]
    $region197: #{assym_spliced_ae_fwd.1} parent=1 // pred_fallthru
      _
    // Predicated region
    $region198: #{assym_spliced_ae_fwd.1} parent=1 // pred_check
      _
    $region199: #{assym_spliced_ae_fwd.1} parent=1 // pred_check_branch
      %281 = sbr.rel (0) target = $region201
    $region200: #{assym_spliced_ae_fwd.1} parent=1 // pred_region
      %282 = dma.done [#allocation3], 16
    $region201: #{assym_spliced_ae_fwd.1} parent=1 // pred_fallthru
      _
    // Predicated region
    $region202: #{assym_spliced_ae_fwd.1} parent=1 // pred_check
      _
    $region203: #{assym_spliced_ae_fwd.1} parent=1 // pred_check_branch
      %284 = sbr.rel (0) target = $region205
    $region204: #{assym_spliced_ae_fwd.1} parent=1 // pred_region
      %285 = dma.done [#allocation6], 16
    $region205: #{assym_spliced_ae_fwd.1} parent=1 // pred_fallthru
      _
    // Predicated region
    $region206: #{assym_spliced_ae_fwd.1} parent=1 // pred_check
      _
    $region207: #{assym_spliced_ae_fwd.1} parent=1 // pred_check_branch
      %287 = sbr.rel (0) target = $region209
    $region208: #{assym_spliced_ae_fwd.1} parent=1 // pred_region
      %288 = dma.done [#allocation6], 16
    $region209: #{assym_spliced_ae_fwd.1} parent=1 // pred_fallthru
      _
    // Predicated region
    $region210: #{assym_spliced_ae_fwd.1} parent=1 // pred_check
      _
    $region211: #{assym_spliced_ae_fwd.1} parent=1 // pred_check_branch
      %290 = sbr.rel (0) target = $region213
    $region212: #{assym_spliced_ae_fwd.1} parent=1 // pred_region
      %291 = dma.done [#allocation9], 16
    $region213: #{assym_spliced_ae_fwd.1} parent=1 // pred_fallthru
      _
    // Predicated region
    $region214: #{assym_spliced_ae_fwd.1} parent=1 // pred_check
      _
    $region215: #{assym_spliced_ae_fwd.1} parent=1 // pred_check_branch
      %293 = sbr.rel (0) target = $region217
    $region216: #{assym_spliced_ae_fwd.1} parent=1 // pred_region
      %294 = dma.done [#allocation9], 16
    $region217: #{assym_spliced_ae_fwd.1} parent=1 // pred_fallthru
      _
    // Predicated region
    $region218: #{assym_spliced_ae_fwd.1} parent=1 // pred_check
      _
    $region219: #{assym_spliced_ae_fwd.1} parent=1 // pred_check_branch
      %296 = sbr.rel (0) target = $region221
    $region220: #{assym_spliced_ae_fwd.1} parent=1 // pred_region
      %297 = dma.done [#allocation12], 16
    $region221: #{assym_spliced_ae_fwd.1} parent=1 // pred_fallthru
      _
    // Predicated region
    $region222: #{assym_spliced_ae_fwd.1} parent=1 // pred_check
      _
    $region223: #{assym_spliced_ae_fwd.1} parent=1 // pred_check_branch
      %299 = sbr.rel (0) target = $region225
    $region224: #{assym_spliced_ae_fwd.1} parent=1 // pred_region
      %300 = dma.done [#allocation12], 16
    $region225: #{assym_spliced_ae_fwd.1} parent=1 // pred_fallthru
      _
    // Predicated region
    $region226: #{assym_spliced_ae_fwd.1} parent=1 // pred_check
      _
    $region227: #{assym_spliced_ae_fwd.1} parent=1 // pred_check_branch
      %302 = sbr.rel (0) target = $region229
    $region228: #{assym_spliced_ae_fwd.1} parent=1 // pred_region
      %303 = dma.done [#allocation15], 16
    $region229: #{assym_spliced_ae_fwd.1} parent=1 // pred_fallthru
      _
    // Predicated region
    $region230: #{assym_spliced_ae_fwd.1} parent=1 // pred_check
      _
    $region231: #{assym_spliced_ae_fwd.1} parent=1 // pred_check_branch
      %305 = sbr.rel (0) target = $region233
    $region232: #{assym_spliced_ae_fwd.1} parent=1 // pred_region
      %306 = dma.done [#allocation4], 16
    $region233: #{assym_spliced_ae_fwd.1} parent=1 // pred_fallthru
      _
    %307 = sfence
    %v308 = vld [vmem:[%s1] sm:$0xf]
    %v309 = vld [vmem:[%s3] sm:$0xff]
    %v310 = vld [vmem:[%s3 + $0x8] sm:$0xff]
    %v311 = vld [vmem:[%s3 + $0x10] sm:$0xff]
    %v312 = vld [vmem:[%s3 + $0x18] sm:$0xff]
    %v313 = vld [vmem:[%s5] sm:$0x1]
    %v315 = vlaneseq
    %v316 = vshrl.u32 %v315, 7
    %v317 = vsub.s32 0, %v316
    %v318 = vrot.slane %v313, %v317
    %vm320 = vcmask 261120
    %v322 = vsel %vm320, %v308, 0
    %324 = vmatprep.subr.mxu0 0.0
    %325 = vmatpush1.msra.mxu0 %v309
    %326 = vmatprep.subr.mxu0 0.0
    %327 = vmatpush1.msra.mxu0 %v310
    %328 = vmatprep.subr.mxu0 0.0
    %329 = vmatpush1.msra.mxu0 %v311
    %330 = vmatprep.subr.mxu0 0.0
    %331 = vmatpush1.msra.mxu0 %v312
    %332 = vmatprep.subr.mxu0 0.0
    %333 = vmatpush1.msra.mxu0 0.0
    %334 = vmatprep.subr.mxu0 0.0
    %335 = vmatpush1.msra.mxu0 0.0
    %336 = vmatprep.subr.mxu0 0.0
    %337 = vmatpush1.msra.mxu0 0.0
    %338 = vmatprep.subr.mxu0 0.0
    %339 = vmatpush1.msra.mxu0 0.0
    %340 = vmatprep.subr.mxu0 0.0
    %341 = vmatpush1.msra.mxu0 0.0
    %342 = vmatprep.subr.mxu0 0.0
    %343 = vmatpush1.msra.mxu0 0.0
    %344 = vmatprep.subr.mxu0 0.0
    %345 = vmatpush1.msra.mxu0 0.0
    %346 = vmatprep.subr.mxu0 0.0
    %347 = vmatpush1.msra.mxu0 0.0
    %348 = vmatprep.subr.mxu0 0.0
    %349 = vmatpush1.msra.mxu0 0.0
    %350 = vmatprep.subr.mxu0 0.0
    %351 = vmatpush1.msra.mxu0 0.0
    %352 = vmatprep.subr.mxu0 0.0
    %353 = vmatpush1.msra.mxu0 0.0
    %354 = vmatprep.subr.mxu0 0.0
    %355 = vmatpush1.msra.mxu0 0.0
    %356 = vmatprep.subr.mxu0 0.0
    %357 = vmatpush1.msra.mxu0 0.0
    %358 = vmatprep.subr.mxu0 0.0
    %359 = vmatpush1.msra.mxu0 0.0
    %360 = vmatprep.subr.mxu0 0.0
    %361 = vmatpush1.msra.mxu0 0.0
    %362 = vmatprep.subr.mxu0 0.0
    %363 = vmatpush1.msra.mxu0 0.0
    %364 = vmatprep.subr.mxu0 0.0
    %365 = vmatpush1.msra.mxu0 0.0
    %366 = vmatprep.subr.mxu0 0.0
    %367 = vmatpush1.msra.mxu0 0.0
    %368 = vmatprep.subr.mxu0 0.0
    %369 = vmatpush1.msra.mxu0 0.0
    %370 = vmatprep.subr.mxu0 0.0
    %371 = vmatpush1.msra.mxu0 0.0
    %372 = vmatprep.subr.mxu0 0.0
    %373 = vmatpush1.msra.mxu0 0.0
    %374 = vmatprep.subr.mxu0 0.0
    %375 = vmatpush1.msra.mxu0 0.0
    %376 = vmatprep.subr.mxu0 0.0
    %377 = vmatpush1.msra.mxu0 0.0
    %378 = vmatprep.subr.mxu0 0.0
    %379 = vmatpush1.msra.mxu0 0.0
    %380 = vmatprep.subr.mxu0 0.0
    %381 = vmatpush1.msra.mxu0 0.0
    %382 = vmatprep.subr.mxu0 0.0
    %383 = vmatpush1.msra.mxu0 0.0
    %384 = vmatprep.subr.mxu0 0.0
    %385 = vmatpush1.msra.mxu0 0.0
    %386 = vmatprep.subr.mxu0 0.0
    %387 = vmatpush1.msra.mxu0 0.0
    %388 = vmatprep.mubr.f32.mxu0 0.0
    %389 = vmatmul.mubr.f32.gmra.mrb[0].mxu0 %v322
    %v390 = vpop.f32.mrb[0].mxu0
    %v391 = vadd.f32 %v318, %v390
    %v392 = vpop.f32.mrb[0].mxu0
    %393 = vdwg.mxu0
    %v394 = vld [vmem:[%s7] sm:$0x1]
    %v395 = vld [vmem:[%s9] sm:$0x1]
    %s396 = sld [smem:[#allocation16]]
    %vm397 = vcmask 519168
    %v398 = vsel %vm397, %v391, 0.0
    %v399 = vrot.slane %v398, 4
    %v400 = vadd.f32 %v398, %v399
    %v401 = vrot.slane %v400, 2
    %v402 = vadd.f32 %v400, %v401
    %v403 = vrot.slane %v402, 1
    %v404 = vadd.f32 %v402, %v403
    %v405 = vrcp.pop 4.0
    %v406 = vmul.f32 %v404, %v405
    %v407 = vsub.f32 %v391, %v406
    %v408 = vmul.f32 %v407, %v407
    %v409 = vsel %vm397, %v408, 0.0
    %v410 = vrot.slane %v409, 4
    %v411 = vadd.f32 %v409, %v410
    %v412 = vrot.slane %v411, 2
    %v413 = vadd.f32 %v411, %v412
    %v414 = vrot.slane %v413, 1
    %v415 = vadd.f32 %v413, %v414
    %v416 = vmul.f32 %v415, %v405
    %v417 = vadd.f32 %v416, 1e-05
    %v418 = vrsqrt.pop %v417
    %v419 = vmul.f32 %v407, %v418
    %v421 = vlaneseq
    %v422 = vshrl.u32 %v421, 7
    %v423 = vsub.s32 0, %v422
    %v424 = vrot.slane %v394, %v423
    %v426 = vmul.f32 %v424, %v419
    %v428 = vlaneseq
    %v429 = vshrl.u32 %v428, 7
    %v430 = vsub.s32 0, %v429
    %v431 = vrot.slane %v395, %v430
    %v433 = vadd.f32 %v426, %v431
    %vm434 = vcmp.ge.f32.partialorder %v433, 0.0
    %v435 = vstv %s396
    %v436 = vmul.f32 %v435, %v433
    %v437 = vsel %vm434, %v433, %v436
    %v438 = vld [vmem:[%s11] sm:$0xff]
    %v439 = vld [vmem:[%s11 + $0x8] sm:$0xff]
    %v440 = vld [vmem:[%s11 + $0x10] sm:$0xff]
    %v441 = vld [vmem:[%s11 + $0x18] sm:$0xff]
    %v442 = vld [vmem:[%s11 + $0x20] sm:$0xff]
    %v443 = vld [vmem:[%s11 + $0x28] sm:$0xff]
    %v444 = vld [vmem:[%s11 + $0x30] sm:$0xff]
    %v445 = vld [vmem:[%s11 + $0x38] sm:$0xff]
    %v446 = vld [vmem:[%s13] sm:$0x1]
    %v448 = vlaneseq
    %v449 = vshrl.u32 %v448, 7
    %v450 = vsub.s32 0, %v449
    %v451 = vrot.slane %v446, %v450
    %vm453 = vcmask 523264
    %v455 = vsel %vm453, %v437, 0
    %457 = vmatprep.subr.mxu0 0.0
    %458 = vmatpush1.msra.mxu0 %v438
    %459 = vmatprep.subr.mxu0 0.0
    %460 = vmatpush1.msra.mxu0 %v439
    %461 = vmatprep.subr.mxu0 0.0
    %462 = vmatpush1.msra.mxu0 %v440
    %463 = vmatprep.subr.mxu0 0.0
    %464 = vmatpush1.msra.mxu0 %v441
    %465 = vmatprep.subr.mxu0 0.0
    %466 = vmatpush1.msra.mxu0 %v442
    %467 = vmatprep.subr.mxu0 0.0
    %468 = vmatpush1.msra.mxu0 %v443
    %469 = vmatprep.subr.mxu0 0.0
    %470 = vmatpush1.msra.mxu0 %v444
    %471 = vmatprep.subr.mxu0 0.0
    %472 = vmatpush1.msra.mxu0 %v445
    %473 = vmatprep.subr.mxu0 0.0
    %474 = vmatpush1.msra.mxu0 0.0
    %475 = vmatprep.subr.mxu0 0.0
    %476 = vmatpush1.msra.mxu0 0.0
    %477 = vmatprep.subr.mxu0 0.0
    %478 = vmatpush1.msra.mxu0 0.0
    %479 = vmatprep.subr.mxu0 0.0
    %480 = vmatpush1.msra.mxu0 0.0
    %481 = vmatprep.subr.mxu0 0.0
    %482 = vmatpush1.msra.mxu0 0.0
    %483 = vmatprep.subr.mxu0 0.0
    %484 = vmatpush1.msra.mxu0 0.0
    %485 = vmatprep.subr.mxu0 0.0
    %486 = vmatpush1.msra.mxu0 0.0
    %487 = vmatprep.subr.mxu0 0.0
    %488 = vmatpush1.msra.mxu0 0.0
    %489 = vmatprep.subr.mxu0 0.0
    %490 = vmatpush1.msra.mxu0 0.0
    %491 = vmatprep.subr.mxu0 0.0
    %492 = vmatpush1.msra.mxu0 0.0
    %493 = vmatprep.subr.mxu0 0.0
    %494 = vmatpush1.msra.mxu0 0.0
    %495 = vmatprep.subr.mxu0 0.0
    %496 = vmatpush1.msra.mxu0 0.0
    %497 = vmatprep.subr.mxu0 0.0
    %498 = vmatpush1.msra.mxu0 0.0
    %499 = vmatprep.subr.mxu0 0.0
    %500 = vmatpush1.msra.mxu0 0.0
    %501 = vmatprep.subr.mxu0 0.0
    %502 = vmatpush1.msra.mxu0 0.0
    %503 = vmatprep.subr.mxu0 0.0
    %504 = vmatpush1.msra.mxu0 0.0
    %505 = vmatprep.subr.mxu0 0.0
    %506 = vmatpush1.msra.mxu0 0.0
    %507 = vmatprep.subr.mxu0 0.0
    %508 = vmatpush1.msra.mxu0 0.0
    %509 = vmatprep.subr.mxu0 0.0
    %510 = vmatpush1.msra.mxu0 0.0
    %511 = vmatprep.subr.mxu0 0.0
    %512 = vmatpush1.msra.mxu0 0.0
    %513 = vmatprep.subr.mxu0 0.0
    %514 = vmatpush1.msra.mxu0 0.0
    %515 = vmatprep.subr.mxu0 0.0
    %516 = vmatpush1.msra.mxu0 0.0
    %517 = vmatprep.subr.mxu0 0.0
    %518 = vmatpush1.msra.mxu0 0.0
    %519 = vmatprep.subr.mxu0 0.0
    %520 = vmatpush1.msra.mxu0 0.0
    %521 = vmatprep.mubr.f32.mxu0 0.0
    %522 = vmatmul.mubr.f32.gmra.mrb[0].mxu0 %v455
    %v523 = vpop.f32.mrb[0].mxu0
    %v524 = vadd.f32 %v451, %v523
    %v525 = vpop.f32.mrb[0].mxu0
    %526 = vdwg.mxu0
    %v527 = vld [vmem:[%s15] sm:$0x1]
    %v528 = vld [vmem:[%s17] sm:$0x1]
    %s529 = sld [smem:[#allocation16 + $0x1]]
    %vm530 = vcmask 125952
    %v531 = vsel %vm530, %v524, 0.0
    %v532 = vrot.slane %v531, 4
    %v533 = vadd.f32 %v531, %v532
    %v534 = vrot.slane %v533, 2
    %v535 = vadd.f32 %v533, %v534
    %v536 = vrot.slane %v535, 1
    %v537 = vadd.f32 %v535, %v536
    %v538 = vmul.f32 %v537, %v405
    %v539 = vsub.f32 %v524, %v538
    %v540 = vmul.f32 %v539, %v539
    %v541 = vsel %vm530, %v540, 0.0
    %v542 = vrot.slane %v541, 4
    %v543 = vadd.f32 %v541, %v542
    %v544 = vrot.slane %v543, 2
    %v545 = vadd.f32 %v543, %v544
    %v546 = vrot.slane %v545, 1
    %v547 = vadd.f32 %v545, %v546
    %v548 = vmul.f32 %v547, %v405
    %v549 = vadd.f32 %v548, 1e-05
    %v550 = vrsqrt.pop %v549
    %v551 = vmul.f32 %v539, %v550
    %v553 = vlaneseq
    %v554 = vshrl.u32 %v553, 7
    %v555 = vsub.s32 0, %v554
    %v556 = vrot.slane %v527, %v555
    %v558 = vmul.f32 %v556, %v551
    %v560 = vlaneseq
    %v561 = vshrl.u32 %v560, 7
    %v562 = vsub.s32 0, %v561
    %v563 = vrot.slane %v528, %v562
    %v565 = vadd.f32 %v558, %v563
    %vm566 = vcmp.ge.f32.partialorder %v565, 0.0
    %v567 = vstv %s529
    %v568 = vmul.f32 %v567, %v565
    %v569 = vsel %vm566, %v565, %v568
    %v570 = vld [vmem:[%s19] sm:$0xff]
    %v571 = vld [vmem:[%s19 + $0x8] sm:$0xff]
    %v572 = vld [vmem:[%s19 + $0x10] sm:$0xff]
    %v573 = vld [vmem:[%s21] sm:$0x1]
    %v575 = vlaneseq
    %v576 = vshrl.u32 %v575, 7
    %v577 = vsub.s32 0, %v576
    %v578 = vrot.slane %v573, %v577
    %580 = vrot.lane.b32.xlu0 %v308, 40
    %v581 = vpop.permute.xlu0 %580
    %vm582 = vcmask 195584
    %v583 = vsel %vm582, %v581, 0
    %585 = vmatprep.subr.mxu0 0.0
    %586 = vmatpush1.msra.mxu0 %v570
    %587 = vmatprep.subr.mxu0 0.0
    %588 = vmatpush1.msra.mxu0 %v571
    %589 = vmatprep.subr.mxu0 0.0
    %590 = vmatpush1.msra.mxu0 %v572
    %591 = vmatprep.subr.mxu0 0.0
    %592 = vmatpush1.msra.mxu0 0.0
    %593 = vmatprep.subr.mxu0 0.0
    %594 = vmatpush1.msra.mxu0 0.0
    %595 = vmatprep.subr.mxu0 0.0
    %596 = vmatpush1.msra.mxu0 0.0
    %597 = vmatprep.subr.mxu0 0.0
    %598 = vmatpush1.msra.mxu0 0.0
    %599 = vmatprep.subr.mxu0 0.0
    %600 = vmatpush1.msra.mxu0 0.0
    %601 = vmatprep.subr.mxu0 0.0
    %602 = vmatpush1.msra.mxu0 0.0
    %603 = vmatprep.subr.mxu0 0.0
    %604 = vmatpush1.msra.mxu0 0.0
    %605 = vmatprep.subr.mxu0 0.0
    %606 = vmatpush1.msra.mxu0 0.0
    %607 = vmatprep.subr.mxu0 0.0
    %608 = vmatpush1.msra.mxu0 0.0
    %609 = vmatprep.subr.mxu0 0.0
    %610 = vmatpush1.msra.mxu0 0.0
    %611 = vmatprep.subr.mxu0 0.0
    %612 = vmatpush1.msra.mxu0 0.0
    %613 = vmatprep.subr.mxu0 0.0
    %614 = vmatpush1.msra.mxu0 0.0
    %615 = vmatprep.subr.mxu0 0.0
    %616 = vmatpush1.msra.mxu0 0.0
    %617 = vmatprep.subr.mxu0 0.0
    %618 = vmatpush1.msra.mxu0 0.0
    %619 = vmatprep.subr.mxu0 0.0
    %620 = vmatpush1.msra.mxu0 0.0
    %621 = vmatprep.subr.mxu0 0.0
    %622 = vmatpush1.msra.mxu0 0.0
    %623 = vmatprep.subr.mxu0 0.0
    %624 = vmatpush1.msra.mxu0 0.0
    %625 = vmatprep.subr.mxu0 0.0
    %626 = vmatpush1.msra.mxu0 0.0
    %627 = vmatprep.subr.mxu0 0.0
    %628 = vmatpush1.msra.mxu0 0.0
    %629 = vmatprep.subr.mxu0 0.0
    %630 = vmatpush1.msra.mxu0 0.0
    %631 = vmatprep.subr.mxu0 0.0
    %632 = vmatpush1.msra.mxu0 0.0
    %633 = vmatprep.subr.mxu0 0.0
    %634 = vmatpush1.msra.mxu0 0.0
    %635 = vmatprep.subr.mxu0 0.0
    %636 = vmatpush1.msra.mxu0 0.0
    %637 = vmatprep.subr.mxu0 0.0
    %638 = vmatpush1.msra.mxu0 0.0
    %639 = vmatprep.subr.mxu0 0.0
    %640 = vmatpush1.msra.mxu0 0.0
    %641 = vmatprep.subr.mxu0 0.0
    %642 = vmatpush1.msra.mxu0 0.0
    %643 = vmatprep.subr.mxu0 0.0
    %644 = vmatpush1.msra.mxu0 0.0
    %645 = vmatprep.subr.mxu0 0.0
    %646 = vmatpush1.msra.mxu0 0.0
    %647 = vmatprep.subr.mxu0 0.0
    %648 = vmatpush1.msra.mxu0 0.0
    %649 = vmatprep.mubr.f32.mxu0 0.0
    %650 = vmatmul.mubr.f32.gmra.mrb[0].mxu0 %v583
    %v651 = vpop.f32.mrb[0].mxu0
    %v652 = vadd.f32 %v578, %v651
    %v653 = vpop.f32.mrb[0].mxu0
    %654 = vdwg.mxu0
    %v655 = vld [vmem:[%s23] sm:$0x1]
    %v656 = vld [vmem:[%s25] sm:$0x1]
    %s657 = sld [smem:[#allocation16 + $0x2]]
    %v658 = vsel %vm397, %v652, 0.0
    %v659 = vrot.slane %v658, 4
    %v660 = vadd.f32 %v658, %v659
    %v661 = vrot.slane %v660, 2
    %v662 = vadd.f32 %v660, %v661
    %v663 = vrot.slane %v662, 1
    %v664 = vadd.f32 %v662, %v663
    %v665 = vmul.f32 %v664, %v405
    %v666 = vsub.f32 %v652, %v665
    %v667 = vmul.f32 %v666, %v666
    %v668 = vsel %vm397, %v667, 0.0
    %v669 = vrot.slane %v668, 4
    %v670 = vadd.f32 %v668, %v669
    %v671 = vrot.slane %v670, 2
    %v672 = vadd.f32 %v670, %v671
    %v673 = vrot.slane %v672, 1
    %v674 = vadd.f32 %v672, %v673
    %v675 = vmul.f32 %v674, %v405
    %v676 = vadd.f32 %v675, 1e-05
    %v677 = vrsqrt.pop %v676
    %v678 = vmul.f32 %v666, %v677
    %v680 = vlaneseq
    %v681 = vshrl.u32 %v680, 7
    %v682 = vsub.s32 0, %v681
    %v683 = vrot.slane %v655, %v682
    %v685 = vmul.f32 %v683, %v678
    %v687 = vlaneseq
    %v688 = vshrl.u32 %v687, 7
    %v689 = vsub.s32 0, %v688
    %v690 = vrot.slane %v656, %v689
    %v692 = vadd.f32 %v685, %v690
    %vm693 = vcmp.ge.f32.partialorder %v692, 0.0
    %v694 = vstv %s657
    %v695 = vmul.f32 %v694, %v692
    %v696 = vsel %vm693, %v692, %v695
    %v697 = vld [vmem:[%s27] sm:$0xff]
    %v698 = vld [vmem:[%s27 + $0x8] sm:$0xff]
    %v699 = vld [vmem:[%s27 + $0x10] sm:$0xff]
    %v700 = vld [vmem:[%s27 + $0x18] sm:$0xff]
    %v701 = vld [vmem:[%s27 + $0x20] sm:$0xff]
    %v702 = vld [vmem:[%s27 + $0x28] sm:$0xff]
    %v703 = vld [vmem:[%s27 + $0x30] sm:$0xff]
    %v704 = vld [vmem:[%s27 + $0x38] sm:$0xff]
    %v705 = vld [vmem:[%s29] sm:$0x1]
    %v707 = vlaneseq
    %v708 = vshrl.u32 %v707, 7
    %v709 = vsub.s32 0, %v708
    %v710 = vrot.slane %v705, %v709
    %v713 = vsel %vm453, %v696, 0
    %715 = vmatprep.subr.mxu0 0.0
    %716 = vmatpush1.msra.mxu0 %v697
    %717 = vmatprep.subr.mxu0 0.0
    %718 = vmatpush1.msra.mxu0 %v698
    %719 = vmatprep.subr.mxu0 0.0
    %720 = vmatpush1.msra.mxu0 %v699
    %721 = vmatprep.subr.mxu0 0.0
    %722 = vmatpush1.msra.mxu0 %v700
    %723 = vmatprep.subr.mxu0 0.0
    %724 = vmatpush1.msra.mxu0 %v701
    %725 = vmatprep.subr.mxu0 0.0
    %726 = vmatpush1.msra.mxu0 %v702
    %727 = vmatprep.subr.mxu0 0.0
    %728 = vmatpush1.msra.mxu0 %v703
    %729 = vmatprep.subr.mxu0 0.0
    %730 = vmatpush1.msra.mxu0 %v704
    %731 = vmatprep.subr.mxu0 0.0
    %732 = vmatpush1.msra.mxu0 0.0
    %733 = vmatprep.subr.mxu0 0.0
    %734 = vmatpush1.msra.mxu0 0.0
    %735 = vmatprep.subr.mxu0 0.0
    %736 = vmatpush1.msra.mxu0 0.0
    %737 = vmatprep.subr.mxu0 0.0
    %738 = vmatpush1.msra.mxu0 0.0
    %739 = vmatprep.subr.mxu0 0.0
    %740 = vmatpush1.msra.mxu0 0.0
    %741 = vmatprep.subr.mxu0 0.0
    %742 = vmatpush1.msra.mxu0 0.0
    %743 = vmatprep.subr.mxu0 0.0
    %744 = vmatpush1.msra.mxu0 0.0
    %745 = vmatprep.subr.mxu0 0.0
    %746 = vmatpush1.msra.mxu0 0.0
    %747 = vmatprep.subr.mxu0 0.0
    %748 = vmatpush1.msra.mxu0 0.0
    %749 = vmatprep.subr.mxu0 0.0
    %750 = vmatpush1.msra.mxu0 0.0
    %751 = vmatprep.subr.mxu0 0.0
    %752 = vmatpush1.msra.mxu0 0.0
    %753 = vmatprep.subr.mxu0 0.0
    %754 = vmatpush1.msra.mxu0 0.0
    %755 = vmatprep.subr.mxu0 0.0
    %756 = vmatpush1.msra.mxu0 0.0
    %757 = vmatprep.subr.mxu0 0.0
    %758 = vmatpush1.msra.mxu0 0.0
    %759 = vmatprep.subr.mxu0 0.0
    %760 = vmatpush1.msra.mxu0 0.0
    %761 = vmatprep.subr.mxu0 0.0
    %762 = vmatpush1.msra.mxu0 0.0
    %763 = vmatprep.subr.mxu0 0.0
    %764 = vmatpush1.msra.mxu0 0.0
    %765 = vmatprep.subr.mxu0 0.0
    %766 = vmatpush1.msra.mxu0 0.0
    %767 = vmatprep.subr.mxu0 0.0
    %768 = vmatpush1.msra.mxu0 0.0
    %769 = vmatprep.subr.mxu0 0.0
    %770 = vmatpush1.msra.mxu0 0.0
    %771 = vmatprep.subr.mxu0 0.0
    %772 = vmatpush1.msra.mxu0 0.0
    %773 = vmatprep.subr.mxu0 0.0
    %774 = vmatpush1.msra.mxu0 0.0
    %775 = vmatprep.subr.mxu0 0.0
    %776 = vmatpush1.msra.mxu0 0.0
    %777 = vmatprep.subr.mxu0 0.0
    %778 = vmatpush1.msra.mxu0 0.0
    %779 = vmatprep.mubr.f32.mxu0 0.0
    %780 = vmatmul.mubr.f32.gmra.mrb[0].mxu0 %v713
    %v781 = vpop.f32.mrb[0].mxu0
    %v782 = vadd.f32 %v710, %v781
    %v783 = vpop.f32.mrb[0].mxu0
    %784 = vdwg.mxu0
    %v785 = vld [vmem:[%s31] sm:$0x1]
    %v786 = vld [vmem:[%s33] sm:$0x1]
    %s787 = sld [smem:[#allocation16 + $0x3]]
    %v788 = vsel %vm530, %v782, 0.0
    %v789 = vrot.slane %v788, 4
    %v790 = vadd.f32 %v788, %v789
    %v791 = vrot.slane %v790, 2
    %v792 = vadd.f32 %v790, %v791
    %v793 = vrot.slane %v792, 1
    %v794 = vadd.f32 %v792, %v793
    %v795 = vmul.f32 %v794, %v405
    %v796 = vsub.f32 %v782, %v795
    %v797 = vmul.f32 %v796, %v796
    %v798 = vsel %vm530, %v797, 0.0
    %v799 = vrot.slane %v798, 4
    %v800 = vadd.f32 %v798, %v799
    %v801 = vrot.slane %v800, 2
    %v802 = vadd.f32 %v800, %v801
    %v803 = vrot.slane %v802, 1
    %v804 = vadd.f32 %v802, %v803
    %v805 = vmul.f32 %v804, %v405
    %v806 = vadd.f32 %v805, 1e-05
    %v807 = vrsqrt.pop %v806
    %v808 = vmul.f32 %v796, %v807
    %v810 = vlaneseq
    %v811 = vshrl.u32 %v810, 7
    %v812 = vsub.s32 0, %v811
    %v813 = vrot.slane %v785, %v812
    %v815 = vmul.f32 %v813, %v808
    %v817 = vlaneseq
    %v818 = vshrl.u32 %v817, 7
    %v819 = vsub.s32 0, %v818
    %v820 = vrot.slane %v786, %v819
    %v822 = vadd.f32 %v815, %v820
    %vm823 = vcmp.ge.f32.partialorder %v822, 0.0
    %v824 = vstv %s787
    %v825 = vmul.f32 %v824, %v822
    %v826 = vsel %vm823, %v822, %v825
    %v827 = vld [vmem:[%s35] sm:$0xff]
    %v828 = vld [vmem:[%s35 + $0x8] sm:$0xff]
    %v829 = vld [vmem:[%s35 + $0x10] sm:$0xff]
    %v830 = vld [vmem:[%s35 + $0x18] sm:$0xff]
    %v831 = vld [vmem:[%s35 + $0x20] sm:$0xff]
    %v832 = vld [vmem:[%s35 + $0x28] sm:$0xff]
    %v833 = vld [vmem:[%s35 + $0x30] sm:$0xff]
    %v834 = vld [vmem:[%s37] sm:$0x1]
    %v836 = vlaneseq
    %v837 = vshrl.u32 %v836, 7
    %v838 = vsub.s32 0, %v837
    %v839 = vrot.slane %v834, %v838
    %841 = vrot.lane.b32.xlu0 %v308, 96
    %v842 = vpop.permute.xlu0 %841
    %vm843 = vcmask 457728
    %v844 = vsel %vm843, %v842, 0
    %846 = vmatprep.subr.mxu0 0.0
    %847 = vmatpush1.msra.mxu0 %v827
    %848 = vmatprep.subr.mxu0 0.0
    %849 = vmatpush1.msra.mxu0 %v828
    %850 = vmatprep.subr.mxu0 0.0
    %851 = vmatpush1.msra.mxu0 %v829
    %852 = vmatprep.subr.mxu0 0.0
    %853 = vmatpush1.msra.mxu0 %v830
    %854 = vmatprep.subr.mxu0 0.0
    %855 = vmatpush1.msra.mxu0 %v831
    %856 = vmatprep.subr.mxu0 0.0
    %857 = vmatpush1.msra.mxu0 %v832
    %858 = vmatprep.subr.mxu0 0.0
    %859 = vmatpush1.msra.mxu0 %v833
    %860 = vmatprep.subr.mxu0 0.0
    %861 = vmatpush1.msra.mxu0 0.0
    %862 = vmatprep.subr.mxu0 0.0
    %863 = vmatpush1.msra.mxu0 0.0
    %864 = vmatprep.subr.mxu0 0.0
    %865 = vmatpush1.msra.mxu0 0.0
    %866 = vmatprep.subr.mxu0 0.0
    %867 = vmatpush1.msra.mxu0 0.0
    %868 = vmatprep.subr.mxu0 0.0
    %869 = vmatpush1.msra.mxu0 0.0
    %870 = vmatprep.subr.mxu0 0.0
    %871 = vmatpush1.msra.mxu0 0.0
    %872 = vmatprep.subr.mxu0 0.0
    %873 = vmatpush1.msra.mxu0 0.0
    %874 = vmatprep.subr.mxu0 0.0
    %875 = vmatpush1.msra.mxu0 0.0
    %876 = vmatprep.subr.mxu0 0.0
    %877 = vmatpush1.msra.mxu0 0.0
    %878 = vmatprep.subr.mxu0 0.0
    %879 = vmatpush1.msra.mxu0 0.0
    %880 = vmatprep.subr.mxu0 0.0
    %881 = vmatpush1.msra.mxu0 0.0
    %882 = vmatprep.subr.mxu0 0.0
    %883 = vmatpush1.msra.mxu0 0.0
    %884 = vmatprep.subr.mxu0 0.0
    %885 = vmatpush1.msra.mxu0 0.0
    %886 = vmatprep.subr.mxu0 0.0
    %887 = vmatpush1.msra.mxu0 0.0
    %888 = vmatprep.subr.mxu0 0.0
    %889 = vmatpush1.msra.mxu0 0.0
    %890 = vmatprep.subr.mxu0 0.0
    %891 = vmatpush1.msra.mxu0 0.0
    %892 = vmatprep.subr.mxu0 0.0
    %893 = vmatpush1.msra.mxu0 0.0
    %894 = vmatprep.subr.mxu0 0.0
    %895 = vmatpush1.msra.mxu0 0.0
    %896 = vmatprep.subr.mxu0 0.0
    %897 = vmatpush1.msra.mxu0 0.0
    %898 = vmatprep.subr.mxu0 0.0
    %899 = vmatpush1.msra.mxu0 0.0
    %900 = vmatprep.subr.mxu0 0.0
    %901 = vmatpush1.msra.mxu0 0.0
    %902 = vmatprep.subr.mxu0 0.0
    %903 = vmatpush1.msra.mxu0 0.0
    %904 = vmatprep.subr.mxu0 0.0
    %905 = vmatpush1.msra.mxu0 0.0
    %906 = vmatprep.subr.mxu0 0.0
    %907 = vmatpush1.msra.mxu0 0.0
    %908 = vmatprep.subr.mxu0 0.0
    %909 = vmatpush1.msra.mxu0 0.0
    %910 = vmatprep.mubr.f32.mxu0 0.0
    %911 = vmatmul.mubr.f32.gmra.mrb[0].mxu0 %v844
    %v912 = vpop.f32.mrb[0].mxu0
    %v913 = vadd.f32 %v839, %v912
    %v914 = vpop.f32.mrb[0].mxu0
    %915 = vdwg.mxu0
    %v916 = vld [vmem:[%s39] sm:$0x1]
    %v917 = vld [vmem:[%s41] sm:$0x1]
    %v918 = vld [vmem:[%s43] sm:$0x1]
    %vm919 = vcmask 781312
    %v920 = vsel %vm919, %v913, 0.0
    %v921 = vrot.slane %v920, 4
    %v922 = vadd.f32 %v920, %v921
    %v923 = vrot.slane %v922, 2
    %v924 = vadd.f32 %v922, %v923
    %v925 = vrot.slane %v924, 1
    %v926 = vadd.f32 %v924, %v925
    %v927 = vmul.f32 %v926, %v405
    %v928 = vsub.f32 %v913, %v927
    %v929 = vmul.f32 %v928, %v928
    %v930 = vsel %vm919, %v929, 0.0
    %v931 = vrot.slane %v930, 4
    %v932 = vadd.f32 %v930, %v931
    %v933 = vrot.slane %v932, 2
    %v934 = vadd.f32 %v932, %v933
    %v935 = vrot.slane %v934, 1
    %v936 = vadd.f32 %v934, %v935
    %v937 = vmul.f32 %v936, %v405
    %v938 = vadd.f32 %v937, 1e-05
    %v939 = vrsqrt.pop %v938
    %v940 = vmul.f32 %v928, %v939
    %v942 = vlaneseq
    %v943 = vshrl.u32 %v942, 7
    %v944 = vsub.s32 0, %v943
    %v945 = vrot.slane %v916, %v944
    %v947 = vmul.f32 %v945, %v940
    %v949 = vlaneseq
    %v950 = vshrl.u32 %v949, 7
    %v951 = vsub.s32 0, %v950
    %v952 = vrot.slane %v917, %v951
    %v954 = vadd.f32 %v947, %v952
    %vm955 = vcmp.ge.f32.partialorder %v954, 0.0
    %v957 = vlaneseq
    %v958 = vshrl.u32 %v957, 7
    %v959 = vsub.s32 0, %v958
    %v960 = vrot.slane %v918, %v959
    %v962 = vmul.f32 %v960, %v954
    %v963 = vsel %vm955, %v954, %v962
    %v964 = vld [vmem:[%s45] sm:$0xff]
    %v965 = vld [vmem:[%s45 + $0x8] sm:$0xff]
    %v966 = vld [vmem:[%s45 + $0x10] sm:$0xff]
    %v967 = vld [vmem:[%s45 + $0x18] sm:$0xff]
    %v968 = vld [vmem:[%s45 + $0x20] sm:$0xff]
    %v969 = vld [vmem:[%s45 + $0x28] sm:$0xff]
    %v970 = vld [vmem:[%s45 + $0x30] sm:$0xff]
    %v971 = vld [vmem:[%s45 + $0x38] sm:$0xff]
    %v972 = vld [vmem:[%s45 + $0x40] sm:$0xff]
    %v973 = vld [vmem:[%s45 + $0x48] sm:$0xff]
    %v974 = vld [vmem:[%s45 + $0x50] sm:$0xff]
    %v975 = vld [vmem:[%s45 + $0x58] sm:$0xff]
    %v976 = vld [vmem:[%s47] sm:$0x1]
    %v978 = vlaneseq
    %v979 = vshrl.u32 %v978, 7
    %v980 = vsub.s32 0, %v979
    %v981 = vrot.slane %v976, %v980
    %vm983 = vcmask 785408
    %v985 = vsel %vm983, %v963, 0
    %987 = vmatprep.subr.mxu0 0.0
    %988 = vmatpush1.msra.mxu0 %v964
    %989 = vmatprep.subr.mxu0 0.0
    %990 = vmatpush1.msra.mxu0 %v965
    %991 = vmatprep.subr.mxu0 0.0
    %992 = vmatpush1.msra.mxu0 %v966
    %993 = vmatprep.subr.mxu0 0.0
    %994 = vmatpush1.msra.mxu0 %v967
    %995 = vmatprep.subr.mxu0 0.0
    %996 = vmatpush1.msra.mxu0 %v968
    %997 = vmatprep.subr.mxu0 0.0
    %998 = vmatpush1.msra.mxu0 %v969
    %999 = vmatprep.subr.mxu0 0.0
    %1000 = vmatpush1.msra.mxu0 %v970
    %1001 = vmatprep.subr.mxu0 0.0
    %1002 = vmatpush1.msra.mxu0 %v971
    %1003 = vmatprep.subr.mxu0 0.0
    %1004 = vmatpush1.msra.mxu0 %v972
    %1005 = vmatprep.subr.mxu0 0.0
    %1006 = vmatpush1.msra.mxu0 %v973
    %1007 = vmatprep.subr.mxu0 0.0
    %1008 = vmatpush1.msra.mxu0 %v974
    %1009 = vmatprep.subr.mxu0 0.0
    %1010 = vmatpush1.msra.mxu0 %v975
    %1011 = vmatprep.subr.mxu0 0.0
    %1012 = vmatpush1.msra.mxu0 0.0
    %1013 = vmatprep.subr.mxu0 0.0
    %1014 = vmatpush1.msra.mxu0 0.0
    %1015 = vmatprep.subr.mxu0 0.0
    %1016 = vmatpush1.msra.mxu0 0.0
    %1017 = vmatprep.subr.mxu0 0.0
    %1018 = vmatpush1.msra.mxu0 0.0
    %1019 = vmatprep.subr.mxu0 0.0
    %1020 = vmatpush1.msra.mxu0 0.0
    %1021 = vmatprep.subr.mxu0 0.0
    %1022 = vmatpush1.msra.mxu0 0.0
    %1023 = vmatprep.subr.mxu0 0.0
    %1024 = vmatpush1.msra.mxu0 0.0
    %1025 = vmatprep.subr.mxu0 0.0
    %1026 = vmatpush1.msra.mxu0 0.0
    %1027 = vmatprep.subr.mxu0 0.0
    %1028 = vmatpush1.msra.mxu0 0.0
    %1029 = vmatprep.subr.mxu0 0.0
    %1030 = vmatpush1.msra.mxu0 0.0
    %1031 = vmatprep.subr.mxu0 0.0
    %1032 = vmatpush1.msra.mxu0 0.0
    %1033 = vmatprep.subr.mxu0 0.0
    %1034 = vmatpush1.msra.mxu0 0.0
    %1035 = vmatprep.subr.mxu0 0.0
    %1036 = vmatpush1.msra.mxu0 0.0
    %1037 = vmatprep.subr.mxu0 0.0
    %1038 = vmatpush1.msra.mxu0 0.0
    %1039 = vmatprep.subr.mxu0 0.0
    %1040 = vmatpush1.msra.mxu0 0.0
    %1041 = vmatprep.subr.mxu0 0.0
    %1042 = vmatpush1.msra.mxu0 0.0
    %1043 = vmatprep.subr.mxu0 0.0
    %1044 = vmatpush1.msra.mxu0 0.0
    %1045 = vmatprep.subr.mxu0 0.0
    %1046 = vmatpush1.msra.mxu0 0.0
    %1047 = vmatprep.subr.mxu0 0.0
    %1048 = vmatpush1.msra.mxu0 0.0
    %1049 = vmatprep.subr.mxu0 0.0
    %1050 = vmatpush1.msra.mxu0 0.0
    %1051 = vmatprep.mubr.f32.mxu0 0.0
    %1052 = vmatmul.mubr.f32.gmra.mrb[0].mxu0 %v985
    %v1053 = vpop.f32.mrb[0].mxu0
    %v1054 = vadd.f32 %v981, %v1053
    %v1055 = vpop.f32.mrb[0].mxu0
    %1056 = vdwg.mxu0
    %v1057 = vld [vmem:[%s49] sm:$0x1]
    %v1058 = vld [vmem:[%s51] sm:$0x1]
    %v1059 = vld [vmem:[%s53] sm:$0x1]
    %vm1060 = vcmask 388096
    %v1061 = vsel %vm1060, %v1054, 0.0
    %v1062 = vrot.slane %v1061, 4
    %v1063 = vadd.f32 %v1061, %v1062
    %v1064 = vrot.slane %v1063, 2
    %v1065 = vadd.f32 %v1063, %v1064
    %v1066 = vrot.slane %v1065, 1
    %v1067 = vadd.f32 %v1065, %v1066
    %v1068 = vmul.f32 %v1067, %v405
    %v1069 = vsub.f32 %v1054, %v1068
    %v1070 = vmul.f32 %v1069, %v1069
    %v1071 = vsel %vm1060, %v1070, 0.0
    %v1072 = vrot.slane %v1071, 4
    %v1073 = vadd.f32 %v1071, %v1072
    %v1074 = vrot.slane %v1073, 2
    %v1075 = vadd.f32 %v1073, %v1074
    %v1076 = vrot.slane %v1075, 1
    %v1077 = vadd.f32 %v1075, %v1076
    %v1078 = vmul.f32 %v1077, %v405
    %v1079 = vadd.f32 %v1078, 1e-05
    %v1080 = vrsqrt.pop %v1079
    %v1081 = vmul.f32 %v1069, %v1080
    %v1083 = vlaneseq
    %v1084 = vshrl.u32 %v1083, 7
    %v1085 = vsub.s32 0, %v1084
    %v1086 = vrot.slane %v1057, %v1085
    %v1088 = vmul.f32 %v1086, %v1081
    %v1090 = vlaneseq
    %v1091 = vshrl.u32 %v1090, 7
    %v1092 = vsub.s32 0, %v1091
    %v1093 = vrot.slane %v1058, %v1092
    %v1095 = vadd.f32 %v1088, %v1093
    %vm1096 = vcmp.ge.f32.partialorder %v1095, 0.0
    %v1098 = vlaneseq
    %v1099 = vshrl.u32 %v1098, 7
    %v1100 = vsub.s32 0, %v1099
    %v1101 = vrot.slane %v1059, %v1100
    %v1103 = vmul.f32 %v1101, %v1095
    %v1104 = vsel %vm1096, %v1095, %v1103
    %v1105 = vld [vmem:[%s55] sm:$0xff]
    %v1106 = vld [vmem:[%s55 + $0x8] sm:$0xff]
    %v1107 = vld [vmem:[%s55 + $0x10] sm:$0xff]
    %v1108 = vld [vmem:[%s55 + $0x18] sm:$0xff]
    %v1109 = vld [vmem:[%s55 + $0x20] sm:$0xff]
    %v1110 = vld [vmem:[%s55 + $0x28] sm:$0xff]
    %v1111 = vld [vmem:[%s57] sm:$0x1]
    %v1113 = vlaneseq
    %v1114 = vshrl.u32 %v1113, 7
    %v1115 = vsub.s32 0, %v1114
    %v1116 = vrot.slane %v1111, %v1115
    %vm1118 = vcmask 392192
    %v1120 = vsel %vm1118, %v1104, 0
    %1122 = vmatprep.subr.mxu0 0.0
    %1123 = vmatpush1.msra.mxu0 %v1105
    %1124 = vmatprep.subr.mxu0 0.0
    %1125 = vmatpush1.msra.mxu0 %v1106
    %1126 = vmatprep.subr.mxu0 0.0
    %1127 = vmatpush1.msra.mxu0 %v1107
    %1128 = vmatprep.subr.mxu0 0.0
    %1129 = vmatpush1.msra.mxu0 %v1108
    %1130 = vmatprep.subr.mxu0 0.0
    %1131 = vmatpush1.msra.mxu0 %v1109
    %1132 = vmatprep.subr.mxu0 0.0
    %1133 = vmatpush1.msra.mxu0 %v1110
    %1134 = vmatprep.subr.mxu0 0.0
    %1135 = vmatpush1.msra.mxu0 0.0
    %1136 = vmatprep.subr.mxu0 0.0
    %1137 = vmatpush1.msra.mxu0 0.0
    %1138 = vmatprep.subr.mxu0 0.0
    %1139 = vmatpush1.msra.mxu0 0.0
    %1140 = vmatprep.subr.mxu0 0.0
    %1141 = vmatpush1.msra.mxu0 0.0
    %1142 = vmatprep.subr.mxu0 0.0
    %1143 = vmatpush1.msra.mxu0 0.0
    %1144 = vmatprep.subr.mxu0 0.0
    %1145 = vmatpush1.msra.mxu0 0.0
    %1146 = vmatprep.subr.mxu0 0.0
    %1147 = vmatpush1.msra.mxu0 0.0
    %1148 = vmatprep.subr.mxu0 0.0
    %1149 = vmatpush1.msra.mxu0 0.0
    %1150 = vmatprep.subr.mxu0 0.0
    %1151 = vmatpush1.msra.mxu0 0.0
    %1152 = vmatprep.subr.mxu0 0.0
    %1153 = vmatpush1.msra.mxu0 0.0
    %1154 = vmatprep.subr.mxu0 0.0
    %1155 = vmatpush1.msra.mxu0 0.0
    %1156 = vmatprep.subr.mxu0 0.0
    %1157 = vmatpush1.msra.mxu0 0.0
    %1158 = vmatprep.subr.mxu0 0.0
    %1159 = vmatpush1.msra.mxu0 0.0
    %1160 = vmatprep.subr.mxu0 0.0
    %1161 = vmatpush1.msra.mxu0 0.0
    %1162 = vmatprep.subr.mxu0 0.0
    %1163 = vmatpush1.msra.mxu0 0.0
    %1164 = vmatprep.subr.mxu0 0.0
    %1165 = vmatpush1.msra.mxu0 0.0
    %1166 = vmatprep.subr.mxu0 0.0
    %1167 = vmatpush1.msra.mxu0 0.0
    %1168 = vmatprep.subr.mxu0 0.0
    %1169 = vmatpush1.msra.mxu0 0.0
    %1170 = vmatprep.subr.mxu0 0.0
    %1171 = vmatpush1.msra.mxu0 0.0
    %1172 = vmatprep.subr.mxu0 0.0
    %1173 = vmatpush1.msra.mxu0 0.0
    %1174 = vmatprep.subr.mxu0 0.0
    %1175 = vmatpush1.msra.mxu0 0.0
    %1176 = vmatprep.subr.mxu0 0.0
    %1177 = vmatpush1.msra.mxu0 0.0
    %1178 = vmatprep.subr.mxu0 0.0
    %1179 = vmatpush1.msra.mxu0 0.0
    %1180 = vmatprep.subr.mxu0 0.0
    %1181 = vmatpush1.msra.mxu0 0.0
    %1182 = vmatprep.subr.mxu0 0.0
    %1183 = vmatpush1.msra.mxu0 0.0
    %1184 = vmatprep.subr.mxu0 0.0
    %1185 = vmatpush1.msra.mxu0 0.0
    %1186 = vmatprep.mubr.f32.mxu0 0.0
    %1187 = vmatmul.mubr.f32.gmra.mrb[0].mxu0 %v1120
    %v1188 = vpop.f32.mrb[0].mxu0
    %v1189 = vadd.f32 %v1116, %v1188
    %v1190 = vpop.f32.mrb[0].mxu0
    %1191 = vdwg.mxu0
    %v1192 = vld [vmem:[%s59] sm:$0x1]
    %v1193 = vld [vmem:[%s61] sm:$0x1]
    %s1194 = sld [smem:[#allocation16 + $0x4]]
    %v1195 = vsel %vm530, %v1189, 0.0
    %v1196 = vrot.slane %v1195, 4
    %v1197 = vadd.f32 %v1195, %v1196
    %v1198 = vrot.slane %v1197, 2
    %v1199 = vadd.f32 %v1197, %v1198
    %v1200 = vrot.slane %v1199, 1
    %v1201 = vadd.f32 %v1199, %v1200
    %v1202 = vmul.f32 %v1201, %v405
    %v1203 = vsub.f32 %v1189, %v1202
    %v1204 = vmul.f32 %v1203, %v1203
    %v1205 = vsel %vm530, %v1204, 0.0
    %v1206 = vrot.slane %v1205, 4
    %v1207 = vadd.f32 %v1205, %v1206
    %v1208 = vrot.slane %v1207, 2
    %v1209 = vadd.f32 %v1207, %v1208
    %v1210 = vrot.slane %v1209, 1
    %v1211 = vadd.f32 %v1209, %v1210
    %v1212 = vmul.f32 %v1211, %v405
    %v1213 = vadd.f32 %v1212, 1e-05
    %v1214 = vrsqrt.pop %v1213
    %v1215 = vmul.f32 %v1203, %v1214
    %v1217 = vlaneseq
    %v1218 = vshrl.u32 %v1217, 7
    %v1219 = vsub.s32 0, %v1218
    %v1220 = vrot.slane %v1192, %v1219
    %v1222 = vmul.f32 %v1220, %v1215
    %v1224 = vlaneseq
    %v1225 = vshrl.u32 %v1224, 7
    %v1226 = vsub.s32 0, %v1225
    %v1227 = vrot.slane %v1193, %v1226
    %v1229 = vadd.f32 %v1222, %v1227
    %vm1230 = vcmp.ge.f32.partialorder %v1229, 0.0
    %v1231 = vstv %s1194
    %v1232 = vmul.f32 %v1231, %v1229
    %v1233 = vsel %vm1230, %v1229, %v1232
    %v1234 = vmul.f32 %v826, 0.3
    %v1235 = vadd.f32 %v1233, %v1234
    %v1237 = vrot.slane %v1235, 4
    %vm1239 = vcmask 1043456
    %v1240 = vsel %vm1239, %v569, %v1237
    %v1241 = vld [vmem:[%s63] sm:$0xff]
    %v1242 = vld [vmem:[%s63 + $0x8] sm:$0xff]
    %v1243 = vld [vmem:[%s65] sm:$0x1]
    %v1245 = vlaneseq
    %v1246 = vshrl.u32 %v1245, 7
    %v1247 = vsub.s32 0, %v1246
    %v1248 = vrot.slane %v1243, %v1247
    %vm1250 = vcmask 130048
    %v1252 = vsel %vm1250, %v1240, 0
    %1254 = vmatprep.subr.mxu0 0.0
    %1255 = vmatpush1.msra.mxu0 %v1241
    %1256 = vmatprep.subr.mxu0 0.0
    %1257 = vmatpush1.msra.mxu0 %v1242
    %1258 = vmatprep.subr.mxu0 0.0
    %1259 = vmatpush1.msra.mxu0 0.0
    %1260 = vmatprep.subr.mxu0 0.0
    %1261 = vmatpush1.msra.mxu0 0.0
    %1262 = vmatprep.subr.mxu0 0.0
    %1263 = vmatpush1.msra.mxu0 0.0
    %1264 = vmatprep.subr.mxu0 0.0
    %1265 = vmatpush1.msra.mxu0 0.0
    %1266 = vmatprep.subr.mxu0 0.0
    %1267 = vmatpush1.msra.mxu0 0.0
    %1268 = vmatprep.subr.mxu0 0.0
    %1269 = vmatpush1.msra.mxu0 0.0
    %1270 = vmatprep.subr.mxu0 0.0
    %1271 = vmatpush1.msra.mxu0 0.0
    %1272 = vmatprep.subr.mxu0 0.0
    %1273 = vmatpush1.msra.mxu0 0.0
    %1274 = vmatprep.subr.mxu0 0.0
    %1275 = vmatpush1.msra.mxu0 0.0
    %1276 = vmatprep.subr.mxu0 0.0
    %1277 = vmatpush1.msra.mxu0 0.0
    %1278 = vmatprep.subr.mxu0 0.0
    %1279 = vmatpush1.msra.mxu0 0.0
    %1280 = vmatprep.subr.mxu0 0.0
    %1281 = vmatpush1.msra.mxu0 0.0
    %1282 = vmatprep.subr.mxu0 0.0
    %1283 = vmatpush1.msra.mxu0 0.0
    %1284 = vmatprep.subr.mxu0 0.0
    %1285 = vmatpush1.msra.mxu0 0.0
    %1286 = vmatprep.subr.mxu0 0.0
    %1287 = vmatpush1.msra.mxu0 0.0
    %1288 = vmatprep.subr.mxu0 0.0
    %1289 = vmatpush1.msra.mxu0 0.0
    %1290 = vmatprep.subr.mxu0 0.0
    %1291 = vmatpush1.msra.mxu0 0.0
    %1292 = vmatprep.subr.mxu0 0.0
    %1293 = vmatpush1.msra.mxu0 0.0
    %1294 = vmatprep.subr.mxu0 0.0
    %1295 = vmatpush1.msra.mxu0 0.0
    %1296 = vmatprep.subr.mxu0 0.0
    %1297 = vmatpush1.msra.mxu0 0.0
    %1298 = vmatprep.subr.mxu0 0.0
    %1299 = vmatpush1.msra.mxu0 0.0
    %1300 = vmatprep.subr.mxu0 0.0
    %1301 = vmatpush1.msra.mxu0 0.0
    %1302 = vmatprep.subr.mxu0 0.0
    %1303 = vmatpush1.msra.mxu0 0.0
    %1304 = vmatprep.subr.mxu0 0.0
    %1305 = vmatpush1.msra.mxu0 0.0
    %1306 = vmatprep.subr.mxu0 0.0
    %1307 = vmatpush1.msra.mxu0 0.0
    %1308 = vmatprep.subr.mxu0 0.0
    %1309 = vmatpush1.msra.mxu0 0.0
    %1310 = vmatprep.subr.mxu0 0.0
    %1311 = vmatpush1.msra.mxu0 0.0
    %1312 = vmatprep.subr.mxu0 0.0
    %1313 = vmatpush1.msra.mxu0 0.0
    %1314 = vmatprep.subr.mxu0 0.0
    %1315 = vmatpush1.msra.mxu0 0.0
    %1316 = vmatprep.subr.mxu0 0.0
    %1317 = vmatpush1.msra.mxu0 0.0
    %1318 = vmatprep.mubr.f32.mxu0 0.0
    %1319 = vmatmul.mubr.f32.gmra.mrb[0].mxu0 %v1252
    %v1320 = vpop.f32.mrb[0].mxu0
    %v1321 = vadd.f32 %v1248, %v1320
    %v1322 = vpop.f32.mrb[0].mxu0
    %1323 = vdwg.mxu0
    %v1324 = vld [vmem:[%s67] sm:$0x1]
    %v1325 = vld [vmem:[%s69] sm:$0x1]
    %s1326 = sld [smem:[#allocation16 + $0x5]]
    %v1327 = vsel %vm397, %v1321, 0.0
    %v1328 = vrot.slane %v1327, 4
    %v1329 = vadd.f32 %v1327, %v1328
    %v1330 = vrot.slane %v1329, 2
    %v1331 = vadd.f32 %v1329, %v1330
    %v1332 = vrot.slane %v1331, 1
    %v1333 = vadd.f32 %v1331, %v1332
    %v1334 = vmul.f32 %v1333, %v405
    %v1335 = vsub.f32 %v1321, %v1334
    %v1336 = vmul.f32 %v1335, %v1335
    %v1337 = vsel %vm397, %v1336, 0.0
    %v1338 = vrot.slane %v1337, 4
    %v1339 = vadd.f32 %v1337, %v1338
    %v1340 = vrot.slane %v1339, 2
    %v1341 = vadd.f32 %v1339, %v1340
    %v1342 = vrot.slane %v1341, 1
    %v1343 = vadd.f32 %v1341, %v1342
    %v1344 = vmul.f32 %v1343, %v405
    %v1345 = vadd.f32 %v1344, 1e-05
    %v1346 = vrsqrt.pop %v1345
    %v1347 = vmul.f32 %v1335, %v1346
    %v1349 = vrot.slane %v1321, 4
    %v1351 = vsel %vm397, %v1349, 0.0
    %v1352 = vrot.slane %v1351, 4
    %v1353 = vadd.f32 %v1351, %v1352
    %v1354 = vrot.slane %v1353, 2
    %v1355 = vadd.f32 %v1353, %v1354
    %v1356 = vrot.slane %v1355, 1
    %v1357 = vadd.f32 %v1355, %v1356
    %v1358 = vmul.f32 %v1357, %v405
    %v1359 = vsub.f32 %v1321, %v1358
    %v1360 = vmul.f32 %v1359, %v1359
    %v1362 = vrot.slane %v1360, 4
    %v1364 = vsel %vm397, %v1362, 0.0
    %v1365 = vrot.slane %v1364, 4
    %v1366 = vadd.f32 %v1364, %v1365
    %v1367 = vrot.slane %v1366, 2
    %v1368 = vadd.f32 %v1366, %v1367
    %v1369 = vrot.slane %v1368, 1
    %v1370 = vadd.f32 %v1368, %v1369
    %v1371 = vmul.f32 %v1370, %v405
    %v1372 = vadd.f32 %v1371, 1e-05
    %v1373 = vrsqrt.pop %v1372
    %v1374 = vmul.f32 %v1359, %v1373
    %v1375 = vsel %vm1239, %v1347, %v1374
    %v1377 = vlaneseq
    %v1378 = vshrl.u32 %v1377, 7
    %v1379 = vsub.s32 0, %v1378
    %v1380 = vrot.slane %v1324, %v1379
    %v1382 = vmul.f32 %v1380, %v1375
    %v1384 = vlaneseq
    %v1385 = vshrl.u32 %v1384, 7
    %v1386 = vsub.s32 0, %v1385
    %v1387 = vrot.slane %v1325, %v1386
    %v1389 = vadd.f32 %v1382, %v1387
    %vm1390 = vcmp.ge.f32.partialorder %v1389, 0.0
    %v1391 = vstv %s1326
    %v1392 = vmul.f32 %v1391, %v1389
    %v1393 = vsel %vm1390, %v1389, %v1392
    %v1394 = vld [vmem:[%s71] sm:$0xff]
    %v1395 = vld [vmem:[%s71 + $0x8] sm:$0xff]
    %v1396 = vld [vmem:[%s71 + $0x10] sm:$0xff]
    %v1397 = vld [vmem:[%s71 + $0x18] sm:$0xff]
    %v1398 = vld [vmem:[%s71 + $0x20] sm:$0xff]
    %v1399 = vld [vmem:[%s71 + $0x28] sm:$0xff]
    %v1400 = vld [vmem:[%s71 + $0x30] sm:$0xff]
    %v1401 = vld [vmem:[%s71 + $0x38] sm:$0xff]
    %v1402 = vld [vmem:[%s73] sm:$0x1]
    %v1404 = vlaneseq
    %v1405 = vshrl.u32 %v1404, 7
    %v1406 = vsub.s32 0, %v1405
    %v1407 = vrot.slane %v1402, %v1406
    %v1410 = vsel %vm453, %v1393, 0
    %1412 = vmatprep.subr.mxu0 0.0
    %1413 = vmatpush1.msra.mxu0 %v1394
    %1414 = vmatprep.subr.mxu0 0.0
    %1415 = vmatpush1.msra.mxu0 %v1395
    %1416 = vmatprep.subr.mxu0 0.0
    %1417 = vmatpush1.msra.mxu0 %v1396
    %1418 = vmatprep.subr.mxu0 0.0
    %1419 = vmatpush1.msra.mxu0 %v1397
    %1420 = vmatprep.subr.mxu0 0.0
    %1421 = vmatpush1.msra.mxu0 %v1398
    %1422 = vmatprep.subr.mxu0 0.0
    %1423 = vmatpush1.msra.mxu0 %v1399
    %1424 = vmatprep.subr.mxu0 0.0
    %1425 = vmatpush1.msra.mxu0 %v1400
    %1426 = vmatprep.subr.mxu0 0.0
    %1427 = vmatpush1.msra.mxu0 %v1401
    %1428 = vmatprep.subr.mxu0 0.0
    %1429 = vmatpush1.msra.mxu0 0.0
    %1430 = vmatprep.subr.mxu0 0.0
    %1431 = vmatpush1.msra.mxu0 0.0
    %1432 = vmatprep.subr.mxu0 0.0
    %1433 = vmatpush1.msra.mxu0 0.0
    %1434 = vmatprep.subr.mxu0 0.0
    %1435 = vmatpush1.msra.mxu0 0.0
    %1436 = vmatprep.subr.mxu0 0.0
    %1437 = vmatpush1.msra.mxu0 0.0
    %1438 = vmatprep.subr.mxu0 0.0
    %1439 = vmatpush1.msra.mxu0 0.0
    %1440 = vmatprep.subr.mxu0 0.0
    %1441 = vmatpush1.msra.mxu0 0.0
    %1442 = vmatprep.subr.mxu0 0.0
    %1443 = vmatpush1.msra.mxu0 0.0
    %1444 = vmatprep.subr.mxu0 0.0
    %1445 = vmatpush1.msra.mxu0 0.0
    %1446 = vmatprep.subr.mxu0 0.0
    %1447 = vmatpush1.msra.mxu0 0.0
    %1448 = vmatprep.subr.mxu0 0.0
    %1449 = vmatpush1.msra.mxu0 0.0
    %1450 = vmatprep.subr.mxu0 0.0
    %1451 = vmatpush1.msra.mxu0 0.0
    %1452 = vmatprep.subr.mxu0 0.0
    %1453 = vmatpush1.msra.mxu0 0.0
    %1454 = vmatprep.subr.mxu0 0.0
    %1455 = vmatpush1.msra.mxu0 0.0
    %1456 = vmatprep.subr.mxu0 0.0
    %1457 = vmatpush1.msra.mxu0 0.0
    %1458 = vmatprep.subr.mxu0 0.0
    %1459 = vmatpush1.msra.mxu0 0.0
    %1460 = vmatprep.subr.mxu0 0.0
    %1461 = vmatpush1.msra.mxu0 0.0
    %1462 = vmatprep.subr.mxu0 0.0
    %1463 = vmatpush1.msra.mxu0 0.0
    %1464 = vmatprep.subr.mxu0 0.0
    %1465 = vmatpush1.msra.mxu0 0.0
    %1466 = vmatprep.subr.mxu0 0.0
    %1467 = vmatpush1.msra.mxu0 0.0
    %1468 = vmatprep.subr.mxu0 0.0
    %1469 = vmatpush1.msra.mxu0 0.0
    %1470 = vmatprep.subr.mxu0 0.0
    %1471 = vmatpush1.msra.mxu0 0.0
    %1472 = vmatprep.subr.mxu0 0.0
    %1473 = vmatpush1.msra.mxu0 0.0
    %1474 = vmatprep.subr.mxu0 0.0
    %1475 = vmatpush1.msra.mxu0 0.0
    %1476 = vmatprep.mubr.f32.mxu0 0.0
    %1477 = vmatmul.mubr.f32.gmra.mrb[0].mxu0 %v1410
    %v1478 = vpop.f32.mrb[0].mxu0
    %v1479 = vadd.f32 %v1407, %v1478
    %v1480 = vpop.f32.mrb[0].mxu0
    %1481 = vdwg.mxu0
    %v1482 = vmul.f32 %v1479, 1.442695
    %v1483 = vpow.pop %v1482
    %v1484 = vmax.f32 %v1479, 0.0
    %v1485 = vand.u32 2147483647, %v1479
    %v1486 = vsub.f32 0.0, %v1485
    %v1487 = vmul.f32 %v1486, 1.442695
    %v1488 = vpow.pop %v1487
    %v1489 = vadd.f32 %v1488, 1.0
    %v1490 = vlog2.pop %v1489
    %v1491 = vmul.f32 %v1490, 0.6931472
    %v1492 = vmul.f32 -0.5, %v1488
    %v1493 = vadd.f32 %v1492, 1.0
    %v1494 = vmul.f32 %v1493, %v1488
    %v1495 = vand.u32 2147483647, %v1488
    %vm1496 = vcmp.lt.f32.partialorder %v1495, 0.0004427343
    %v1497 = vsel %vm1496, %v1494, %v1491
    %v1498 = vadd.f32 %v1484, %v1497
    %v1499 = vmax.f32 %v1498, 0.0001
    %v1500 = vmin.f32 %v1499, 1000.0
    %v1501 = vld [vmem:[%s75] sm:$0xff]
    %v1502 = vld [vmem:[%s75 + $0x8] sm:$0xff]
    %v1503 = vld [vmem:[#allocation2] sm:$0x1]
    %v1505 = vlaneseq
    %v1506 = vshrl.u32 %v1505, 7
    %v1507 = vsub.s32 0, %v1506
    %v1508 = vrot.slane %v1503, %v1507
    %1510 = vmatprep.subr.mxu0 0.0
    %1511 = vmatpush1.msra.mxu0 %v1501
    %1512 = vmatprep.subr.mxu0 0.0
    %1513 = vmatpush1.msra.mxu0 %v1502
    %1514 = vmatprep.subr.mxu0 0.0
    %1515 = vmatpush1.msra.mxu0 0.0
    %1516 = vmatprep.subr.mxu0 0.0
    %1517 = vmatpush1.msra.mxu0 0.0
    %1518 = vmatprep.subr.mxu0 0.0
    %1519 = vmatpush1.msra.mxu0 0.0
    %1520 = vmatprep.subr.mxu0 0.0
    %1521 = vmatpush1.msra.mxu0 0.0
    %1522 = vmatprep.subr.mxu0 0.0
    %1523 = vmatpush1.msra.mxu0 0.0
    %1524 = vmatprep.subr.mxu0 0.0
    %1525 = vmatpush1.msra.mxu0 0.0
    %1526 = vmatprep.subr.mxu0 0.0
    %1527 = vmatpush1.msra.mxu0 0.0
    %1528 = vmatprep.subr.mxu0 0.0
    %1529 = vmatpush1.msra.mxu0 0.0
    %1530 = vmatprep.subr.mxu0 0.0
    %1531 = vmatpush1.msra.mxu0 0.0
    %1532 = vmatprep.subr.mxu0 0.0
    %1533 = vmatpush1.msra.mxu0 0.0
    %1534 = vmatprep.subr.mxu0 0.0
    %1535 = vmatpush1.msra.mxu0 0.0
    %1536 = vmatprep.subr.mxu0 0.0
    %1537 = vmatpush1.msra.mxu0 0.0
    %1538 = vmatprep.subr.mxu0 0.0
    %1539 = vmatpush1.msra.mxu0 0.0
    %1540 = vmatprep.subr.mxu0 0.0
    %1541 = vmatpush1.msra.mxu0 0.0
    %1542 = vmatprep.subr.mxu0 0.0
    %1543 = vmatpush1.msra.mxu0 0.0
    %1544 = vmatprep.subr.mxu0 0.0
    %1545 = vmatpush1.msra.mxu0 0.0
    %1546 = vmatprep.subr.mxu0 0.0
    %1547 = vmatpush1.msra.mxu0 0.0
    %1548 = vmatprep.subr.mxu0 0.0
    %1549 = vmatpush1.msra.mxu0 0.0
    %1550 = vmatprep.subr.mxu0 0.0
    %1551 = vmatpush1.msra.mxu0 0.0
    %1552 = vmatprep.subr.mxu0 0.0
    %1553 = vmatpush1.msra.mxu0 0.0
    %1554 = vmatprep.subr.mxu0 0.0
    %1555 = vmatpush1.msra.mxu0 0.0
    %1556 = vmatprep.subr.mxu0 0.0
    %1557 = vmatpush1.msra.mxu0 0.0
    %1558 = vmatprep.subr.mxu0 0.0
    %1559 = vmatpush1.msra.mxu0 0.0
    %1560 = vmatprep.subr.mxu0 0.0
    %1561 = vmatpush1.msra.mxu0 0.0
    %1562 = vmatprep.subr.mxu0 0.0
    %1563 = vmatpush1.msra.mxu0 0.0
    %1564 = vmatprep.subr.mxu0 0.0
    %1565 = vmatpush1.msra.mxu0 0.0
    %1566 = vmatprep.subr.mxu0 0.0
    %1567 = vmatpush1.msra.mxu0 0.0
    %1568 = vmatprep.subr.mxu0 0.0
    %1569 = vmatpush1.msra.mxu0 0.0
    %1570 = vmatprep.subr.mxu0 0.0
    %1571 = vmatpush1.msra.mxu0 0.0
    %1572 = vmatprep.subr.mxu0 0.0
    %1573 = vmatpush1.msra.mxu0 0.0
    %1574 = vmatprep.mubr.f32.mxu0 0.0
    %1575 = vmatmul.mubr.f32.gmra.mrb[0].mxu0 %v1252
    %v1576 = vpop.f32.mrb[0].mxu0
    %v1577 = vadd.f32 %v1508, %v1576
    %v1578 = vpop.f32.mrb[0].mxu0
    %1579 = vdwg.mxu0
    %v1580 = vld [vmem:[#allocation5] sm:$0x1]
    %v1581 = vld [vmem:[#allocation7] sm:$0x1]
    %s1582 = sld [smem:[#allocation16 + $0x6]]
    %v1583 = vsel %vm1060, %v1577, 0.0
    %v1584 = vrot.slane %v1583, 4
    %v1585 = vadd.f32 %v1583, %v1584
    %v1586 = vrot.slane %v1585, 2
    %v1587 = vadd.f32 %v1585, %v1586
    %v1588 = vrot.slane %v1587, 1
    %v1589 = vadd.f32 %v1587, %v1588
    %v1590 = vmul.f32 %v1589, %v405
    %v1591 = vsub.f32 %v1577, %v1590
    %v1592 = vmul.f32 %v1591, %v1591
    %v1593 = vsel %vm1060, %v1592, 0.0
    %v1594 = vrot.slane %v1593, 4
    %v1595 = vadd.f32 %v1593, %v1594
    %v1596 = vrot.slane %v1595, 2
    %v1597 = vadd.f32 %v1595, %v1596
    %v1598 = vrot.slane %v1597, 1
    %v1599 = vadd.f32 %v1597, %v1598
    %v1600 = vmul.f32 %v1599, %v405
    %v1601 = vadd.f32 %v1600, 1e-05
    %v1602 = vrsqrt.pop %v1601
    %v1603 = vmul.f32 %v1591, %v1602
    %v1605 = vrot.slane %v1577, 4
    %v1607 = vsel %vm1060, %v1605, 0.0
    %v1608 = vrot.slane %v1607, 4
    %v1609 = vadd.f32 %v1607, %v1608
    %v1610 = vrot.slane %v1609, 2
    %v1611 = vadd.f32 %v1609, %v1610
    %v1612 = vrot.slane %v1611, 1
    %v1613 = vadd.f32 %v1611, %v1612
    %v1614 = vmul.f32 %v1613, %v405
    %v1615 = vsub.f32 %v1577, %v1614
    %v1616 = vmul.f32 %v1615, %v1615
    %v1618 = vrot.slane %v1616, 4
    %v1620 = vsel %vm1060, %v1618, 0.0
    %v1621 = vrot.slane %v1620, 4
    %v1622 = vadd.f32 %v1620, %v1621
    %v1623 = vrot.slane %v1622, 2
    %v1624 = vadd.f32 %v1622, %v1623
    %v1625 = vrot.slane %v1624, 1
    %v1626 = vadd.f32 %v1624, %v1625
    %v1627 = vmul.f32 %v1626, %v405
    %v1628 = vadd.f32 %v1627, 1e-05
    %v1629 = vrsqrt.pop %v1628
    %v1630 = vmul.f32 %v1615, %v1629
    %v1631 = vsel %vm1239, %v1603, %v1630
    %v1633 = vlaneseq
    %v1634 = vshrl.u32 %v1633, 7
    %v1635 = vsub.s32 0, %v1634
    %v1636 = vrot.slane %v1580, %v1635
    %v1638 = vmul.f32 %v1636, %v1631
    %v1640 = vlaneseq
    %v1641 = vshrl.u32 %v1640, 7
    %v1642 = vsub.s32 0, %v1641
    %v1643 = vrot.slane %v1581, %v1642
    %v1645 = vadd.f32 %v1638, %v1643
    %vm1646 = vcmp.ge.f32.partialorder %v1645, 0.0
    %v1647 = vstv %s1582
    %v1648 = vmul.f32 %v1647, %v1645
    %v1649 = vsel %vm1646, %v1645, %v1648
    %v1650 = vld [vmem:[%s83] sm:$0xff]
    %v1651 = vld [vmem:[%s83 + $0x8] sm:$0xff]
    %v1652 = vld [vmem:[%s83 + $0x10] sm:$0xff]
    %v1653 = vld [vmem:[%s83 + $0x18] sm:$0xff]
    %v1654 = vld [vmem:[%s83 + $0x20] sm:$0xff]
    %v1655 = vld [vmem:[%s83 + $0x28] sm:$0xff]
    %v1656 = vld [vmem:[#allocation8] sm:$0x1]
    %v1658 = vlaneseq
    %v1659 = vshrl.u32 %v1658, 7
    %v1660 = vsub.s32 0, %v1659
    %v1661 = vrot.slane %v1656, %v1660
    %v1664 = vsel %vm1118, %v1649, 0
    %1666 = vmatprep.subr.mxu0 0.0
    %1667 = vmatpush1.msra.mxu0 %v1650
    %1668 = vmatprep.subr.mxu0 0.0
    %1669 = vmatpush1.msra.mxu0 %v1651
    %1670 = vmatprep.subr.mxu0 0.0
    %1671 = vmatpush1.msra.mxu0 %v1652
    %1672 = vmatprep.subr.mxu0 0.0
    %1673 = vmatpush1.msra.mxu0 %v1653
    %1674 = vmatprep.subr.mxu0 0.0
    %1675 = vmatpush1.msra.mxu0 %v1654
    %1676 = vmatprep.subr.mxu0 0.0
    %1677 = vmatpush1.msra.mxu0 %v1655
    %1678 = vmatprep.subr.mxu0 0.0
    %1679 = vmatpush1.msra.mxu0 0.0
    %1680 = vmatprep.subr.mxu0 0.0
    %1681 = vmatpush1.msra.mxu0 0.0
    %1682 = vmatprep.subr.mxu0 0.0
    %1683 = vmatpush1.msra.mxu0 0.0
    %1684 = vmatprep.subr.mxu0 0.0
    %1685 = vmatpush1.msra.mxu0 0.0
    %1686 = vmatprep.subr.mxu0 0.0
    %1687 = vmatpush1.msra.mxu0 0.0
    %1688 = vmatprep.subr.mxu0 0.0
    %1689 = vmatpush1.msra.mxu0 0.0
    %1690 = vmatprep.subr.mxu0 0.0
    %1691 = vmatpush1.msra.mxu0 0.0
    %1692 = vmatprep.subr.mxu0 0.0
    %1693 = vmatpush1.msra.mxu0 0.0
    %1694 = vmatprep.subr.mxu0 0.0
    %1695 = vmatpush1.msra.mxu0 0.0
    %1696 = vmatprep.subr.mxu0 0.0
    %1697 = vmatpush1.msra.mxu0 0.0
    %1698 = vmatprep.subr.mxu0 0.0
    %1699 = vmatpush1.msra.mxu0 0.0
    %1700 = vmatprep.subr.mxu0 0.0
    %1701 = vmatpush1.msra.mxu0 0.0
    %1702 = vmatprep.subr.mxu0 0.0
    %1703 = vmatpush1.msra.mxu0 0.0
    %1704 = vmatprep.subr.mxu0 0.0
    %1705 = vmatpush1.msra.mxu0 0.0
    %1706 = vmatprep.subr.mxu0 0.0
    %1707 = vmatpush1.msra.mxu0 0.0
    %1708 = vmatprep.subr.mxu0 0.0
    %1709 = vmatpush1.msra.mxu0 0.0
    %1710 = vmatprep.subr.mxu0 0.0
    %1711 = vmatpush1.msra.mxu0 0.0
    %1712 = vmatprep.subr.mxu0 0.0
    %1713 = vmatpush1.msra.mxu0 0.0
    %1714 = vmatprep.subr.mxu0 0.0
    %1715 = vmatpush1.msra.mxu0 0.0
    %1716 = vmatprep.subr.mxu0 0.0
    %1717 = vmatpush1.msra.mxu0 0.0
    %1718 = vmatprep.subr.mxu0 0.0
    %1719 = vmatpush1.msra.mxu0 0.0
    %1720 = vmatprep.subr.mxu0 0.0
    %1721 = vmatpush1.msra.mxu0 0.0
    %1722 = vmatprep.subr.mxu0 0.0
    %1723 = vmatpush1.msra.mxu0 0.0
    %1724 = vmatprep.subr.mxu0 0.0
    %1725 = vmatpush1.msra.mxu0 0.0
    %1726 = vmatprep.subr.mxu0 0.0
    %1727 = vmatpush1.msra.mxu0 0.0
    %1728 = vmatprep.subr.mxu0 0.0
    %1729 = vmatpush1.msra.mxu0 0.0
    %1730 = vmatprep.mubr.f32.mxu0 0.0
    %1731 = vmatmul.mubr.f32.gmra.mrb[0].mxu0 %v1664
    %v1732 = vpop.f32.mrb[0].mxu0
    %v1733 = vadd.f32 %v1661, %v1732
    %v1734 = vpop.f32.mrb[0].mxu0
    %1735 = vdwg.mxu0
    %v1736 = vld [vmem:[#allocation10] sm:$0x1]
    %v1737 = vld [vmem:[#allocation11] sm:$0x1]
    %v1738 = vld [vmem:[#allocation13] sm:$0x1]
    %v1739 = vsel %vm919, %v1733, 0.0
    %v1740 = vrot.slane %v1739, 4
    %v1741 = vadd.f32 %v1739, %v1740
    %v1742 = vrot.slane %v1741, 2
    %v1743 = vadd.f32 %v1741, %v1742
    %v1744 = vrot.slane %v1743, 1
    %v1745 = vadd.f32 %v1743, %v1744
    %v1746 = vmul.f32 %v1745, %v405
    %v1747 = vsub.f32 %v1733, %v1746
    %v1748 = vmul.f32 %v1747, %v1747
    %v1749 = vsel %vm919, %v1748, 0.0
    %v1750 = vrot.slane %v1749, 4
    %v1751 = vadd.f32 %v1749, %v1750
    %v1752 = vrot.slane %v1751, 2
    %v1753 = vadd.f32 %v1751, %v1752
    %v1754 = vrot.slane %v1753, 1
    %v1755 = vadd.f32 %v1753, %v1754
    %v1756 = vmul.f32 %v1755, %v405
    %v1757 = vadd.f32 %v1756, 1e-05
    %v1758 = vrsqrt.pop %v1757
    %v1759 = vmul.f32 %v1747, %v1758
    %v1761 = vrot.slane %v1733, 4
    %v1763 = vsel %vm919, %v1761, 0.0
    %v1764 = vrot.slane %v1763, 4
    %v1765 = vadd.f32 %v1763, %v1764
    %v1766 = vrot.slane %v1765, 2
    %v1767 = vadd.f32 %v1765, %v1766
    %v1768 = vrot.slane %v1767, 1
    %v1769 = vadd.f32 %v1767, %v1768
    %v1770 = vmul.f32 %v1769, %v405
    %v1771 = vsub.f32 %v1733, %v1770
    %v1772 = vmul.f32 %v1771, %v1771
    %v1774 = vrot.slane %v1772, 4
    %v1776 = vsel %vm919, %v1774, 0.0
    %v1777 = vrot.slane %v1776, 4
    %v1778 = vadd.f32 %v1776, %v1777
    %v1779 = vrot.slane %v1778, 2
    %v1780 = vadd.f32 %v1778, %v1779
    %v1781 = vrot.slane %v1780, 1
    %v1782 = vadd.f32 %v1780, %v1781
    %v1783 = vmul.f32 %v1782, %v405
    %v1784 = vadd.f32 %v1783, 1e-05
    %v1785 = vrsqrt.pop %v1784
    %v1786 = vmul.f32 %v1771, %v1785
    %v1787 = vsel %vm1239, %v1759, %v1786
    %v1789 = vlaneseq
    %v1790 = vshrl.u32 %v1789, 7
    %v1791 = vsub.s32 0, %v1790
    %v1792 = vrot.slane %v1736, %v1791
    %v1794 = vmul.f32 %v1792, %v1787
    %v1796 = vlaneseq
    %v1797 = vshrl.u32 %v1796, 7
    %v1798 = vsub.s32 0, %v1797
    %v1799 = vrot.slane %v1737, %v1798
    %v1801 = vadd.f32 %v1794, %v1799
    %vm1802 = vcmp.ge.f32.partialorder %v1801, 0.0
    %v1804 = vlaneseq
    %v1805 = vshrl.u32 %v1804, 7
    %v1806 = vsub.s32 0, %v1805
    %v1807 = vrot.slane %v1738, %v1806
    %v1809 = vmul.f32 %v1807, %v1801
    %v1810 = vsel %vm1802, %v1801, %v1809
    %v1811 = vld [vmem:[%s93] sm:$0xff]
    %v1812 = vld [vmem:[%s93 + $0x8] sm:$0xff]
    %v1813 = vld [vmem:[%s93 + $0x10] sm:$0xff]
    %v1814 = vld [vmem:[%s93 + $0x18] sm:$0xff]
    %v1815 = vld [vmem:[%s93 + $0x20] sm:$0xff]
    %v1816 = vld [vmem:[%s93 + $0x28] sm:$0xff]
    %v1817 = vld [vmem:[%s93 + $0x30] sm:$0xff]
    %v1818 = vld [vmem:[%s93 + $0x38] sm:$0xff]
    %v1819 = vld [vmem:[%s93 + $0x40] sm:$0xff]
    %v1820 = vld [vmem:[%s93 + $0x48] sm:$0xff]
    %v1821 = vld [vmem:[%s93 + $0x50] sm:$0xff]
    %v1822 = vld [vmem:[%s93 + $0x58] sm:$0xff]
    %v1823 = vld [vmem:[#allocation14] sm:$0x1]
    %v1825 = vlaneseq
    %v1826 = vshrl.u32 %v1825, 7
    %v1827 = vsub.s32 0, %v1826
    %v1828 = vrot.slane %v1823, %v1827
    %v1831 = vsel %vm983, %v1810, 0
    %1833 = vmatprep.subr.mxu0 0.0
    %1834 = vmatpush1.msra.mxu0 %v1811
    %1835 = vmatprep.subr.mxu0 0.0
    %1836 = vmatpush1.msra.mxu0 %v1812
    %1837 = vmatprep.subr.mxu0 0.0
    %1838 = vmatpush1.msra.mxu0 %v1813
    %1839 = vmatprep.subr.mxu0 0.0
    %1840 = vmatpush1.msra.mxu0 %v1814
    %1841 = vmatprep.subr.mxu0 0.0
    %1842 = vmatpush1.msra.mxu0 %v1815
    %1843 = vmatprep.subr.mxu0 0.0
    %1844 = vmatpush1.msra.mxu0 %v1816
    %1845 = vmatprep.subr.mxu0 0.0
    %1846 = vmatpush1.msra.mxu0 %v1817
    %1847 = vmatprep.subr.mxu0 0.0
    %1848 = vmatpush1.msra.mxu0 %v1818
    %1849 = vmatprep.subr.mxu0 0.0
    %1850 = vmatpush1.msra.mxu0 %v1819
    %1851 = vmatprep.subr.mxu0 0.0
    %1852 = vmatpush1.msra.mxu0 %v1820
    %1853 = vmatprep.subr.mxu0 0.0
    %1854 = vmatpush1.msra.mxu0 %v1821
    %1855 = vmatprep.subr.mxu0 0.0
    %1856 = vmatpush1.msra.mxu0 %v1822
    %1857 = vmatprep.subr.mxu0 0.0
    %1858 = vmatpush1.msra.mxu0 0.0
    %1859 = vmatprep.subr.mxu0 0.0
    %1860 = vmatpush1.msra.mxu0 0.0
    %1861 = vmatprep.subr.mxu0 0.0
    %1862 = vmatpush1.msra.mxu0 0.0
    %1863 = vmatprep.subr.mxu0 0.0
    %1864 = vmatpush1.msra.mxu0 0.0
    %1865 = vmatprep.subr.mxu0 0.0
    %1866 = vmatpush1.msra.mxu0 0.0
    %1867 = vmatprep.subr.mxu0 0.0
    %1868 = vmatpush1.msra.mxu0 0.0
    %1869 = vmatprep.subr.mxu0 0.0
    %1870 = vmatpush1.msra.mxu0 0.0
    %1871 = vmatprep.subr.mxu0 0.0
    %1872 = vmatpush1.msra.mxu0 0.0
    %1873 = vmatprep.subr.mxu0 0.0
    %1874 = vmatpush1.msra.mxu0 0.0
    %1875 = vmatprep.subr.mxu0 0.0
    %1876 = vmatpush1.msra.mxu0 0.0
    %1877 = vmatprep.subr.mxu0 0.0
    %1878 = vmatpush1.msra.mxu0 0.0
    %1879 = vmatprep.subr.mxu0 0.0
    %1880 = vmatpush1.msra.mxu0 0.0
    %1881 = vmatprep.subr.mxu0 0.0
    %1882 = vmatpush1.msra.mxu0 0.0
    %1883 = vmatprep.subr.mxu0 0.0
    %1884 = vmatpush1.msra.mxu0 0.0
    %1885 = vmatprep.subr.mxu0 0.0
    %1886 = vmatpush1.msra.mxu0 0.0
    %1887 = vmatprep.subr.mxu0 0.0
    %1888 = vmatpush1.msra.mxu0 0.0
    %1889 = vmatprep.subr.mxu0 0.0
    %1890 = vmatpush1.msra.mxu0 0.0
    %1891 = vmatprep.subr.mxu0 0.0
    %1892 = vmatpush1.msra.mxu0 0.0
    %1893 = vmatprep.subr.mxu0 0.0
    %1894 = vmatpush1.msra.mxu0 0.0
    %1895 = vmatprep.subr.mxu0 0.0
    %1896 = vmatpush1.msra.mxu0 0.0
    %1897 = vmatprep.mubr.f32.mxu0 0.0
    %1898 = vmatmul.mubr.f32.gmra.mrb[0].mxu0 %v1831
    %v1899 = vpop.f32.mrb[0].mxu0
    %v1900 = vadd.f32 %v1828, %v1899
    %v1901 = vpop.f32.mrb[0].mxu0
    %1902 = vdwg.mxu0
    %v1903 = vsub.f32 0.0, %v1900
    %v1904 = vmul.f32 %v1903, 1.442695
    %v1905 = vpow.pop %v1904
    %v1906 = vadd.f32 %v1905, 1.0
    %v1907 = vrcp.pop %v1906
    %v1908 = vmul.f32 1.0, %v1907
    %1909 = vrot.lane.b32.xlu0 %v1235, 16
    %v1910 = vpop.permute.xlu0 %1909
    %1913 = vrot.lane.b32.xlu0 %v1483, 32
    %v1914 = vpop.permute.xlu0 %1913
    %1917 = vrot.lane.b32.xlu0 %v1500, 32
    %v1918 = vpop.permute.xlu0 %1917
    %1921 = vrot.lane.b32.xlu0 %v1479, 32
    %v1922 = vpop.permute.xlu0 %1921
    %v1924 = vrot.slane %v1483, 4
    %v1926 = vrot.slane %v1500, 4
    %v1928 = vrot.slane %v1479, 4
    %1931 = vrot.lane.b32.xlu0 %v1908, 96
    %v1932 = vpop.permute.xlu0 %1931
    %v1934 = vrot.slane %v1908, 4
    %1935 = vrot.lane.b32.xlu0 %v1934, 24
    %v1936 = vpop.permute.xlu0 %1935
    %v1938 = vsel %vm1250, %v569, %v1910
    %v1939 = vsel %vm320, %v1938, %v1914
    %v1940 = vsel %vm453, %v1939, %v1918
    %v1941 = vsel %vm983, %v1940, %v1922
    %v1942 = vsel %vm320, %v1924, %v1926
    %v1943 = vsel %vm453, %v1942, %v1928
    %v1944 = vsel %vm983, %v1943, %v1932
    %v1945 = vsel %vm582, %v1932, %v1936
    %v1948 = vcombine.low %v1941, %v1944
    %1950 = vst [vmem:[%s99] sm:$0xff] %v1948
    %vm1951 = vcmask 650240
    %1952 = vst.msk [vmem:[%s99 + $0x8] sm:$0xf] %vm1951, %v1945
    // Predicated region
    $region234: #{assym_spliced_ae_fwd.1} parent=1 // pred_check
      _
    $region235: #{assym_spliced_ae_fwd.1} parent=1 // pred_check_branch
      %1954 = sbr.rel (0) target = $region237
    $region236: #{assym_spliced_ae_fwd.1} parent=1 // pred_region
      _
    $region237: #{assym_spliced_ae_fwd.1} parent=1 // pred_fallthru
      _
    // Predicated region
    $region238: #{assym_spliced_ae_fwd.1} parent=1 // pred_check
      _
    $region239: #{assym_spliced_ae_fwd.1} parent=1 // pred_check_branch
      %1956 = sbr.rel (0) target = $region241
    $region240: #{assym_spliced_ae_fwd.1} parent=1 // pred_region
      _
    $region241: #{assym_spliced_ae_fwd.1} parent=1 // pred_fallthru
      _
    %1957 = vsyncpa [#allocation3], 1
    %1958 = vsyncpa [#allocation6], 1
    %1959 = vsyncpa [#allocation9], 1
    %1960 = vsyncpa [#allocation12], 1
    %1961 = vsyncpa [#allocation15], 1
    %1962 = vsyncpa [#allocation4], 1

</llo_original>
